<compile_context>
chip_gen: v7x
topology: tpu7x:2x2x1
jax: 0.10.0
libtpu: 0.0.40
codegen_flags: <defaults>
</compile_context>

<pallas_src>
import functools
import math

import jax
import jax.numpy as jnp
from jax.experimental import pallas as pl
from jax.experimental.pallas import tpu as pltpu


# ------------------------------ fused Pallas kernel ------------------------------

def _vit_fused_kernel(xin_ref, base_ref, patch_w_ref,
                      ln1_g_ref, ln1_b_ref, qkv_w_ref,
                      proj_w_ref, proj_b_ref,
                      ln2_g_ref, ln2_b_ref,
                      fc1_w_ref, fc1_b_ref, fc2_w_ref, fc2_b_ref,
                      norm_g_ref, norm_b_ref,
                      out_ref, *, depth, num_heads, eps):
    f32 = jnp.float32

    def layernorm(y, g, b):
        mu = jnp.mean(y, axis=-1, keepdims=True)
        yc = y - mu
        var = jnp.mean(yc * yc, axis=-1, keepdims=True)
        return yc * jax.lax.rsqrt(var + eps) * g + b

    # Patch embed (Conv2d(kernel=stride=patch) as a matmul) fused with token/pos assembly:
    # rows 0..3 of xin are zero, base carries (special tokens + pos) there and
    # (conv bias + patch pos) for the patch rows.
    x = jnp.dot(xin_ref[0], patch_w_ref[...], preferred_element_type=f32) + base_ref[...]

    n_tok, dim = x.shape
    dh = dim // num_heads
    scale = dh ** -0.5

    for d in range(depth):                       # depth small & static -> unrolled
        # ---------------- attention branch ----------------
        xn = layernorm(x, ln1_g_ref[d], ln1_b_ref[d])
        # qkv_bias=False in the module -> no bias add
        qkv = jnp.dot(xn, qkv_w_ref[d], preferred_element_type=f32)   # (N, 3C)
        proj_w = proj_w_ref[d]                                        # (C, C)

        attn_proj = jnp.zeros((n_tok, dim), f32)
        for h in range(num_heads):                                    # all heads in one step
            q = qkv[:, h * dh:(h + 1) * dh] * scale                   # scale folded into q
            k = qkv[:, dim + h * dh:dim + (h + 1) * dh]
            v = qkv[:, 2 * dim + h * dh:2 * dim + (h + 1) * dh]
            s = jnp.dot(q, k.T, preferred_element_type=f32)           # (N, N)
            s = s - jnp.max(s, axis=-1, keepdims=True)
            p = jnp.exp(s)
            p = p * pl.reciprocal(jnp.sum(p, axis=-1, keepdims=True), approx=True)
            o_h = jnp.dot(p, v, preferred_element_type=f32)           # (N, Dh)
            # fold the per-head concat into the output projection (no lane concat needed)
            attn_proj = attn_proj + jnp.dot(
                o_h, proj_w[h * dh:(h + 1) * dh, :], preferred_element_type=f32)

        x = x + attn_proj + proj_b_ref[d]                             # residual (drop_path = 0)

        # ---------------- MLP branch ----------------
        xn2 = layernorm(x, ln2_g_ref[d], ln2_b_ref[d])
        hdn = jnp.dot(xn2, fc1_w_ref[d], preferred_element_type=f32) + fc1_b_ref[d]
        # exact (erf) GELU, matching nn.GELU default
        hdn = 0.5 * hdn * (1.0 + jax.lax.erf(hdn * (1.0 / math.sqrt(2.0))))
        x = x + jnp.dot(hdn, fc2_w_ref[d], preferred_element_type=f32) + fc2_b_ref[d]

    out_ref[0] = layernorm(x, norm_g_ref[...], norm_b_ref[...]).astype(out_ref.dtype)


# ------------------------------ forward (glue + single pallas_call) ------------------------------

def vit_forward(x, params, *, patch, num_heads, depth):
    B, Cin, H, W = x.shape
    Hp, Wp = H // patch, W // patch
    P = Hp * Wp
    C = params["patch_w"].shape[0]
    Kdim = Cin * patch * patch
    n_special = 4
    N = n_special + P

    # ---------- plain-JAX glue (layout only, no compute) ----------
    xp = x.reshape(B, Cin, Hp, patch, Wp, patch).transpose(0, 2, 4, 1, 3, 5)
    xp = xp.reshape(B, P, Kdim)
    xin = jnp.concatenate([jnp.zeros((B, n_special, Kdim), x.dtype), xp], axis=1)  # (B, N, Kdim)

    w2 = params["patch_w"].reshape(C, Kdim).T.astype(jnp.float32)                  # (Kdim, C)

    special = jnp.concatenate([params["cls_token"], params["part_token1"],
                               params["part_token2"], params["part_token3"]], axis=1)[0]
    special_pos = jnp.concatenate([params["cls_pos"], params["part1_pos"],
                                   params["part2_pos"], params["part3_pos"]], axis=1)[0]
    # TODO(synk): interpolate_pos_encoding's bicubic resample (+0.1 scale hack) at matching
    # resolution yields the same grid with a ~1e-3 sub-pixel shift; approximated as identity.
    base = jnp.concatenate([special + special_pos,
                            params["patch_b"][None, :] + params["pos_embed"][0]], axis=0)  # (N, C)

    stk = params["blocks_stacked"]
    operands = [xin, base, w2,
                stk["ln1_g"], stk["ln1_b"], stk["qkv_w"],
                stk["proj_w"], stk["proj_b"],
                stk["ln2_g"], stk["ln2_b"],
                stk["fc1_w"], stk["fc1_b"], stk["fc2_w"], stk["fc2_b"],
                params["norm_g"].reshape(1, C), params["norm_b"].reshape(1, C)]

    def const_spec(a):
        nd = a.ndim
        return pl.BlockSpec(a.shape, lambda b, _nd=nd: (0,) * _nd)

    in_specs = [pl.BlockSpec((1, N, Kdim), lambda b: (b, 0, 0))]   # per-batch image block
    in_specs += [const_spec(a) for a in operands[1:]]              # weights: whole-array, resident

    out = pl.pallas_call(
        functools.partial(_vit_fused_kernel, depth=depth, num_heads=num_heads, eps=1e-5),
        out_shape=jax.ShapeDtypeStruct((B, N, C), jnp.float32),
        grid=(B,),
        in_specs=in_specs,
        out_specs=pl.BlockSpec((1, N, C), lambda b: (b, 0, 0)),
        compiler_params=pltpu.CompilerParams(dimension_semantics=("parallel",)),
    )(*operands)

    # part_index == None path of forward()
    return out[:, 0], out[:, 1], out[:, 2], out[:, 3]


# ------------------------------ pure-JAX reference (same math) ------------------------------

def vit_reference(x, params, *, patch, num_heads, depth):
    B, Cin, H, W = x.shape
    Hp, Wp = H // patch, W // patch
    P = Hp * Wp
    C = params["patch_w"].shape[0]
    dh = C // num_heads

    xp = x.reshape(B, Cin, Hp, patch, Wp, patch).transpose(0, 2, 4, 1, 3, 5).reshape(B, P, -1)
    tok = xp @ params["patch_w"].reshape(C, -1).T + params["patch_b"]

    cls = jnp.broadcast_to(params["cls_token"], (B, 1, C))
    p1 = jnp.broadcast_to(params["part_token1"], (B, 1, C))
    p2 = jnp.broadcast_to(params["part_token2"], (B, 1, C))
    p3 = jnp.broadcast_to(params["part_token3"], (B, 1, C))
    xt = jnp.concatenate([cls, p1, p2, p3, tok], axis=1)
    pos = jnp.concatenate([params["cls_pos"], params["part1_pos"], params["part2_pos"],
                           params["part3_pos"], params["pos_embed"]], axis=1)
    xt = xt + pos
    N = xt.shape[1]

    def ln(y, g, b):
        mu = y.mean(-1, keepdims=True)
        yc = y - mu
        var = (yc * yc).mean(-1, keepdims=True)
        return yc * jax.lax.rsqrt(var + 1e-5) * g + b

    stk = params["blocks_stacked"]
    for d in range(depth):
        xn = ln(xt, stk["ln1_g"][d], stk["ln1_b"][d])
        qkv = (xn @ stk["qkv_w"][d]).reshape(B, N, 3, num_heads, dh).transpose(2, 0, 3, 1, 4)
        q, k, v = qkv[0], qkv[1], qkv[2]
        att = jax.nn.softmax((q @ jnp.swapaxes(k, -1, -2)) * dh ** -0.5, axis=-1)
        o = (att @ v).transpose(0, 2, 1, 3).reshape(B, N, C)
        xt = xt + o @ stk["proj_w"][d] + stk["proj_b"][d]
        xn2 = ln(xt, stk["ln2_g"][d], stk["ln2_b"][d])
        hdn = xn2 @ stk["fc1_w"][d] + stk["fc1_b"][d]
        hdn = 0.5 * hdn * (1.0 + jax.lax.erf(hdn * (1.0 / math.sqrt(2.0))))
        xt = xt + hdn @ stk["fc2_w"][d] + stk["fc2_b"][d]
    xf = ln(xt, params["norm_g"], params["norm_b"])
    return xf[:, 0], xf[:, 1], xf[:, 2], xf[:, 3]


# ------------------------------ deterministic param init ------------------------------

def init_params(key, in_chans, patch, embed, depth, num_heads, mlp_ratio, num_patches):
    hidden = int(embed * mlp_ratio)
    f32 = jnp.float32
    ks = iter(jax.random.split(key, 16))

    def tn(k, shape, std=0.02):   # trunc_normal_ stand-in (deterministic, synthetic)
        return (std * jax.random.normal(k, shape)).astype(f32)

    params = {
        "patch_w": tn(next(ks), (embed, in_chans, patch, patch)),
        "patch_b": tn(next(ks), (embed,)),
        "cls_token": tn(next(ks), (1, 1, embed)),
        "part_token1": tn(next(ks), (1, 1, embed)),
        "part_token2": tn(next(ks), (1, 1, embed)),
        "part_token3": tn(next(ks), (1, 1, embed)),
        "cls_pos": tn(next(ks), (1, 1, embed)),
        "part1_pos": tn(next(ks), (1, 1, embed)),
        "part2_pos": tn(next(ks), (1, 1, embed)),
        "part3_pos": tn(next(ks), (1, 1, embed)),
        "pos_embed": tn(next(ks), (1, num_patches, embed)),
        "norm_g": jnp.ones((embed,), f32),
        "norm_b": jnp.zeros((embed,), f32),
    }

    def blk_keys(d):
        return jax.random.split(jax.random.fold_in(key, 100 + d), 4)

    # per-block params stacked along a leading depth axis for the fused kernel
    # (linear biases zero, LN weight=1 / bias=0 -> faithful to the module's _init_weights)
    params["blocks_stacked"] = {
        "ln1_g": jnp.ones((depth, 1, embed), f32),
        "ln1_b": jnp.zeros((depth, 1, embed), f32),
        "qkv_w": jnp.stack([tn(blk_keys(d)[0], (embed, 3 * embed)) for d in range(depth)]),
        "proj_w": jnp.stack([tn(blk_keys(d)[1], (embed, embed)) for d in range(depth)]),
        "proj_b": jnp.zeros((depth, 1, embed), f32),
        "ln2_g": jnp.ones((depth, 1, embed), f32),
        "ln2_b": jnp.zeros((depth, 1, embed), f32),
        "fc1_w": jnp.stack([tn(blk_keys(d)[2], (embed, hidden)) for d in range(depth)]),
        "fc1_b": jnp.zeros((depth, 1, hidden), f32),
        "fc2_w": jnp.stack([tn(blk_keys(d)[3], (hidden, embed)) for d in range(depth)]),
        "fc2_b": jnp.zeros((depth, 1, embed), f32),
    }
    return params


# ------------------------------ main ------------------------------

if __name__ == "__main__":
    B, Cin, H, W = 2, 4, 16, 16
    patch, embed, depth, heads, mlp_ratio = 8, 32, 2, 4, 4.0
    num_patches = (H // patch) * (W // patch)

    key = jax.random.PRNGKey(0)
    kx, kp = jax.random.split(key)
    x = jax.random.normal(kx, (B, Cin, H, W), jnp.float32)     # NCHW, like PyTorch
    params = init_params(kp, Cin, patch, embed, depth, heads, mlp_ratio, num_patches)

    fwd = jax.jit(functools.partial(vit_forward, patch=patch, num_heads=heads, depth=depth))
    outs = jax.block_until_ready(fwd(x, params))
    assert all(o.shape == (B, embed) for o in outs)

    # correctness check against a pure-JAX reference of the same forward
    refs = vit_reference(x, params, patch=patch, num_heads=heads, depth=depth)
    for o, r in zip(outs, refs):
        err = float(jnp.max(jnp.abs(o - r)))
        assert err < 2e-2, f"mismatch vs reference: {err}"

    print("KERNEL_OK")
</pallas_src>

<mosaic_0001>
module attributes {stable_mosaic.version = 11 : i64} {
  func.func @_vit_fused_kernel(%arg0: i32, %arg1: memref<1x8x256xf32, #tpu.memory_space<vmem>>, %arg2: memref<8x32xf32, #tpu.memory_space<vmem>>, %arg3: memref<256x32xf32, #tpu.memory_space<vmem>>, %arg4: memref<2x1x32xf32, #tpu.memory_space<vmem>>, %arg5: memref<2x1x32xf32, #tpu.memory_space<vmem>>, %arg6: memref<2x32x96xf32, #tpu.memory_space<vmem>>, %arg7: memref<2x32x32xf32, #tpu.memory_space<vmem>>, %arg8: memref<2x1x32xf32, #tpu.memory_space<vmem>>, %arg9: memref<2x1x32xf32, #tpu.memory_space<vmem>>, %arg10: memref<2x1x32xf32, #tpu.memory_space<vmem>>, %arg11: memref<2x32x128xf32, #tpu.memory_space<vmem>>, %arg12: memref<2x1x128xf32, #tpu.memory_space<vmem>>, %arg13: memref<2x128x32xf32, #tpu.memory_space<vmem>>, %arg14: memref<2x1x32xf32, #tpu.memory_space<vmem>>, %arg15: memref<1x32xf32, #tpu.memory_space<vmem>>, %arg16: memref<1x32xf32, #tpu.memory_space<vmem>>, %arg17: memref<1x8x32xf32, #tpu.memory_space<vmem>>) attributes {dimension_semantics = [#tpu.dimension_semantics<parallel>], iteration_bounds = array<i64: 2>, scalar_prefetch = 0 : i64, scratch_operands = 0 : i64, tpu.core_type = #tpu.core_type<tc>, window_params = [{transform_indices = @transform_0, window_bounds = array<i64: 1, 8, 256>}, {pipeline_mode = #tpu.pipeline_mode<synchronous>, transform_indices = @transform_1, window_bounds = array<i64: 8, 32>}, {pipeline_mode = #tpu.pipeline_mode<synchronous>, transform_indices = @transform_2, window_bounds = array<i64: 256, 32>}, {pipeline_mode = #tpu.pipeline_mode<synchronous>, transform_indices = @transform_3, window_bounds = array<i64: 2, 1, 32>}, {pipeline_mode = #tpu.pipeline_mode<synchronous>, transform_indices = @transform_4, window_bounds = array<i64: 2, 1, 32>}, {pipeline_mode = #tpu.pipeline_mode<synchronous>, transform_indices = @transform_5, window_bounds = array<i64: 2, 32, 96>}, {pipeline_mode = #tpu.pipeline_mode<synchronous>, transform_indices = @transform_6, window_bounds = array<i64: 2, 32, 32>}, {pipeline_mode = #tpu.pipeline_mode<synchronous>, transform_indices = @transform_7, window_bounds = array<i64: 2, 1, 32>}, {pipeline_mode = #tpu.pipeline_mode<synchronous>, transform_indices = @transform_8, window_bounds = array<i64: 2, 1, 32>}, {pipeline_mode = #tpu.pipeline_mode<synchronous>, transform_indices = @transform_9, window_bounds = array<i64: 2, 1, 32>}, {pipeline_mode = #tpu.pipeline_mode<synchronous>, transform_indices = @transform_10, window_bounds = array<i64: 2, 32, 128>}, {pipeline_mode = #tpu.pipeline_mode<synchronous>, transform_indices = @transform_11, window_bounds = array<i64: 2, 1, 128>}, {pipeline_mode = #tpu.pipeline_mode<synchronous>, transform_indices = @transform_12, window_bounds = array<i64: 2, 128, 32>}, {pipeline_mode = #tpu.pipeline_mode<synchronous>, transform_indices = @transform_13, window_bounds = array<i64: 2, 1, 32>}, {pipeline_mode = #tpu.pipeline_mode<synchronous>, transform_indices = @transform_14, window_bounds = array<i64: 1, 32>}, {pipeline_mode = #tpu.pipeline_mode<synchronous>, transform_indices = @transform_15, window_bounds = array<i64: 1, 32>}, {transform_indices = @transform_16, window_bounds = array<i64: 1, 8, 32>}]} {
    %c0 = arith.constant 0 : index
    %c0_0 = arith.constant 0 : index
    %c0_1 = arith.constant 0 : index
    %0 = vector.load %arg1[%c0, %c0_0, %c0_1] : memref<1x8x256xf32, #tpu.memory_space<vmem>>, vector<1x8x256xf32>
    %1 = vector.shape_cast %0 : vector<1x8x256xf32> to vector<8x256xf32>
    %c0_2 = arith.constant 0 : index
    %c0_3 = arith.constant 0 : index
    %2 = vector.load %arg3[%c0_2, %c0_3] : memref<256x32xf32, #tpu.memory_space<vmem>>, vector<256x32xf32>
    %cst = arith.constant dense<0.000000e+00> : vector<8x32xf32>
    %3 = tpu.matmul %1, %2, %cst {dimension_numbers = #tpu.dot_dimension_numbers<[1], [0], [0], [1], [0, 0, 1, 1], [], []>} : vector<8x256xf32>, vector<256x32xf32>, vector<8x32xf32> -> vector<8x32xf32>
    %c0_4 = arith.constant 0 : index
    %c0_5 = arith.constant 0 : index
    %4 = vector.load %arg2[%c0_4, %c0_5] : memref<8x32xf32, #tpu.memory_space<vmem>>, vector<8x32xf32>
    %5 = arith.addf %3, %4 : vector<8x32xf32>
    %c0_6 = arith.constant 0 : index
    %c0_7 = arith.constant 0 : index
    %c0_8 = arith.constant 0 : index
    %6 = vector.load %arg4[%c0_6, %c0_7, %c0_8] : memref<2x1x32xf32, #tpu.memory_space<vmem>>, vector<1x1x32xf32>
    %7 = vector.shape_cast %6 : vector<1x1x32xf32> to vector<1x32xf32>
    %c0_9 = arith.constant 0 : index
    %c0_10 = arith.constant 0 : index
    %c0_11 = arith.constant 0 : index
    %8 = vector.load %arg5[%c0_9, %c0_10, %c0_11] : memref<2x1x32xf32, #tpu.memory_space<vmem>>, vector<1x1x32xf32>
    %9 = vector.shape_cast %8 : vector<1x1x32xf32> to vector<1x32xf32>
    %cst_12 = arith.constant dense<0.000000e+00> : vector<8xf32>
    %10 = vector.multi_reduction <add>, %5, %cst_12 [1] : vector<8x32xf32> to vector<8xf32>
    %11 = vector.shape_cast %10 : vector<8xf32> to vector<8x1xf32>
    %cst_13 = arith.constant 3.200000e+01 : f32
    %12 = vector.broadcast %cst_13 : f32 to vector<8x1xf32>
    %13 = arith.divf %11, %12 : vector<8x1xf32>
    %14 = vector.broadcast %13 : vector<8x1xf32> to vector<8x32xf32>
    %15 = arith.subf %5, %14 : vector<8x32xf32>
    %16 = arith.mulf %15, %15 : vector<8x32xf32>
    %cst_14 = arith.constant dense<0.000000e+00> : vector<8xf32>
    %17 = vector.multi_reduction <add>, %16, %cst_14 [1] : vector<8x32xf32> to vector<8xf32>
    %18 = vector.shape_cast %17 : vector<8xf32> to vector<8x1xf32>
    %cst_15 = arith.constant 3.200000e+01 : f32
    %19 = vector.broadcast %cst_15 : f32 to vector<8x1xf32>
    %20 = arith.divf %18, %19 : vector<8x1xf32>
    %cst_16 = arith.constant 9.99999974E-6 : f32
    %21 = vector.broadcast %cst_16 : f32 to vector<8x1xf32>
    %22 = arith.addf %20, %21 : vector<8x1xf32>
    %23 = math.rsqrt %22 : vector<8x1xf32>
    %24 = vector.broadcast %23 : vector<8x1xf32> to vector<8x32xf32>
    %25 = arith.mulf %15, %24 : vector<8x32xf32>
    %26 = vector.broadcast %7 : vector<1x32xf32> to vector<8x32xf32>
    %27 = arith.mulf %25, %26 : vector<8x32xf32>
    %28 = vector.broadcast %9 : vector<1x32xf32> to vector<8x32xf32>
    %29 = arith.addf %27, %28 : vector<8x32xf32>
    %c0_17 = arith.constant 0 : index
    %c0_18 = arith.constant 0 : index
    %c0_19 = arith.constant 0 : index
    %30 = vector.load %arg6[%c0_17, %c0_18, %c0_19] : memref<2x32x96xf32, #tpu.memory_space<vmem>>, vector<1x32x96xf32>
    %31 = vector.shape_cast %30 : vector<1x32x96xf32> to vector<32x96xf32>
    %cst_20 = arith.constant dense<0.000000e+00> : vector<8x96xf32>
    %32 = tpu.matmul %29, %31, %cst_20 {dimension_numbers = #tpu.dot_dimension_numbers<[1], [0], [0], [1], [0, 0, 1, 1], [], []>} : vector<8x32xf32>, vector<32x96xf32>, vector<8x96xf32> -> vector<8x96xf32>
    %c0_21 = arith.constant 0 : index
    %c0_22 = arith.constant 0 : index
    %c0_23 = arith.constant 0 : index
    %33 = vector.load %arg7[%c0_21, %c0_22, %c0_23] : memref<2x32x32xf32, #tpu.memory_space<vmem>>, vector<1x32x32xf32>
    %34 = vector.shape_cast %33 : vector<1x32x32xf32> to vector<32x32xf32>
    %cst_24 = arith.constant 0.000000e+00 : f32
    %35 = vector.broadcast %cst_24 : f32 to vector<8x32xf32>
    %36 = vector.extract_strided_slice %32 {offsets = [0, 0], sizes = [8, 8], strides = [1, 1]} : vector<8x96xf32> to vector<8x8xf32>
    %cst_25 = arith.constant 0.353553385 : f32
    %37 = vector.broadcast %cst_25 : f32 to vector<8x8xf32>
    %38 = arith.mulf %36, %37 : vector<8x8xf32>
    %39 = vector.extract_strided_slice %32 {offsets = [0, 32], sizes = [8, 8], strides = [1, 1]} : vector<8x96xf32> to vector<8x8xf32>
    %40 = vector.extract_strided_slice %32 {offsets = [0, 64], sizes = [8, 8], strides = [1, 1]} : vector<8x96xf32> to vector<8x8xf32>
    %41 = tpu.transpose %39, [1, 0] : vector<8x8xf32> -> vector<8x8xf32>
    %cst_26 = arith.constant dense<0.000000e+00> : vector<8x8xf32>
    %42 = tpu.matmul %38, %41, %cst_26 {dimension_numbers = #tpu.dot_dimension_numbers<[1], [0], [0], [1], [0, 0, 1, 1], [], []>} : vector<8x8xf32>, vector<8x8xf32>, vector<8x8xf32> -> vector<8x8xf32>
    %cst_27 = arith.constant dense<0xFF800000> : vector<8xf32>
    %43 = vector.multi_reduction <maximumf>, %42, %cst_27 [1] : vector<8x8xf32> to vector<8xf32>
    %44 = vector.shape_cast %43 : vector<8xf32> to vector<8x1xf32>
    %45 = vector.broadcast %44 : vector<8x1xf32> to vector<8x8xf32>
    %46 = arith.subf %42, %45 : vector<8x8xf32>
    %47 = math.exp %46 : vector<8x8xf32>
    %cst_28 = arith.constant dense<0.000000e+00> : vector<8xf32>
    %48 = vector.multi_reduction <add>, %47, %cst_28 [1] : vector<8x8xf32> to vector<8xf32>
    %49 = vector.shape_cast %48 : vector<8xf32> to vector<8x1xf32>
    %50 = tpu.reciprocal %49 {approx = true} : vector<8x1xf32> -> vector<8x1xf32>
    %51 = vector.broadcast %50 : vector<8x1xf32> to vector<8x8xf32>
    %52 = arith.mulf %47, %51 : vector<8x8xf32>
    %cst_29 = arith.constant dense<0.000000e+00> : vector<8x8xf32>
    %53 = tpu.matmul %52, %40, %cst_29 {dimension_numbers = #tpu.dot_dimension_numbers<[1], [0], [0], [1], [0, 0, 1, 1], [], []>} : vector<8x8xf32>, vector<8x8xf32>, vector<8x8xf32> -> vector<8x8xf32>
    %54 = vector.extract_strided_slice %34 {offsets = [0, 0], sizes = [8, 32], strides = [1, 1]} : vector<32x32xf32> to vector<8x32xf32>
    %cst_30 = arith.constant dense<0.000000e+00> : vector<8x32xf32>
    %55 = tpu.matmul %53, %54, %cst_30 {dimension_numbers = #tpu.dot_dimension_numbers<[1], [0], [0], [1], [0, 0, 1, 1], [], []>} : vector<8x8xf32>, vector<8x32xf32>, vector<8x32xf32> -> vector<8x32xf32>
    %56 = arith.addf %35, %55 : vector<8x32xf32>
    %57 = vector.extract_strided_slice %32 {offsets = [0, 8], sizes = [8, 8], strides = [1, 1]} : vector<8x96xf32> to vector<8x8xf32>
    %cst_31 = arith.constant 0.353553385 : f32
    %58 = vector.broadcast %cst_31 : f32 to vector<8x8xf32>
    %59 = arith.mulf %57, %58 : vector<8x8xf32>
    %60 = vector.extract_strided_slice %32 {offsets = [0, 40], sizes = [8, 8], strides = [1, 1]} : vector<8x96xf32> to vector<8x8xf32>
    %61 = vector.extract_strided_slice %32 {offsets = [0, 72], sizes = [8, 8], strides = [1, 1]} : vector<8x96xf32> to vector<8x8xf32>
    %62 = tpu.transpose %60, [1, 0] : vector<8x8xf32> -> vector<8x8xf32>
    %cst_32 = arith.constant dense<0.000000e+00> : vector<8x8xf32>
    %63 = tpu.matmul %59, %62, %cst_32 {dimension_numbers = #tpu.dot_dimension_numbers<[1], [0], [0], [1], [0, 0, 1, 1], [], []>} : vector<8x8xf32>, vector<8x8xf32>, vector<8x8xf32> -> vector<8x8xf32>
    %cst_33 = arith.constant dense<0xFF800000> : vector<8xf32>
    %64 = vector.multi_reduction <maximumf>, %63, %cst_33 [1] : vector<8x8xf32> to vector<8xf32>
    %65 = vector.shape_cast %64 : vector<8xf32> to vector<8x1xf32>
    %66 = vector.broadcast %65 : vector<8x1xf32> to vector<8x8xf32>
    %67 = arith.subf %63, %66 : vector<8x8xf32>
    %68 = math.exp %67 : vector<8x8xf32>
    %cst_34 = arith.constant dense<0.000000e+00> : vector<8xf32>
    %69 = vector.multi_reduction <add>, %68, %cst_34 [1] : vector<8x8xf32> to vector<8xf32>
    %70 = vector.shape_cast %69 : vector<8xf32> to vector<8x1xf32>
    %71 = tpu.reciprocal %70 {approx = true} : vector<8x1xf32> -> vector<8x1xf32>
    %72 = vector.broadcast %71 : vector<8x1xf32> to vector<8x8xf32>
    %73 = arith.mulf %68, %72 : vector<8x8xf32>
    %cst_35 = arith.constant dense<0.000000e+00> : vector<8x8xf32>
    %74 = tpu.matmul %73, %61, %cst_35 {dimension_numbers = #tpu.dot_dimension_numbers<[1], [0], [0], [1], [0, 0, 1, 1], [], []>} : vector<8x8xf32>, vector<8x8xf32>, vector<8x8xf32> -> vector<8x8xf32>
    %75 = vector.extract_strided_slice %34 {offsets = [8, 0], sizes = [8, 32], strides = [1, 1]} : vector<32x32xf32> to vector<8x32xf32>
    %cst_36 = arith.constant dense<0.000000e+00> : vector<8x32xf32>
    %76 = tpu.matmul %74, %75, %cst_36 {dimension_numbers = #tpu.dot_dimension_numbers<[1], [0], [0], [1], [0, 0, 1, 1], [], []>} : vector<8x8xf32>, vector<8x32xf32>, vector<8x32xf32> -> vector<8x32xf32>
    %77 = arith.addf %56, %76 : vector<8x32xf32>
    %78 = vector.extract_strided_slice %32 {offsets = [0, 16], sizes = [8, 8], strides = [1, 1]} : vector<8x96xf32> to vector<8x8xf32>
    %cst_37 = arith.constant 0.353553385 : f32
    %79 = vector.broadcast %cst_37 : f32 to vector<8x8xf32>
    %80 = arith.mulf %78, %79 : vector<8x8xf32>
    %81 = vector.extract_strided_slice %32 {offsets = [0, 48], sizes = [8, 8], strides = [1, 1]} : vector<8x96xf32> to vector<8x8xf32>
    %82 = vector.extract_strided_slice %32 {offsets = [0, 80], sizes = [8, 8], strides = [1, 1]} : vector<8x96xf32> to vector<8x8xf32>
    %83 = tpu.transpose %81, [1, 0] : vector<8x8xf32> -> vector<8x8xf32>
    %cst_38 = arith.constant dense<0.000000e+00> : vector<8x8xf32>
    %84 = tpu.matmul %80, %83, %cst_38 {dimension_numbers = #tpu.dot_dimension_numbers<[1], [0], [0], [1], [0, 0, 1, 1], [], []>} : vector<8x8xf32>, vector<8x8xf32>, vector<8x8xf32> -> vector<8x8xf32>
    %cst_39 = arith.constant dense<0xFF800000> : vector<8xf32>
    %85 = vector.multi_reduction <maximumf>, %84, %cst_39 [1] : vector<8x8xf32> to vector<8xf32>
    %86 = vector.shape_cast %85 : vector<8xf32> to vector<8x1xf32>
    %87 = vector.broadcast %86 : vector<8x1xf32> to vector<8x8xf32>
    %88 = arith.subf %84, %87 : vector<8x8xf32>
    %89 = math.exp %88 : vector<8x8xf32>
    %cst_40 = arith.constant dense<0.000000e+00> : vector<8xf32>
    %90 = vector.multi_reduction <add>, %89, %cst_40 [1] : vector<8x8xf32> to vector<8xf32>
    %91 = vector.shape_cast %90 : vector<8xf32> to vector<8x1xf32>
    %92 = tpu.reciprocal %91 {approx = true} : vector<8x1xf32> -> vector<8x1xf32>
    %93 = vector.broadcast %92 : vector<8x1xf32> to vector<8x8xf32>
    %94 = arith.mulf %89, %93 : vector<8x8xf32>
    %cst_41 = arith.constant dense<0.000000e+00> : vector<8x8xf32>
    %95 = tpu.matmul %94, %82, %cst_41 {dimension_numbers = #tpu.dot_dimension_numbers<[1], [0], [0], [1], [0, 0, 1, 1], [], []>} : vector<8x8xf32>, vector<8x8xf32>, vector<8x8xf32> -> vector<8x8xf32>
    %96 = vector.extract_strided_slice %34 {offsets = [16, 0], sizes = [8, 32], strides = [1, 1]} : vector<32x32xf32> to vector<8x32xf32>
    %cst_42 = arith.constant dense<0.000000e+00> : vector<8x32xf32>
    %97 = tpu.matmul %95, %96, %cst_42 {dimension_numbers = #tpu.dot_dimension_numbers<[1], [0], [0], [1], [0, 0, 1, 1], [], []>} : vector<8x8xf32>, vector<8x32xf32>, vector<8x32xf32> -> vector<8x32xf32>
    %98 = arith.addf %77, %97 : vector<8x32xf32>
    %99 = vector.extract_strided_slice %32 {offsets = [0, 24], sizes = [8, 8], strides = [1, 1]} : vector<8x96xf32> to vector<8x8xf32>
    %cst_43 = arith.constant 0.353553385 : f32
    %100 = vector.broadcast %cst_43 : f32 to vector<8x8xf32>
    %101 = arith.mulf %99, %100 : vector<8x8xf32>
    %102 = vector.extract_strided_slice %32 {offsets = [0, 56], sizes = [8, 8], strides = [1, 1]} : vector<8x96xf32> to vector<8x8xf32>
    %103 = vector.extract_strided_slice %32 {offsets = [0, 88], sizes = [8, 8], strides = [1, 1]} : vector<8x96xf32> to vector<8x8xf32>
    %104 = tpu.transpose %102, [1, 0] : vector<8x8xf32> -> vector<8x8xf32>
    %cst_44 = arith.constant dense<0.000000e+00> : vector<8x8xf32>
    %105 = tpu.matmul %101, %104, %cst_44 {dimension_numbers = #tpu.dot_dimension_numbers<[1], [0], [0], [1], [0, 0, 1, 1], [], []>} : vector<8x8xf32>, vector<8x8xf32>, vector<8x8xf32> -> vector<8x8xf32>
    %cst_45 = arith.constant dense<0xFF800000> : vector<8xf32>
    %106 = vector.multi_reduction <maximumf>, %105, %cst_45 [1] : vector<8x8xf32> to vector<8xf32>
    %107 = vector.shape_cast %106 : vector<8xf32> to vector<8x1xf32>
    %108 = vector.broadcast %107 : vector<8x1xf32> to vector<8x8xf32>
    %109 = arith.subf %105, %108 : vector<8x8xf32>
    %110 = math.exp %109 : vector<8x8xf32>
    %cst_46 = arith.constant dense<0.000000e+00> : vector<8xf32>
    %111 = vector.multi_reduction <add>, %110, %cst_46 [1] : vector<8x8xf32> to vector<8xf32>
    %112 = vector.shape_cast %111 : vector<8xf32> to vector<8x1xf32>
    %113 = tpu.reciprocal %112 {approx = true} : vector<8x1xf32> -> vector<8x1xf32>
    %114 = vector.broadcast %113 : vector<8x1xf32> to vector<8x8xf32>
    %115 = arith.mulf %110, %114 : vector<8x8xf32>
    %cst_47 = arith.constant dense<0.000000e+00> : vector<8x8xf32>
    %116 = tpu.matmul %115, %103, %cst_47 {dimension_numbers = #tpu.dot_dimension_numbers<[1], [0], [0], [1], [0, 0, 1, 1], [], []>} : vector<8x8xf32>, vector<8x8xf32>, vector<8x8xf32> -> vector<8x8xf32>
    %117 = vector.extract_strided_slice %34 {offsets = [24, 0], sizes = [8, 32], strides = [1, 1]} : vector<32x32xf32> to vector<8x32xf32>
    %cst_48 = arith.constant dense<0.000000e+00> : vector<8x32xf32>
    %118 = tpu.matmul %116, %117, %cst_48 {dimension_numbers = #tpu.dot_dimension_numbers<[1], [0], [0], [1], [0, 0, 1, 1], [], []>} : vector<8x8xf32>, vector<8x32xf32>, vector<8x32xf32> -> vector<8x32xf32>
    %119 = arith.addf %98, %118 : vector<8x32xf32>
    %120 = arith.addf %5, %119 : vector<8x32xf32>
    %c0_49 = arith.constant 0 : index
    %c0_50 = arith.constant 0 : index
    %c0_51 = arith.constant 0 : index
    %121 = vector.load %arg8[%c0_49, %c0_50, %c0_51] : memref<2x1x32xf32, #tpu.memory_space<vmem>>, vector<1x1x32xf32>
    %122 = vector.shape_cast %121 : vector<1x1x32xf32> to vector<1x32xf32>
    %123 = vector.broadcast %122 : vector<1x32xf32> to vector<8x32xf32>
    %124 = arith.addf %120, %123 : vector<8x32xf32>
    %c0_52 = arith.constant 0 : index
    %c0_53 = arith.constant 0 : index
    %c0_54 = arith.constant 0 : index
    %125 = vector.load %arg9[%c0_52, %c0_53, %c0_54] : memref<2x1x32xf32, #tpu.memory_space<vmem>>, vector<1x1x32xf32>
    %126 = vector.shape_cast %125 : vector<1x1x32xf32> to vector<1x32xf32>
    %c0_55 = arith.constant 0 : index
    %c0_56 = arith.constant 0 : index
    %c0_57 = arith.constant 0 : index
    %127 = vector.load %arg10[%c0_55, %c0_56, %c0_57] : memref<2x1x32xf32, #tpu.memory_space<vmem>>, vector<1x1x32xf32>
    %128 = vector.shape_cast %127 : vector<1x1x32xf32> to vector<1x32xf32>
    %cst_58 = arith.constant dense<0.000000e+00> : vector<8xf32>
    %129 = vector.multi_reduction <add>, %124, %cst_58 [1] : vector<8x32xf32> to vector<8xf32>
    %130 = vector.shape_cast %129 : vector<8xf32> to vector<8x1xf32>
    %cst_59 = arith.constant 3.200000e+01 : f32
    %131 = vector.broadcast %cst_59 : f32 to vector<8x1xf32>
    %132 = arith.divf %130, %131 : vector<8x1xf32>
    %133 = vector.broadcast %132 : vector<8x1xf32> to vector<8x32xf32>
    %134 = arith.subf %124, %133 : vector<8x32xf32>
    %135 = arith.mulf %134, %134 : vector<8x32xf32>
    %cst_60 = arith.constant dense<0.000000e+00> : vector<8xf32>
    %136 = vector.multi_reduction <add>, %135, %cst_60 [1] : vector<8x32xf32> to vector<8xf32>
    %137 = vector.shape_cast %136 : vector<8xf32> to vector<8x1xf32>
    %cst_61 = arith.constant 3.200000e+01 : f32
    %138 = vector.broadcast %cst_61 : f32 to vector<8x1xf32>
    %139 = arith.divf %137, %138 : vector<8x1xf32>
    %cst_62 = arith.constant 9.99999974E-6 : f32
    %140 = vector.broadcast %cst_62 : f32 to vector<8x1xf32>
    %141 = arith.addf %139, %140 : vector<8x1xf32>
    %142 = math.rsqrt %141 : vector<8x1xf32>
    %143 = vector.broadcast %142 : vector<8x1xf32> to vector<8x32xf32>
    %144 = arith.mulf %134, %143 : vector<8x32xf32>
    %145 = vector.broadcast %126 : vector<1x32xf32> to vector<8x32xf32>
    %146 = arith.mulf %144, %145 : vector<8x32xf32>
    %147 = vector.broadcast %128 : vector<1x32xf32> to vector<8x32xf32>
    %148 = arith.addf %146, %147 : vector<8x32xf32>
    %c0_63 = arith.constant 0 : index
    %c0_64 = arith.constant 0 : index
    %c0_65 = arith.constant 0 : index
    %149 = vector.load %arg11[%c0_63, %c0_64, %c0_65] : memref<2x32x128xf32, #tpu.memory_space<vmem>>, vector<1x32x128xf32>
    %150 = vector.shape_cast %149 : vector<1x32x128xf32> to vector<32x128xf32>
    %cst_66 = arith.constant dense<0.000000e+00> : vector<8x128xf32>
    %151 = tpu.matmul %148, %150, %cst_66 {dimension_numbers = #tpu.dot_dimension_numbers<[1], [0], [0], [1], [0, 0, 1, 1], [], []>} : vector<8x32xf32>, vector<32x128xf32>, vector<8x128xf32> -> vector<8x128xf32>
    %c0_67 = arith.constant 0 : index
    %c0_68 = arith.constant 0 : index
    %c0_69 = arith.constant 0 : index
    %152 = vector.load %arg12[%c0_67, %c0_68, %c0_69] : memref<2x1x128xf32, #tpu.memory_space<vmem>>, vector<1x1x128xf32>
    %153 = vector.shape_cast %152 : vector<1x1x128xf32> to vector<1x128xf32>
    %154 = vector.broadcast %153 : vector<1x128xf32> to vector<8x128xf32>
    %155 = arith.addf %151, %154 : vector<8x128xf32>
    %cst_70 = arith.constant 5.000000e-01 : f32
    %156 = vector.broadcast %cst_70 : f32 to vector<8x128xf32>
    %157 = arith.mulf %156, %155 : vector<8x128xf32>
    %cst_71 = arith.constant 0.707106769 : f32
    %158 = vector.broadcast %cst_71 : f32 to vector<8x128xf32>
    %159 = arith.mulf %155, %158 : vector<8x128xf32>
    %160 = math.erf %159 : vector<8x128xf32>
    %cst_72 = arith.constant 1.000000e+00 : f32
    %161 = vector.broadcast %cst_72 : f32 to vector<8x128xf32>
    %162 = arith.addf %161, %160 : vector<8x128xf32>
    %163 = arith.mulf %157, %162 : vector<8x128xf32>
    %c0_73 = arith.constant 0 : index
    %c0_74 = arith.constant 0 : index
    %c0_75 = arith.constant 0 : index
    %164 = vector.load %arg13[%c0_73, %c0_74, %c0_75] : memref<2x128x32xf32, #tpu.memory_space<vmem>>, vector<1x128x32xf32>
    %165 = vector.shape_cast %164 : vector<1x128x32xf32> to vector<128x32xf32>
    %cst_76 = arith.constant dense<0.000000e+00> : vector<8x32xf32>
    %166 = tpu.matmul %163, %165, %cst_76 {dimension_numbers = #tpu.dot_dimension_numbers<[1], [0], [0], [1], [0, 0, 1, 1], [], []>} : vector<8x128xf32>, vector<128x32xf32>, vector<8x32xf32> -> vector<8x32xf32>
    %167 = arith.addf %124, %166 : vector<8x32xf32>
    %c0_77 = arith.constant 0 : index
    %c0_78 = arith.constant 0 : index
    %c0_79 = arith.constant 0 : index
    %168 = vector.load %arg14[%c0_77, %c0_78, %c0_79] : memref<2x1x32xf32, #tpu.memory_space<vmem>>, vector<1x1x32xf32>
    %169 = vector.shape_cast %168 : vector<1x1x32xf32> to vector<1x32xf32>
    %170 = vector.broadcast %169 : vector<1x32xf32> to vector<8x32xf32>
    %171 = arith.addf %167, %170 : vector<8x32xf32>
    %c1 = arith.constant 1 : index
    %c0_80 = arith.constant 0 : index
    %c0_81 = arith.constant 0 : index
    %172 = vector.load %arg4[%c1, %c0_80, %c0_81] : memref<2x1x32xf32, #tpu.memory_space<vmem>>, vector<1x1x32xf32>
    %173 = vector.shape_cast %172 : vector<1x1x32xf32> to vector<1x32xf32>
    %c1_82 = arith.constant 1 : index
    %c0_83 = arith.constant 0 : index
    %c0_84 = arith.constant 0 : index
    %174 = vector.load %arg5[%c1_82, %c0_83, %c0_84] : memref<2x1x32xf32, #tpu.memory_space<vmem>>, vector<1x1x32xf32>
    %175 = vector.shape_cast %174 : vector<1x1x32xf32> to vector<1x32xf32>
    %cst_85 = arith.constant dense<0.000000e+00> : vector<8xf32>
    %176 = vector.multi_reduction <add>, %171, %cst_85 [1] : vector<8x32xf32> to vector<8xf32>
    %177 = vector.shape_cast %176 : vector<8xf32> to vector<8x1xf32>
    %cst_86 = arith.constant 3.200000e+01 : f32
    %178 = vector.broadcast %cst_86 : f32 to vector<8x1xf32>
    %179 = arith.divf %177, %178 : vector<8x1xf32>
    %180 = vector.broadcast %179 : vector<8x1xf32> to vector<8x32xf32>
    %181 = arith.subf %171, %180 : vector<8x32xf32>
    %182 = arith.mulf %181, %181 : vector<8x32xf32>
    %cst_87 = arith.constant dense<0.000000e+00> : vector<8xf32>
    %183 = vector.multi_reduction <add>, %182, %cst_87 [1] : vector<8x32xf32> to vector<8xf32>
    %184 = vector.shape_cast %183 : vector<8xf32> to vector<8x1xf32>
    %cst_88 = arith.constant 3.200000e+01 : f32
    %185 = vector.broadcast %cst_88 : f32 to vector<8x1xf32>
    %186 = arith.divf %184, %185 : vector<8x1xf32>
    %cst_89 = arith.constant 9.99999974E-6 : f32
    %187 = vector.broadcast %cst_89 : f32 to vector<8x1xf32>
    %188 = arith.addf %186, %187 : vector<8x1xf32>
    %189 = math.rsqrt %188 : vector<8x1xf32>
    %190 = vector.broadcast %189 : vector<8x1xf32> to vector<8x32xf32>
    %191 = arith.mulf %181, %190 : vector<8x32xf32>
    %192 = vector.broadcast %173 : vector<1x32xf32> to vector<8x32xf32>
    %193 = arith.mulf %191, %192 : vector<8x32xf32>
    %194 = vector.broadcast %175 : vector<1x32xf32> to vector<8x32xf32>
    %195 = arith.addf %193, %194 : vector<8x32xf32>
    %c1_90 = arith.constant 1 : index
    %c0_91 = arith.constant 0 : index
    %c0_92 = arith.constant 0 : index
    %196 = vector.load %arg6[%c1_90, %c0_91, %c0_92] : memref<2x32x96xf32, #tpu.memory_space<vmem>>, vector<1x32x96xf32>
    %197 = vector.shape_cast %196 : vector<1x32x96xf32> to vector<32x96xf32>
    %cst_93 = arith.constant dense<0.000000e+00> : vector<8x96xf32>
    %198 = tpu.matmul %195, %197, %cst_93 {dimension_numbers = #tpu.dot_dimension_numbers<[1], [0], [0], [1], [0, 0, 1, 1], [], []>} : vector<8x32xf32>, vector<32x96xf32>, vector<8x96xf32> -> vector<8x96xf32>
    %c1_94 = arith.constant 1 : index
    %c0_95 = arith.constant 0 : index
    %c0_96 = arith.constant 0 : index
    %199 = vector.load %arg7[%c1_94, %c0_95, %c0_96] : memref<2x32x32xf32, #tpu.memory_space<vmem>>, vector<1x32x32xf32>
    %200 = vector.shape_cast %199 : vector<1x32x32xf32> to vector<32x32xf32>
    %cst_97 = arith.constant 0.000000e+00 : f32
    %201 = vector.broadcast %cst_97 : f32 to vector<8x32xf32>
    %202 = vector.extract_strided_slice %198 {offsets = [0, 0], sizes = [8, 8], strides = [1, 1]} : vector<8x96xf32> to vector<8x8xf32>
    %cst_98 = arith.constant 0.353553385 : f32
    %203 = vector.broadcast %cst_98 : f32 to vector<8x8xf32>
    %204 = arith.mulf %202, %203 : vector<8x8xf32>
    %205 = vector.extract_strided_slice %198 {offsets = [0, 32], sizes = [8, 8], strides = [1, 1]} : vector<8x96xf32> to vector<8x8xf32>
    %206 = vector.extract_strided_slice %198 {offsets = [0, 64], sizes = [8, 8], strides = [1, 1]} : vector<8x96xf32> to vector<8x8xf32>
    %207 = tpu.transpose %205, [1, 0] : vector<8x8xf32> -> vector<8x8xf32>
    %cst_99 = arith.constant dense<0.000000e+00> : vector<8x8xf32>
    %208 = tpu.matmul %204, %207, %cst_99 {dimension_numbers = #tpu.dot_dimension_numbers<[1], [0], [0], [1], [0, 0, 1, 1], [], []>} : vector<8x8xf32>, vector<8x8xf32>, vector<8x8xf32> -> vector<8x8xf32>
    %cst_100 = arith.constant dense<0xFF800000> : vector<8xf32>
    %209 = vector.multi_reduction <maximumf>, %208, %cst_100 [1] : vector<8x8xf32> to vector<8xf32>
    %210 = vector.shape_cast %209 : vector<8xf32> to vector<8x1xf32>
    %211 = vector.broadcast %210 : vector<8x1xf32> to vector<8x8xf32>
    %212 = arith.subf %208, %211 : vector<8x8xf32>
    %213 = math.exp %212 : vector<8x8xf32>
    %cst_101 = arith.constant dense<0.000000e+00> : vector<8xf32>
    %214 = vector.multi_reduction <add>, %213, %cst_101 [1] : vector<8x8xf32> to vector<8xf32>
    %215 = vector.shape_cast %214 : vector<8xf32> to vector<8x1xf32>
    %216 = tpu.reciprocal %215 {approx = true} : vector<8x1xf32> -> vector<8x1xf32>
    %217 = vector.broadcast %216 : vector<8x1xf32> to vector<8x8xf32>
    %218 = arith.mulf %213, %217 : vector<8x8xf32>
    %cst_102 = arith.constant dense<0.000000e+00> : vector<8x8xf32>
    %219 = tpu.matmul %218, %206, %cst_102 {dimension_numbers = #tpu.dot_dimension_numbers<[1], [0], [0], [1], [0, 0, 1, 1], [], []>} : vector<8x8xf32>, vector<8x8xf32>, vector<8x8xf32> -> vector<8x8xf32>
    %220 = vector.extract_strided_slice %200 {offsets = [0, 0], sizes = [8, 32], strides = [1, 1]} : vector<32x32xf32> to vector<8x32xf32>
    %cst_103 = arith.constant dense<0.000000e+00> : vector<8x32xf32>
    %221 = tpu.matmul %219, %220, %cst_103 {dimension_numbers = #tpu.dot_dimension_numbers<[1], [0], [0], [1], [0, 0, 1, 1], [], []>} : vector<8x8xf32>, vector<8x32xf32>, vector<8x32xf32> -> vector<8x32xf32>
    %222 = arith.addf %201, %221 : vector<8x32xf32>
    %223 = vector.extract_strided_slice %198 {offsets = [0, 8], sizes = [8, 8], strides = [1, 1]} : vector<8x96xf32> to vector<8x8xf32>
    %cst_104 = arith.constant 0.353553385 : f32
    %224 = vector.broadcast %cst_104 : f32 to vector<8x8xf32>
    %225 = arith.mulf %223, %224 : vector<8x8xf32>
    %226 = vector.extract_strided_slice %198 {offsets = [0, 40], sizes = [8, 8], strides = [1, 1]} : vector<8x96xf32> to vector<8x8xf32>
    %227 = vector.extract_strided_slice %198 {offsets = [0, 72], sizes = [8, 8], strides = [1, 1]} : vector<8x96xf32> to vector<8x8xf32>
    %228 = tpu.transpose %226, [1, 0] : vector<8x8xf32> -> vector<8x8xf32>
    %cst_105 = arith.constant dense<0.000000e+00> : vector<8x8xf32>
    %229 = tpu.matmul %225, %228, %cst_105 {dimension_numbers = #tpu.dot_dimension_numbers<[1], [0], [0], [1], [0, 0, 1, 1], [], []>} : vector<8x8xf32>, vector<8x8xf32>, vector<8x8xf32> -> vector<8x8xf32>
    %cst_106 = arith.constant dense<0xFF800000> : vector<8xf32>
    %230 = vector.multi_reduction <maximumf>, %229, %cst_106 [1] : vector<8x8xf32> to vector<8xf32>
    %231 = vector.shape_cast %230 : vector<8xf32> to vector<8x1xf32>
    %232 = vector.broadcast %231 : vector<8x1xf32> to vector<8x8xf32>
    %233 = arith.subf %229, %232 : vector<8x8xf32>
    %234 = math.exp %233 : vector<8x8xf32>
    %cst_107 = arith.constant dense<0.000000e+00> : vector<8xf32>
    %235 = vector.multi_reduction <add>, %234, %cst_107 [1] : vector<8x8xf32> to vector<8xf32>
    %236 = vector.shape_cast %235 : vector<8xf32> to vector<8x1xf32>
    %237 = tpu.reciprocal %236 {approx = true} : vector<8x1xf32> -> vector<8x1xf32>
    %238 = vector.broadcast %237 : vector<8x1xf32> to vector<8x8xf32>
    %239 = arith.mulf %234, %238 : vector<8x8xf32>
    %cst_108 = arith.constant dense<0.000000e+00> : vector<8x8xf32>
    %240 = tpu.matmul %239, %227, %cst_108 {dimension_numbers = #tpu.dot_dimension_numbers<[1], [0], [0], [1], [0, 0, 1, 1], [], []>} : vector<8x8xf32>, vector<8x8xf32>, vector<8x8xf32> -> vector<8x8xf32>
    %241 = vector.extract_strided_slice %200 {offsets = [8, 0], sizes = [8, 32], strides = [1, 1]} : vector<32x32xf32> to vector<8x32xf32>
    %cst_109 = arith.constant dense<0.000000e+00> : vector<8x32xf32>
    %242 = tpu.matmul %240, %241, %cst_109 {dimension_numbers = #tpu.dot_dimension_numbers<[1], [0], [0], [1], [0, 0, 1, 1], [], []>} : vector<8x8xf32>, vector<8x32xf32>, vector<8x32xf32> -> vector<8x32xf32>
    %243 = arith.addf %222, %242 : vector<8x32xf32>
    %244 = vector.extract_strided_slice %198 {offsets = [0, 16], sizes = [8, 8], strides = [1, 1]} : vector<8x96xf32> to vector<8x8xf32>
    %cst_110 = arith.constant 0.353553385 : f32
    %245 = vector.broadcast %cst_110 : f32 to vector<8x8xf32>
    %246 = arith.mulf %244, %245 : vector<8x8xf32>
    %247 = vector.extract_strided_slice %198 {offsets = [0, 48], sizes = [8, 8], strides = [1, 1]} : vector<8x96xf32> to vector<8x8xf32>
    %248 = vector.extract_strided_slice %198 {offsets = [0, 80], sizes = [8, 8], strides = [1, 1]} : vector<8x96xf32> to vector<8x8xf32>
    %249 = tpu.transpose %247, [1, 0] : vector<8x8xf32> -> vector<8x8xf32>
    %cst_111 = arith.constant dense<0.000000e+00> : vector<8x8xf32>
    %250 = tpu.matmul %246, %249, %cst_111 {dimension_numbers = #tpu.dot_dimension_numbers<[1], [0], [0], [1], [0, 0, 1, 1], [], []>} : vector<8x8xf32>, vector<8x8xf32>, vector<8x8xf32> -> vector<8x8xf32>
    %cst_112 = arith.constant dense<0xFF800000> : vector<8xf32>
    %251 = vector.multi_reduction <maximumf>, %250, %cst_112 [1] : vector<8x8xf32> to vector<8xf32>
    %252 = vector.shape_cast %251 : vector<8xf32> to vector<8x1xf32>
    %253 = vector.broadcast %252 : vector<8x1xf32> to vector<8x8xf32>
    %254 = arith.subf %250, %253 : vector<8x8xf32>
    %255 = math.exp %254 : vector<8x8xf32>
    %cst_113 = arith.constant dense<0.000000e+00> : vector<8xf32>
    %256 = vector.multi_reduction <add>, %255, %cst_113 [1] : vector<8x8xf32> to vector<8xf32>
    %257 = vector.shape_cast %256 : vector<8xf32> to vector<8x1xf32>
    %258 = tpu.reciprocal %257 {approx = true} : vector<8x1xf32> -> vector<8x1xf32>
    %259 = vector.broadcast %258 : vector<8x1xf32> to vector<8x8xf32>
    %260 = arith.mulf %255, %259 : vector<8x8xf32>
    %cst_114 = arith.constant dense<0.000000e+00> : vector<8x8xf32>
    %261 = tpu.matmul %260, %248, %cst_114 {dimension_numbers = #tpu.dot_dimension_numbers<[1], [0], [0], [1], [0, 0, 1, 1], [], []>} : vector<8x8xf32>, vector<8x8xf32>, vector<8x8xf32> -> vector<8x8xf32>
    %262 = vector.extract_strided_slice %200 {offsets = [16, 0], sizes = [8, 32], strides = [1, 1]} : vector<32x32xf32> to vector<8x32xf32>
    %cst_115 = arith.constant dense<0.000000e+00> : vector<8x32xf32>
    %263 = tpu.matmul %261, %262, %cst_115 {dimension_numbers = #tpu.dot_dimension_numbers<[1], [0], [0], [1], [0, 0, 1, 1], [], []>} : vector<8x8xf32>, vector<8x32xf32>, vector<8x32xf32> -> vector<8x32xf32>
    %264 = arith.addf %243, %263 : vector<8x32xf32>
    %265 = vector.extract_strided_slice %198 {offsets = [0, 24], sizes = [8, 8], strides = [1, 1]} : vector<8x96xf32> to vector<8x8xf32>
    %cst_116 = arith.constant 0.353553385 : f32
    %266 = vector.broadcast %cst_116 : f32 to vector<8x8xf32>
    %267 = arith.mulf %265, %266 : vector<8x8xf32>
    %268 = vector.extract_strided_slice %198 {offsets = [0, 56], sizes = [8, 8], strides = [1, 1]} : vector<8x96xf32> to vector<8x8xf32>
    %269 = vector.extract_strided_slice %198 {offsets = [0, 88], sizes = [8, 8], strides = [1, 1]} : vector<8x96xf32> to vector<8x8xf32>
    %270 = tpu.transpose %268, [1, 0] : vector<8x8xf32> -> vector<8x8xf32>
    %cst_117 = arith.constant dense<0.000000e+00> : vector<8x8xf32>
    %271 = tpu.matmul %267, %270, %cst_117 {dimension_numbers = #tpu.dot_dimension_numbers<[1], [0], [0], [1], [0, 0, 1, 1], [], []>} : vector<8x8xf32>, vector<8x8xf32>, vector<8x8xf32> -> vector<8x8xf32>
    %cst_118 = arith.constant dense<0xFF800000> : vector<8xf32>
    %272 = vector.multi_reduction <maximumf>, %271, %cst_118 [1] : vector<8x8xf32> to vector<8xf32>
    %273 = vector.shape_cast %272 : vector<8xf32> to vector<8x1xf32>
    %274 = vector.broadcast %273 : vector<8x1xf32> to vector<8x8xf32>
    %275 = arith.subf %271, %274 : vector<8x8xf32>
    %276 = math.exp %275 : vector<8x8xf32>
    %cst_119 = arith.constant dense<0.000000e+00> : vector<8xf32>
    %277 = vector.multi_reduction <add>, %276, %cst_119 [1] : vector<8x8xf32> to vector<8xf32>
    %278 = vector.shape_cast %277 : vector<8xf32> to vector<8x1xf32>
    %279 = tpu.reciprocal %278 {approx = true} : vector<8x1xf32> -> vector<8x1xf32>
    %280 = vector.broadcast %279 : vector<8x1xf32> to vector<8x8xf32>
    %281 = arith.mulf %276, %280 : vector<8x8xf32>
    %cst_120 = arith.constant dense<0.000000e+00> : vector<8x8xf32>
    %282 = tpu.matmul %281, %269, %cst_120 {dimension_numbers = #tpu.dot_dimension_numbers<[1], [0], [0], [1], [0, 0, 1, 1], [], []>} : vector<8x8xf32>, vector<8x8xf32>, vector<8x8xf32> -> vector<8x8xf32>
    %283 = vector.extract_strided_slice %200 {offsets = [24, 0], sizes = [8, 32], strides = [1, 1]} : vector<32x32xf32> to vector<8x32xf32>
    %cst_121 = arith.constant dense<0.000000e+00> : vector<8x32xf32>
    %284 = tpu.matmul %282, %283, %cst_121 {dimension_numbers = #tpu.dot_dimension_numbers<[1], [0], [0], [1], [0, 0, 1, 1], [], []>} : vector<8x8xf32>, vector<8x32xf32>, vector<8x32xf32> -> vector<8x32xf32>
    %285 = arith.addf %264, %284 : vector<8x32xf32>
    %286 = arith.addf %171, %285 : vector<8x32xf32>
    %c1_122 = arith.constant 1 : index
    %c0_123 = arith.constant 0 : index
    %c0_124 = arith.constant 0 : index
    %287 = vector.load %arg8[%c1_122, %c0_123, %c0_124] : memref<2x1x32xf32, #tpu.memory_space<vmem>>, vector<1x1x32xf32>
    %288 = vector.shape_cast %287 : vector<1x1x32xf32> to vector<1x32xf32>
    %289 = vector.broadcast %288 : vector<1x32xf32> to vector<8x32xf32>
    %290 = arith.addf %286, %289 : vector<8x32xf32>
    %c1_125 = arith.constant 1 : index
    %c0_126 = arith.constant 0 : index
    %c0_127 = arith.constant 0 : index
    %291 = vector.load %arg9[%c1_125, %c0_126, %c0_127] : memref<2x1x32xf32, #tpu.memory_space<vmem>>, vector<1x1x32xf32>
    %292 = vector.shape_cast %291 : vector<1x1x32xf32> to vector<1x32xf32>
    %c1_128 = arith.constant 1 : index
    %c0_129 = arith.constant 0 : index
    %c0_130 = arith.constant 0 : index
    %293 = vector.load %arg10[%c1_128, %c0_129, %c0_130] : memref<2x1x32xf32, #tpu.memory_space<vmem>>, vector<1x1x32xf32>
    %294 = vector.shape_cast %293 : vector<1x1x32xf32> to vector<1x32xf32>
    %cst_131 = arith.constant dense<0.000000e+00> : vector<8xf32>
    %295 = vector.multi_reduction <add>, %290, %cst_131 [1] : vector<8x32xf32> to vector<8xf32>
    %296 = vector.shape_cast %295 : vector<8xf32> to vector<8x1xf32>
    %cst_132 = arith.constant 3.200000e+01 : f32
    %297 = vector.broadcast %cst_132 : f32 to vector<8x1xf32>
    %298 = arith.divf %296, %297 : vector<8x1xf32>
    %299 = vector.broadcast %298 : vector<8x1xf32> to vector<8x32xf32>
    %300 = arith.subf %290, %299 : vector<8x32xf32>
    %301 = arith.mulf %300, %300 : vector<8x32xf32>
    %cst_133 = arith.constant dense<0.000000e+00> : vector<8xf32>
    %302 = vector.multi_reduction <add>, %301, %cst_133 [1] : vector<8x32xf32> to vector<8xf32>
    %303 = vector.shape_cast %302 : vector<8xf32> to vector<8x1xf32>
    %cst_134 = arith.constant 3.200000e+01 : f32
    %304 = vector.broadcast %cst_134 : f32 to vector<8x1xf32>
    %305 = arith.divf %303, %304 : vector<8x1xf32>
    %cst_135 = arith.constant 9.99999974E-6 : f32
    %306 = vector.broadcast %cst_135 : f32 to vector<8x1xf32>
    %307 = arith.addf %305, %306 : vector<8x1xf32>
    %308 = math.rsqrt %307 : vector<8x1xf32>
    %309 = vector.broadcast %308 : vector<8x1xf32> to vector<8x32xf32>
    %310 = arith.mulf %300, %309 : vector<8x32xf32>
    %311 = vector.broadcast %292 : vector<1x32xf32> to vector<8x32xf32>
    %312 = arith.mulf %310, %311 : vector<8x32xf32>
    %313 = vector.broadcast %294 : vector<1x32xf32> to vector<8x32xf32>
    %314 = arith.addf %312, %313 : vector<8x32xf32>
    %c1_136 = arith.constant 1 : index
    %c0_137 = arith.constant 0 : index
    %c0_138 = arith.constant 0 : index
    %315 = vector.load %arg11[%c1_136, %c0_137, %c0_138] : memref<2x32x128xf32, #tpu.memory_space<vmem>>, vector<1x32x128xf32>
    %316 = vector.shape_cast %315 : vector<1x32x128xf32> to vector<32x128xf32>
    %cst_139 = arith.constant dense<0.000000e+00> : vector<8x128xf32>
    %317 = tpu.matmul %314, %316, %cst_139 {dimension_numbers = #tpu.dot_dimension_numbers<[1], [0], [0], [1], [0, 0, 1, 1], [], []>} : vector<8x32xf32>, vector<32x128xf32>, vector<8x128xf32> -> vector<8x128xf32>
    %c1_140 = arith.constant 1 : index
    %c0_141 = arith.constant 0 : index
    %c0_142 = arith.constant 0 : index
    %318 = vector.load %arg12[%c1_140, %c0_141, %c0_142] : memref<2x1x128xf32, #tpu.memory_space<vmem>>, vector<1x1x128xf32>
    %319 = vector.shape_cast %318 : vector<1x1x128xf32> to vector<1x128xf32>
    %320 = vector.broadcast %319 : vector<1x128xf32> to vector<8x128xf32>
    %321 = arith.addf %317, %320 : vector<8x128xf32>
    %cst_143 = arith.constant 5.000000e-01 : f32
    %322 = vector.broadcast %cst_143 : f32 to vector<8x128xf32>
    %323 = arith.mulf %322, %321 : vector<8x128xf32>
    %cst_144 = arith.constant 0.707106769 : f32
    %324 = vector.broadcast %cst_144 : f32 to vector<8x128xf32>
    %325 = arith.mulf %321, %324 : vector<8x128xf32>
    %326 = math.erf %325 : vector<8x128xf32>
    %cst_145 = arith.constant 1.000000e+00 : f32
    %327 = vector.broadcast %cst_145 : f32 to vector<8x128xf32>
    %328 = arith.addf %327, %326 : vector<8x128xf32>
    %329 = arith.mulf %323, %328 : vector<8x128xf32>
    %c1_146 = arith.constant 1 : index
    %c0_147 = arith.constant 0 : index
    %c0_148 = arith.constant 0 : index
    %330 = vector.load %arg13[%c1_146, %c0_147, %c0_148] : memref<2x128x32xf32, #tpu.memory_space<vmem>>, vector<1x128x32xf32>
    %331 = vector.shape_cast %330 : vector<1x128x32xf32> to vector<128x32xf32>
    %cst_149 = arith.constant dense<0.000000e+00> : vector<8x32xf32>
    %332 = tpu.matmul %329, %331, %cst_149 {dimension_numbers = #tpu.dot_dimension_numbers<[1], [0], [0], [1], [0, 0, 1, 1], [], []>} : vector<8x128xf32>, vector<128x32xf32>, vector<8x32xf32> -> vector<8x32xf32>
    %333 = arith.addf %290, %332 : vector<8x32xf32>
    %c1_150 = arith.constant 1 : index
    %c0_151 = arith.constant 0 : index
    %c0_152 = arith.constant 0 : index
    %334 = vector.load %arg14[%c1_150, %c0_151, %c0_152] : memref<2x1x32xf32, #tpu.memory_space<vmem>>, vector<1x1x32xf32>
    %335 = vector.shape_cast %334 : vector<1x1x32xf32> to vector<1x32xf32>
    %336 = vector.broadcast %335 : vector<1x32xf32> to vector<8x32xf32>
    %337 = arith.addf %333, %336 : vector<8x32xf32>
    %c0_153 = arith.constant 0 : index
    %c0_154 = arith.constant 0 : index
    %338 = vector.load %arg15[%c0_153, %c0_154] : memref<1x32xf32, #tpu.memory_space<vmem>>, vector<1x32xf32>
    %c0_155 = arith.constant 0 : index
    %c0_156 = arith.constant 0 : index
    %339 = vector.load %arg16[%c0_155, %c0_156] : memref<1x32xf32, #tpu.memory_space<vmem>>, vector<1x32xf32>
    %cst_157 = arith.constant dense<0.000000e+00> : vector<8xf32>
    %340 = vector.multi_reduction <add>, %337, %cst_157 [1] : vector<8x32xf32> to vector<8xf32>
    %341 = vector.shape_cast %340 : vector<8xf32> to vector<8x1xf32>
    %cst_158 = arith.constant 3.200000e+01 : f32
    %342 = vector.broadcast %cst_158 : f32 to vector<8x1xf32>
    %343 = arith.divf %341, %342 : vector<8x1xf32>
    %344 = vector.broadcast %343 : vector<8x1xf32> to vector<8x32xf32>
    %345 = arith.subf %337, %344 : vector<8x32xf32>
    %346 = arith.mulf %345, %345 : vector<8x32xf32>
    %cst_159 = arith.constant dense<0.000000e+00> : vector<8xf32>
    %347 = vector.multi_reduction <add>, %346, %cst_159 [1] : vector<8x32xf32> to vector<8xf32>
    %348 = vector.shape_cast %347 : vector<8xf32> to vector<8x1xf32>
    %cst_160 = arith.constant 3.200000e+01 : f32
    %349 = vector.broadcast %cst_160 : f32 to vector<8x1xf32>
    %350 = arith.divf %348, %349 : vector<8x1xf32>
    %cst_161 = arith.constant 9.99999974E-6 : f32
    %351 = vector.broadcast %cst_161 : f32 to vector<8x1xf32>
    %352 = arith.addf %350, %351 : vector<8x1xf32>
    %353 = math.rsqrt %352 : vector<8x1xf32>
    %354 = vector.broadcast %353 : vector<8x1xf32> to vector<8x32xf32>
    %355 = arith.mulf %345, %354 : vector<8x32xf32>
    %356 = vector.broadcast %338 : vector<1x32xf32> to vector<8x32xf32>
    %357 = arith.mulf %355, %356 : vector<8x32xf32>
    %358 = vector.broadcast %339 : vector<1x32xf32> to vector<8x32xf32>
    %359 = arith.addf %357, %358 : vector<8x32xf32>
    %c0_162 = arith.constant 0 : index
    %c0_163 = arith.constant 0 : index
    %c0_164 = arith.constant 0 : index
    %360 = vector.load %arg17[%c0_162, %c0_163, %c0_164] : memref<1x8x32xf32, #tpu.memory_space<vmem>>, vector<1x8x32xf32>
    %361 = vector.shape_cast %360 : vector<1x8x32xf32> to vector<8x32xf32>
    %362 = vector.shape_cast %359 : vector<8x32xf32> to vector<1x8x32xf32>
    tpu.vector_store %arg17[%c0_162, %c0_163, %c0_164], %362 {strides = array<i32>} : memref<1x8x32xf32, #tpu.memory_space<vmem>>, vector<1x8x32xf32>,
    return
  }
  func.func @transform_0(%arg0: i32) -> (i32, i32, i32) {
    %c0_i32 = arith.constant 0 : i32
    %c0_i32_0 = arith.constant 0 : i32
    %c0_i32_1 = arith.constant 0 : i32
    return %arg0, %c0_i32, %c0_i32_0 : i32, i32, i32
  }
  func.func @transform_1(%arg0: i32) -> (i32, i32) {
    %c0_i32 = arith.constant 0 : i32
    %c0_i32_0 = arith.constant 0 : i32
    %c0_i32_1 = arith.constant 0 : i32
    return %c0_i32, %c0_i32_0 : i32, i32
  }
  func.func @transform_2(%arg0: i32) -> (i32, i32) {
    %c0_i32 = arith.constant 0 : i32
    %c0_i32_0 = arith.constant 0 : i32
    %c0_i32_1 = arith.constant 0 : i32
    return %c0_i32, %c0_i32_0 : i32, i32
  }
  func.func @transform_3(%arg0: i32) -> (i32, i32, i32) {
    %c0_i32 = arith.constant 0 : i32
    %c0_i32_0 = arith.constant 0 : i32
    %c0_i32_1 = arith.constant 0 : i32
    %c0_i32_2 = arith.constant 0 : i32
    return %c0_i32, %c0_i32_0, %c0_i32_1 : i32, i32, i32
  }
  func.func @transform_4(%arg0: i32) -> (i32, i32, i32) {
    %c0_i32 = arith.constant 0 : i32
    %c0_i32_0 = arith.constant 0 : i32
    %c0_i32_1 = arith.constant 0 : i32
    %c0_i32_2 = arith.constant 0 : i32
    return %c0_i32, %c0_i32_0, %c0_i32_1 : i32, i32, i32
  }
  func.func @transform_5(%arg0: i32) -> (i32, i32, i32) {
    %c0_i32 = arith.constant 0 : i32
    %c0_i32_0 = arith.constant 0 : i32
    %c0_i32_1 = arith.constant 0 : i32
    %c0_i32_2 = arith.constant 0 : i32
    return %c0_i32, %c0_i32_0, %c0_i32_1 : i32, i32, i32
  }
  func.func @transform_6(%arg0: i32) -> (i32, i32, i32) {
    %c0_i32 = arith.constant 0 : i32
    %c0_i32_0 = arith.constant 0 : i32
    %c0_i32_1 = arith.constant 0 : i32
    %c0_i32_2 = arith.constant 0 : i32
    return %c0_i32, %c0_i32_0, %c0_i32_1 : i32, i32, i32
  }
  func.func @transform_7(%arg0: i32) -> (i32, i32, i32) {
    %c0_i32 = arith.constant 0 : i32
    %c0_i32_0 = arith.constant 0 : i32
    %c0_i32_1 = arith.constant 0 : i32
    %c0_i32_2 = arith.constant 0 : i32
    return %c0_i32, %c0_i32_0, %c0_i32_1 : i32, i32, i32
  }
  func.func @transform_8(%arg0: i32) -> (i32, i32, i32) {
    %c0_i32 = arith.constant 0 : i32
    %c0_i32_0 = arith.constant 0 : i32
    %c0_i32_1 = arith.constant 0 : i32
    %c0_i32_2 = arith.constant 0 : i32
    return %c0_i32, %c0_i32_0, %c0_i32_1 : i32, i32, i32
  }
  func.func @transform_9(%arg0: i32) -> (i32, i32, i32) {
    %c0_i32 = arith.constant 0 : i32
    %c0_i32_0 = arith.constant 0 : i32
    %c0_i32_1 = arith.constant 0 : i32
    %c0_i32_2 = arith.constant 0 : i32
    return %c0_i32, %c0_i32_0, %c0_i32_1 : i32, i32, i32
  }
  func.func @transform_10(%arg0: i32) -> (i32, i32, i32) {
    %c0_i32 = arith.constant 0 : i32
    %c0_i32_0 = arith.constant 0 : i32
    %c0_i32_1 = arith.constant 0 : i32
    %c0_i32_2 = arith.constant 0 : i32
    return %c0_i32, %c0_i32_0, %c0_i32_1 : i32, i32, i32
  }
  func.func @transform_11(%arg0: i32) -> (i32, i32, i32) {
    %c0_i32 = arith.constant 0 : i32
    %c0_i32_0 = arith.constant 0 : i32
    %c0_i32_1 = arith.constant 0 : i32
    %c0_i32_2 = arith.constant 0 : i32
    return %c0_i32, %c0_i32_0, %c0_i32_1 : i32, i32, i32
  }
  func.func @transform_12(%arg0: i32) -> (i32, i32, i32) {
    %c0_i32 = arith.constant 0 : i32
    %c0_i32_0 = arith.constant 0 : i32
    %c0_i32_1 = arith.constant 0 : i32
    %c0_i32_2 = arith.constant 0 : i32
    return %c0_i32, %c0_i32_0, %c0_i32_1 : i32, i32, i32
  }
  func.func @transform_13(%arg0: i32) -> (i32, i32, i32) {
    %c0_i32 = arith.constant 0 : i32
    %c0_i32_0 = arith.constant 0 : i32
    %c0_i32_1 = arith.constant 0 : i32
    %c0_i32_2 = arith.constant 0 : i32
    return %c0_i32, %c0_i32_0, %c0_i32_1 : i32, i32, i32
  }
  func.func @transform_14(%arg0: i32) -> (i32, i32) {
    %c0_i32 = arith.constant 0 : i32
    %c0_i32_0 = arith.constant 0 : i32
    %c0_i32_1 = arith.constant 0 : i32
    return %c0_i32, %c0_i32_0 : i32, i32
  }
  func.func @transform_15(%arg0: i32) -> (i32, i32) {
    %c0_i32 = arith.constant 0 : i32
    %c0_i32_0 = arith.constant 0 : i32
    %c0_i32_1 = arith.constant 0 : i32
    return %c0_i32, %c0_i32_0 : i32, i32
  }
  func.func @transform_16(%arg0: i32) -> (i32, i32, i32) {
    %c0_i32 = arith.constant 0 : i32
    %c0_i32_0 = arith.constant 0 : i32
    %c0_i32_1 = arith.constant 0 : i32
    return %arg0, %c0_i32, %c0_i32_0 : i32, i32, i32
  }
}

</mosaic_0001>

<llo_original>
// kernel: vit_forward.1
$region0: #{vit_forward.1}
  #allocation0 [shape = 'u32[]', space=smem, size = 0x4, offset = 0x4, fixed_abs, tag = 'smem constant byte address 0x4 - core index']
  #allocation1 [shape = 'u32[144,128]{1,0:T(1,128)}', space=vmem, size = 0x12000, scoped, tag = 'internal scratch']
  %s0 = inlined_call_operand.vmem [shape: f32[2,8,256], index: 0, kind: input, shape index: {}]
  %s1 = inlined_call_operand.vmem [shape: f32[8,32], index: 1, kind: input, shape index: {}]
  %s2 = inlined_call_operand.vmem [shape: f32[256,32], index: 2, kind: input, shape index: {}]
  %s3 = inlined_call_operand.vmem [shape: f32[2,1,32], index: 3, kind: input, shape index: {}]
  %s4 = inlined_call_operand.vmem [shape: f32[2,1,32], index: 4, kind: input, shape index: {}]
  %s5 = inlined_call_operand.vmem [shape: f32[2,32,96], index: 5, kind: input, shape index: {}]
  %s6 = inlined_call_operand.vmem [shape: f32[2,32,32], index: 6, kind: input, shape index: {}]
  %s7 = inlined_call_operand.vmem [shape: f32[2,1,32], index: 7, kind: input, shape index: {}]
  %s8 = inlined_call_operand.vmem [shape: f32[2,1,32], index: 8, kind: input, shape index: {}]
  %s9 = inlined_call_operand.vmem [shape: f32[2,1,32], index: 9, kind: input, shape index: {}]
  %s10 = inlined_call_operand.vmem [shape: f32[2,32,128], index: 10, kind: input, shape index: {}]
  %s11 = inlined_call_operand.vmem [shape: f32[2,1,128], index: 11, kind: input, shape index: {}]
  %s12 = inlined_call_operand.vmem [shape: f32[2,128,32], index: 12, kind: input, shape index: {}]
  %s13 = inlined_call_operand.vmem [shape: f32[2,1,32], index: 13, kind: input, shape index: {}]
  %s14 = inlined_call_operand.vmem [shape: f32[1,32], index: 14, kind: input, shape index: {}]
  %s15 = inlined_call_operand.vmem [shape: f32[1,32], index: 15, kind: input, shape index: {}]
  %s16 = inlined_call_operand.vmem [shape: f32[2,8,32], index: 16, kind: output, shape index: {}]
  %s17 = sld [smem:[#allocation0]]
  $region97: #{vit_forward.1} parent=0
    _
  %s19 = ssub.s32 1, %s17
  %s20 = scalar_select 0, %s19, %s17
  loop: start=0, step=1, limit=4
  $region2: #{vit_forward.1} parent=0 // loop_pre_header
    _
  $region3: #{vit_forward.1} parent=0 // loop_header
    %s22 = sphi 0, %s26
    %p23 = scmp.ge.s32.totalorder %s22, 4
    %s32 = sphi 0, %s34
    %s35 = sphi 0, %s32
    %s36 = sphi 0, %s35
    %s52 = sphi 0, %s36
    %s56 = sphi 0, %s56
    %s58 = sphi 0, %s56
    %s59 = sphi 0, %s58
    %s73 = sphi 0, %s59
    %s77 = sphi 0, %s77
    %s79 = sphi 0, %s77
    %s80 = sphi 0, %s79
    %s94 = sphi 0, %s80
    %s98 = sphi 0, %s98
    %s100 = sphi 0, %s98
    %s101 = sphi 0, %s100
    %s115 = sphi 0, %s101
    %s119 = sphi 0, %s119
    %s121 = sphi 0, %s119
    %s122 = sphi 0, %s121
    %s136 = sphi 0, %s122
    %s140 = sphi 0, %s140
    %s142 = sphi 0, %s140
    %s143 = sphi 0, %s142
    %s157 = sphi 0, %s143
    %s161 = sphi 0, %s161
    %s163 = sphi 0, %s161
    %s164 = sphi 0, %s163
    %s178 = sphi 0, %s164
    %s182 = sphi 0, %s182
    %s184 = sphi 0, %s182
    %s185 = sphi 0, %s184
    %s199 = sphi 0, %s185
    %s203 = sphi 0, %s203
    %s205 = sphi 0, %s203
    %s206 = sphi 0, %s205
    %s220 = sphi 0, %s206
    %s224 = sphi 0, %s224
    %s226 = sphi 0, %s224
    %s227 = sphi 0, %s226
    %s241 = sphi 0, %s227
    %s245 = sphi 0, %s245
    %s247 = sphi 0, %s245
    %s248 = sphi 0, %s247
    %s262 = sphi 0, %s248
    %s266 = sphi 0, %s266
    %s268 = sphi 0, %s266
    %s269 = sphi 0, %s268
    %s283 = sphi 0, %s269
    %s287 = sphi 0, %s287
    %s289 = sphi 0, %s287
    %s290 = sphi 0, %s289
    %s304 = sphi 0, %s290
    %s308 = sphi 0, %s308
    %s310 = sphi 0, %s308
    %s311 = sphi 0, %s310
    %s325 = sphi 0, %s311
    %s329 = sphi 0, %s329
    %s331 = sphi 0, %s329
    %s332 = sphi 0, %s331
    %s346 = sphi 0, %s332
    %s350 = sphi 0, %s350
    %s352 = sphi 0, %s350
    %s353 = sphi 0, %s352
    %s367 = sphi 0, %s353
    %s373 = sphi 0, %s375
    %s376 = sphi 0, %s373
    %s377 = sphi 0, %s376
    %s393 = sphi 0, %s377
  $region4: #{vit_forward.1} parent=0 // loop_header_branch
    %25 = sbr.rel (%p23) target = $region8
  $region5: #{vit_forward.1} parent=0 // loop_body
    %s27 = ssub.s32 %s22, 1
    %s28 = ssub.s32 %s22, 2
    %s29 = sadd.s32 %s22, 1
    %s30 = ssub.s32 %s22, %s29
    %p31 = scmp.eq.s32.totalorder %s30, 0
    %s33 = sadd.s32 %s32, 1
    %s34 = scalar_select %p31, %s32, %s33
    %p37 = pneg %p31
    %p38 = scmp.eq.s32.totalorder %s22, 1
    %p39 = por %p37, %p38
    %p40 = scmp.ne.s32.totalorder %s32, %s35
    %p41 = scmp.eq.s32.totalorder %s22, 0
    %p42 = por %p40, %p41
    %p43 = scmp.ne.s32.totalorder %s32, %s35
    %p44 = scmp.eq.s32.totalorder %s27, 1
    %p45 = por %p43, %p44
    %p46 = scmp.ne.s32.totalorder %s35, %s36
    %p47 = scmp.eq.s32.totalorder %s27, 0
    %p48 = por %p46, %p47
    %p49 = scmp.ne.s32.totalorder %s35, %s36
    %p50 = scmp.eq.s32.totalorder %s28, 1
    %p51 = por %p49, %p50
    %p53 = scmp.ne.s32.totalorder %s36, %s52
    %p54 = scmp.eq.s32.totalorder %s28, 0
    %p55 = por %p53, %p54
    %s57 = sadd.s32 %s56, 1
    %p60 = scmp.eq.s32.totalorder %s22, 1
    %p61 = scmp.ne.s32.totalorder %s56, %s58
    %p62 = scmp.eq.s32.totalorder %s22, 0
    %p63 = por %p61, %p62
    %p64 = scmp.ne.s32.totalorder %s56, %s58
    %p65 = scmp.eq.s32.totalorder %s27, 1
    %p66 = por %p64, %p65
    %p67 = scmp.ne.s32.totalorder %s58, %s59
    %p68 = scmp.eq.s32.totalorder %s27, 0
    %p69 = por %p67, %p68
    %p70 = scmp.ne.s32.totalorder %s58, %s59
    %p71 = scmp.eq.s32.totalorder %s28, 1
    %p72 = por %p70, %p71
    %p74 = scmp.ne.s32.totalorder %s59, %s73
    %p75 = scmp.eq.s32.totalorder %s28, 0
    %p76 = por %p74, %p75
    %s78 = sadd.s32 %s77, 1
    %p81 = scmp.eq.s32.totalorder %s22, 1
    %p82 = scmp.ne.s32.totalorder %s77, %s79
    %p83 = scmp.eq.s32.totalorder %s22, 0
    %p84 = por %p82, %p83
    %p85 = scmp.ne.s32.totalorder %s77, %s79
    %p86 = scmp.eq.s32.totalorder %s27, 1
    %p87 = por %p85, %p86
    %p88 = scmp.ne.s32.totalorder %s79, %s80
    %p89 = scmp.eq.s32.totalorder %s27, 0
    %p90 = por %p88, %p89
    %p91 = scmp.ne.s32.totalorder %s79, %s80
    %p92 = scmp.eq.s32.totalorder %s28, 1
    %p93 = por %p91, %p92
    %p95 = scmp.ne.s32.totalorder %s80, %s94
    %p96 = scmp.eq.s32.totalorder %s28, 0
    %p97 = por %p95, %p96
    %s99 = sadd.s32 %s98, 1
    %p102 = scmp.eq.s32.totalorder %s22, 1
    %p103 = scmp.ne.s32.totalorder %s98, %s100
    %p104 = scmp.eq.s32.totalorder %s22, 0
    %p105 = por %p103, %p104
    %p106 = scmp.ne.s32.totalorder %s98, %s100
    %p107 = scmp.eq.s32.totalorder %s27, 1
    %p108 = por %p106, %p107
    %p109 = scmp.ne.s32.totalorder %s100, %s101
    %p110 = scmp.eq.s32.totalorder %s27, 0
    %p111 = por %p109, %p110
    %p112 = scmp.ne.s32.totalorder %s100, %s101
    %p113 = scmp.eq.s32.totalorder %s28, 1
    %p114 = por %p112, %p113
    %p116 = scmp.ne.s32.totalorder %s101, %s115
    %p117 = scmp.eq.s32.totalorder %s28, 0
    %p118 = por %p116, %p117
    %s120 = sadd.s32 %s119, 1
    %p123 = scmp.eq.s32.totalorder %s22, 1
    %p124 = scmp.ne.s32.totalorder %s119, %s121
    %p125 = scmp.eq.s32.totalorder %s22, 0
    %p126 = por %p124, %p125
    %p127 = scmp.ne.s32.totalorder %s119, %s121
    %p128 = scmp.eq.s32.totalorder %s27, 1
    %p129 = por %p127, %p128
    %p130 = scmp.ne.s32.totalorder %s121, %s122
    %p131 = scmp.eq.s32.totalorder %s27, 0
    %p132 = por %p130, %p131
    %p133 = scmp.ne.s32.totalorder %s121, %s122
    %p134 = scmp.eq.s32.totalorder %s28, 1
    %p135 = por %p133, %p134
    %p137 = scmp.ne.s32.totalorder %s122, %s136
    %p138 = scmp.eq.s32.totalorder %s28, 0
    %p139 = por %p137, %p138
    %s141 = sadd.s32 %s140, 1
    %p144 = scmp.eq.s32.totalorder %s22, 1
    %p145 = scmp.ne.s32.totalorder %s140, %s142
    %p146 = scmp.eq.s32.totalorder %s22, 0
    %p147 = por %p145, %p146
    %p148 = scmp.ne.s32.totalorder %s140, %s142
    %p149 = scmp.eq.s32.totalorder %s27, 1
    %p150 = por %p148, %p149
    %p151 = scmp.ne.s32.totalorder %s142, %s143
    %p152 = scmp.eq.s32.totalorder %s27, 0
    %p153 = por %p151, %p152
    %p154 = scmp.ne.s32.totalorder %s142, %s143
    %p155 = scmp.eq.s32.totalorder %s28, 1
    %p156 = por %p154, %p155
    %p158 = scmp.ne.s32.totalorder %s143, %s157
    %p159 = scmp.eq.s32.totalorder %s28, 0
    %p160 = por %p158, %p159
    %s162 = sadd.s32 %s161, 1
    %p165 = scmp.eq.s32.totalorder %s22, 1
    %p166 = scmp.ne.s32.totalorder %s161, %s163
    %p167 = scmp.eq.s32.totalorder %s22, 0
    %p168 = por %p166, %p167
    %p169 = scmp.ne.s32.totalorder %s161, %s163
    %p170 = scmp.eq.s32.totalorder %s27, 1
    %p171 = por %p169, %p170
    %p172 = scmp.ne.s32.totalorder %s163, %s164
    %p173 = scmp.eq.s32.totalorder %s27, 0
    %p174 = por %p172, %p173
    %p175 = scmp.ne.s32.totalorder %s163, %s164
    %p176 = scmp.eq.s32.totalorder %s28, 1
    %p177 = por %p175, %p176
    %p179 = scmp.ne.s32.totalorder %s164, %s178
    %p180 = scmp.eq.s32.totalorder %s28, 0
    %p181 = por %p179, %p180
    %s183 = sadd.s32 %s182, 1
    %p186 = scmp.eq.s32.totalorder %s22, 1
    %p187 = scmp.ne.s32.totalorder %s182, %s184
    %p188 = scmp.eq.s32.totalorder %s22, 0
    %p189 = por %p187, %p188
    %p190 = scmp.ne.s32.totalorder %s182, %s184
    %p191 = scmp.eq.s32.totalorder %s27, 1
    %p192 = por %p190, %p191
    %p193 = scmp.ne.s32.totalorder %s184, %s185
    %p194 = scmp.eq.s32.totalorder %s27, 0
    %p195 = por %p193, %p194
    %p196 = scmp.ne.s32.totalorder %s184, %s185
    %p197 = scmp.eq.s32.totalorder %s28, 1
    %p198 = por %p196, %p197
    %p200 = scmp.ne.s32.totalorder %s185, %s199
    %p201 = scmp.eq.s32.totalorder %s28, 0
    %p202 = por %p200, %p201
    %s204 = sadd.s32 %s203, 1
    %p207 = scmp.eq.s32.totalorder %s22, 1
    %p208 = scmp.ne.s32.totalorder %s203, %s205
    %p209 = scmp.eq.s32.totalorder %s22, 0
    %p210 = por %p208, %p209
    %p211 = scmp.ne.s32.totalorder %s203, %s205
    %p212 = scmp.eq.s32.totalorder %s27, 1
    %p213 = por %p211, %p212
    %p214 = scmp.ne.s32.totalorder %s205, %s206
    %p215 = scmp.eq.s32.totalorder %s27, 0
    %p216 = por %p214, %p215
    %p217 = scmp.ne.s32.totalorder %s205, %s206
    %p218 = scmp.eq.s32.totalorder %s28, 1
    %p219 = por %p217, %p218
    %p221 = scmp.ne.s32.totalorder %s206, %s220
    %p222 = scmp.eq.s32.totalorder %s28, 0
    %p223 = por %p221, %p222
    %s225 = sadd.s32 %s224, 1
    %p228 = scmp.eq.s32.totalorder %s22, 1
    %p229 = scmp.ne.s32.totalorder %s224, %s226
    %p230 = scmp.eq.s32.totalorder %s22, 0
    %p231 = por %p229, %p230
    %p232 = scmp.ne.s32.totalorder %s224, %s226
    %p233 = scmp.eq.s32.totalorder %s27, 1
    %p234 = por %p232, %p233
    %p235 = scmp.ne.s32.totalorder %s226, %s227
    %p236 = scmp.eq.s32.totalorder %s27, 0
    %p237 = por %p235, %p236
    %p238 = scmp.ne.s32.totalorder %s226, %s227
    %p239 = scmp.eq.s32.totalorder %s28, 1
    %p240 = por %p238, %p239
    %p242 = scmp.ne.s32.totalorder %s227, %s241
    %p243 = scmp.eq.s32.totalorder %s28, 0
    %p244 = por %p242, %p243
    %s246 = sadd.s32 %s245, 1
    %p249 = scmp.eq.s32.totalorder %s22, 1
    %p250 = scmp.ne.s32.totalorder %s245, %s247
    %p251 = scmp.eq.s32.totalorder %s22, 0
    %p252 = por %p250, %p251
    %p253 = scmp.ne.s32.totalorder %s245, %s247
    %p254 = scmp.eq.s32.totalorder %s27, 1
    %p255 = por %p253, %p254
    %p256 = scmp.ne.s32.totalorder %s247, %s248
    %p257 = scmp.eq.s32.totalorder %s27, 0
    %p258 = por %p256, %p257
    %p259 = scmp.ne.s32.totalorder %s247, %s248
    %p260 = scmp.eq.s32.totalorder %s28, 1
    %p261 = por %p259, %p260
    %p263 = scmp.ne.s32.totalorder %s248, %s262
    %p264 = scmp.eq.s32.totalorder %s28, 0
    %p265 = por %p263, %p264
    %s267 = sadd.s32 %s266, 1
    %p270 = scmp.eq.s32.totalorder %s22, 1
    %p271 = scmp.ne.s32.totalorder %s266, %s268
    %p272 = scmp.eq.s32.totalorder %s22, 0
    %p273 = por %p271, %p272
    %p274 = scmp.ne.s32.totalorder %s266, %s268
    %p275 = scmp.eq.s32.totalorder %s27, 1
    %p276 = por %p274, %p275
    %p277 = scmp.ne.s32.totalorder %s268, %s269
    %p278 = scmp.eq.s32.totalorder %s27, 0
    %p279 = por %p277, %p278
    %p280 = scmp.ne.s32.totalorder %s268, %s269
    %p281 = scmp.eq.s32.totalorder %s28, 1
    %p282 = por %p280, %p281
    %p284 = scmp.ne.s32.totalorder %s269, %s283
    %p285 = scmp.eq.s32.totalorder %s28, 0
    %p286 = por %p284, %p285
    %s288 = sadd.s32 %s287, 1
    %p291 = scmp.eq.s32.totalorder %s22, 1
    %p292 = scmp.ne.s32.totalorder %s287, %s289
    %p293 = scmp.eq.s32.totalorder %s22, 0
    %p294 = por %p292, %p293
    %p295 = scmp.ne.s32.totalorder %s287, %s289
    %p296 = scmp.eq.s32.totalorder %s27, 1
    %p297 = por %p295, %p296
    %p298 = scmp.ne.s32.totalorder %s289, %s290
    %p299 = scmp.eq.s32.totalorder %s27, 0
    %p300 = por %p298, %p299
    %p301 = scmp.ne.s32.totalorder %s289, %s290
    %p302 = scmp.eq.s32.totalorder %s28, 1
    %p303 = por %p301, %p302
    %p305 = scmp.ne.s32.totalorder %s290, %s304
    %p306 = scmp.eq.s32.totalorder %s28, 0
    %p307 = por %p305, %p306
    %s309 = sadd.s32 %s308, 1
    %p312 = scmp.eq.s32.totalorder %s22, 1
    %p313 = scmp.ne.s32.totalorder %s308, %s310
    %p314 = scmp.eq.s32.totalorder %s22, 0
    %p315 = por %p313, %p314
    %p316 = scmp.ne.s32.totalorder %s308, %s310
    %p317 = scmp.eq.s32.totalorder %s27, 1
    %p318 = por %p316, %p317
    %p319 = scmp.ne.s32.totalorder %s310, %s311
    %p320 = scmp.eq.s32.totalorder %s27, 0
    %p321 = por %p319, %p320
    %p322 = scmp.ne.s32.totalorder %s310, %s311
    %p323 = scmp.eq.s32.totalorder %s28, 1
    %p324 = por %p322, %p323
    %p326 = scmp.ne.s32.totalorder %s311, %s325
    %p327 = scmp.eq.s32.totalorder %s28, 0
    %p328 = por %p326, %p327
    %s330 = sadd.s32 %s329, 1
    %p333 = scmp.eq.s32.totalorder %s22, 1
    %p334 = scmp.ne.s32.totalorder %s329, %s331
    %p335 = scmp.eq.s32.totalorder %s22, 0
    %p336 = por %p334, %p335
    %p337 = scmp.ne.s32.totalorder %s329, %s331
    %p338 = scmp.eq.s32.totalorder %s27, 1
    %p339 = por %p337, %p338
    %p340 = scmp.ne.s32.totalorder %s331, %s332
    %p341 = scmp.eq.s32.totalorder %s27, 0
    %p342 = por %p340, %p341
    %p343 = scmp.ne.s32.totalorder %s331, %s332
    %p344 = scmp.eq.s32.totalorder %s28, 1
    %p345 = por %p343, %p344
    %p347 = scmp.ne.s32.totalorder %s332, %s346
    %p348 = scmp.eq.s32.totalorder %s28, 0
    %p349 = por %p347, %p348
    %s351 = sadd.s32 %s350, 1
    %p354 = scmp.eq.s32.totalorder %s22, 1
    %p355 = scmp.ne.s32.totalorder %s350, %s352
    %p356 = scmp.eq.s32.totalorder %s22, 0
    %p357 = por %p355, %p356
    %p358 = scmp.ne.s32.totalorder %s350, %s352
    %p359 = scmp.eq.s32.totalorder %s27, 1
    %p360 = por %p358, %p359
    %p361 = scmp.ne.s32.totalorder %s352, %s353
    %p362 = scmp.eq.s32.totalorder %s27, 0
    %p363 = por %p361, %p362
    %p364 = scmp.ne.s32.totalorder %s352, %s353
    %p365 = scmp.eq.s32.totalorder %s28, 1
    %p366 = por %p364, %p365
    %p368 = scmp.ne.s32.totalorder %s353, %s367
    %p369 = scmp.eq.s32.totalorder %s28, 0
    %p370 = por %p368, %p369
    %s371 = ssub.s32 %s22, %s29
    %p372 = scmp.eq.s32.totalorder %s371, 0
    %s374 = sadd.s32 %s373, 1
    %s375 = scalar_select %p372, %s373, %s374
    %p378 = pneg %p372
    %p379 = scmp.eq.s32.totalorder %s22, 1
    %p380 = por %p378, %p379
    %p381 = scmp.ne.s32.totalorder %s373, %s376
    %p382 = scmp.eq.s32.totalorder %s22, 0
    %p383 = por %p381, %p382
    %p384 = scmp.ne.s32.totalorder %s373, %s376
    %p385 = scmp.eq.s32.totalorder %s27, 1
    %p386 = por %p384, %p385
    %p387 = scmp.ne.s32.totalorder %s376, %s377
    %p388 = scmp.eq.s32.totalorder %s27, 0
    %p389 = por %p387, %p388
    %p390 = scmp.ne.s32.totalorder %s376, %s377
    %p391 = scmp.eq.s32.totalorder %s28, 1
    %p392 = por %p390, %p391
    %p394 = scmp.ne.s32.totalorder %s377, %s393
    %p395 = scmp.eq.s32.totalorder %s28, 0
    %p396 = por %p394, %p395
    %p397 = scmp.le.s32.totalorder 1, %s22
    %p398 = scmp.lt.s32.totalorder %s22, 3
    %p399 = pnand %p397, %p398
    %p400 = pneg %p399
    // Predicated region
    $region9: #{vit_forward.1} parent=5 // pred_check
      _
    $region10: #{vit_forward.1} parent=5 // pred_check_branch
      %402 = sbr.rel (%p399) target = $region12
    $region11: #{vit_forward.1} parent=5 // pred_region
      %s403 = ssub.s32 %s22, 1
      // Predicated region
      $region13: #{vit_forward.1} parent=11 // pred_check
        %p404 = pneg %p69
      $region14: #{vit_forward.1} parent=11 // pred_check_branch
        %406 = sbr.rel (%p404) target = $region16
      $region15: #{vit_forward.1} parent=11 // pred_region
        _
      $region16: #{vit_forward.1} parent=11 // pred_fallthru
        _
      // Predicated region
      $region17: #{vit_forward.1} parent=11 // pred_check
        %p407 = pneg %p90
      $region18: #{vit_forward.1} parent=11 // pred_check_branch
        %409 = sbr.rel (%p407) target = $region20
      $region19: #{vit_forward.1} parent=11 // pred_region
        _
      $region20: #{vit_forward.1} parent=11 // pred_fallthru
        _
      // Predicated region
      $region21: #{vit_forward.1} parent=11 // pred_check
        %p410 = pneg %p111
      $region22: #{vit_forward.1} parent=11 // pred_check_branch
        %412 = sbr.rel (%p410) target = $region24
      $region23: #{vit_forward.1} parent=11 // pred_region
        _
      $region24: #{vit_forward.1} parent=11 // pred_fallthru
        _
      // Predicated region
      $region25: #{vit_forward.1} parent=11 // pred_check
        %p413 = pneg %p132
      $region26: #{vit_forward.1} parent=11 // pred_check_branch
        %415 = sbr.rel (%p413) target = $region28
      $region27: #{vit_forward.1} parent=11 // pred_region
        _
      $region28: #{vit_forward.1} parent=11 // pred_fallthru
        _
      // Predicated region
      $region29: #{vit_forward.1} parent=11 // pred_check
        %p416 = pneg %p153
      $region30: #{vit_forward.1} parent=11 // pred_check_branch
        %418 = sbr.rel (%p416) target = $region32
      $region31: #{vit_forward.1} parent=11 // pred_region
        _
      $region32: #{vit_forward.1} parent=11 // pred_fallthru
        _
      // Predicated region
      $region33: #{vit_forward.1} parent=11 // pred_check
        %p419 = pneg %p174
      $region34: #{vit_forward.1} parent=11 // pred_check_branch
        %421 = sbr.rel (%p419) target = $region36
      $region35: #{vit_forward.1} parent=11 // pred_region
        _
      $region36: #{vit_forward.1} parent=11 // pred_fallthru
        _
      // Predicated region
      $region37: #{vit_forward.1} parent=11 // pred_check
        %p422 = pneg %p195
      $region38: #{vit_forward.1} parent=11 // pred_check_branch
        %424 = sbr.rel (%p422) target = $region40
      $region39: #{vit_forward.1} parent=11 // pred_region
        _
      $region40: #{vit_forward.1} parent=11 // pred_fallthru
        _
      // Predicated region
      $region41: #{vit_forward.1} parent=11 // pred_check
        %p425 = pneg %p216
      $region42: #{vit_forward.1} parent=11 // pred_check_branch
        %427 = sbr.rel (%p425) target = $region44
      $region43: #{vit_forward.1} parent=11 // pred_region
        _
      $region44: #{vit_forward.1} parent=11 // pred_fallthru
        _
      // Predicated region
      $region45: #{vit_forward.1} parent=11 // pred_check
        %p428 = pneg %p237
      $region46: #{vit_forward.1} parent=11 // pred_check_branch
        %430 = sbr.rel (%p428) target = $region48
      $region47: #{vit_forward.1} parent=11 // pred_region
        _
      $region48: #{vit_forward.1} parent=11 // pred_fallthru
        _
      // Predicated region
      $region49: #{vit_forward.1} parent=11 // pred_check
        %p431 = pneg %p258
      $region50: #{vit_forward.1} parent=11 // pred_check_branch
        %433 = sbr.rel (%p431) target = $region52
      $region51: #{vit_forward.1} parent=11 // pred_region
        _
      $region52: #{vit_forward.1} parent=11 // pred_fallthru
        _
      // Predicated region
      $region53: #{vit_forward.1} parent=11 // pred_check
        %p434 = pneg %p279
      $region54: #{vit_forward.1} parent=11 // pred_check_branch
        %436 = sbr.rel (%p434) target = $region56
      $region55: #{vit_forward.1} parent=11 // pred_region
        _
      $region56: #{vit_forward.1} parent=11 // pred_fallthru
        _
      // Predicated region
      $region57: #{vit_forward.1} parent=11 // pred_check
        %p437 = pneg %p300
      $region58: #{vit_forward.1} parent=11 // pred_check_branch
        %439 = sbr.rel (%p437) target = $region60
      $region59: #{vit_forward.1} parent=11 // pred_region
        _
      $region60: #{vit_forward.1} parent=11 // pred_fallthru
        _
      // Predicated region
      $region61: #{vit_forward.1} parent=11 // pred_check
        %p440 = pneg %p321
      $region62: #{vit_forward.1} parent=11 // pred_check_branch
        %442 = sbr.rel (%p440) target = $region64
      $region63: #{vit_forward.1} parent=11 // pred_region
        _
      $region64: #{vit_forward.1} parent=11 // pred_fallthru
        _
      // Predicated region
      $region65: #{vit_forward.1} parent=11 // pred_check
        %p443 = pneg %p342
      $region66: #{vit_forward.1} parent=11 // pred_check_branch
        %445 = sbr.rel (%p443) target = $region68
      $region67: #{vit_forward.1} parent=11 // pred_region
        _
      $region68: #{vit_forward.1} parent=11 // pred_fallthru
        _
      // Predicated region
      $region69: #{vit_forward.1} parent=11 // pred_check
        %p446 = pneg %p363
      $region70: #{vit_forward.1} parent=11 // pred_check_branch
        %448 = sbr.rel (%p446) target = $region72
      $region71: #{vit_forward.1} parent=11 // pred_region
        _
      $region72: #{vit_forward.1} parent=11 // pred_fallthru
        _
    $region12: #{vit_forward.1} parent=5 // pred_fallthru
      _
    %p449 = scmp.lt.s32.totalorder %s22, 2
    // Predicated region
    $region73: #{vit_forward.1} parent=5 // pred_check
      %p450 = pneg %p449
    $region74: #{vit_forward.1} parent=5 // pred_check_branch
      %452 = sbr.rel (%p450) target = $region76
    $region75: #{vit_forward.1} parent=5 // pred_region
      // Predicated region
      $region77: #{vit_forward.1} parent=75 // pred_check
        %p453 = pneg %p42
      $region78: #{vit_forward.1} parent=75 // pred_check_branch
        %455 = sbr.rel (%p453) target = $region80
      $region79: #{vit_forward.1} parent=75 // pred_region
        %p456 = scmp.lt.s32.totalorder %s22, 1
        %s457 = scalar_select %p456, %s22, 1
        %s458 = smul.addr %s457, 2
        %s459 = smul.addr %s458, 8
        %s460 = scalar_lea.vmem %s0, %s459
      $region80: #{vit_forward.1} parent=75 // pred_fallthru
        _
    $region76: #{vit_forward.1} parent=5 // pred_fallthru
      _
    %p461 = scmp.le.s32.totalorder 1, %s22
    %p462 = scmp.lt.s32.totalorder %s22, 3
    %p463 = pnand %p461, %p462
    %p464 = pneg %p463
    // Predicated region
    $region81: #{vit_forward.1} parent=5 // pred_check
      _
    $region82: #{vit_forward.1} parent=5 // pred_check_branch
      %466 = sbr.rel (%p463) target = $region84
    $region83: #{vit_forward.1} parent=5 // pred_region
      %s467 = ssub.s32 %s22, 1
      %p468 = scmp.lt.s32.totalorder %s27, 1
      %s469 = scalar_select %p468, %s27, 1
      %s470 = smul.addr %s469, 2
      %s471 = smul.addr %s470, 8
      %s472 = scalar_lea.vmem %s0, %s471
      %p473 = pneg %p48
      %p474 = pneg %p45
      %p475 = pneg %p69
      %p476 = pneg %p66
      %p477 = pneg %p90
      %p478 = pneg %p87
      %p479 = pneg %p111
      %p480 = pneg %p108
      %p481 = pneg %p132
      %p482 = pneg %p129
      %p483 = pneg %p153
      %p484 = pneg %p150
      %p485 = pneg %p174
      %p486 = pneg %p171
      %p487 = pneg %p195
      %p488 = pneg %p192
      %p489 = pneg %p216
      %p490 = pneg %p213
      %p491 = pneg %p237
      %p492 = pneg %p234
      %p493 = pneg %p258
      %p494 = pneg %p255
      %p495 = pneg %p279
      %p496 = pneg %p276
      %p497 = pneg %p300
      %p498 = pneg %p297
      %p499 = pneg %p321
      %p500 = pneg %p318
      %p501 = pneg %p342
      %p502 = pneg %p339
      %p503 = pneg %p363
      %p504 = pneg %p360
      %p505 = pneg %p389
      %p506 = pneg %p386
      %p507 = scmp.lt.s32.totalorder %s27, 1
      %s508 = scalar_select %p507, %s27, 1
      %s509 = smul.addr %s508, 8
      %s510 = scalar_lea.vmem %s16, %s509
      %p511 = scmp.lt.s32.totalorder %s27, 1
      %s512 = scalar_select %p511, %s27, 1
      %s513 = smul.addr %s512, 2
      %s514 = smul.addr %s513, 8
      %s515 = scalar_lea.vmem %s0, %s514
      %p516 = scmp.lt.s32.totalorder %s27, 1
      %s517 = scalar_select %p516, %s27, 1
      %s518 = smul.addr %s517, 8
      %s519 = scalar_lea.vmem %s16, %s518
      %v520 = vld [vmem:[%s515] sm:$0xff]
      %v521 = vld [vmem:[%s515 + $0x8] sm:$0xff]
      %v522 = vld [vmem:[%s2] sm:$0xff]
      %v523 = vld [vmem:[%s2 + $0x8] sm:$0xff]
      %v524 = vld [vmem:[%s2 + $0x10] sm:$0xff]
      %v525 = vld [vmem:[%s2 + $0x18] sm:$0xff]
      %v526 = vld [vmem:[%s2 + $0x20] sm:$0xff]
      %v527 = vld [vmem:[%s2 + $0x28] sm:$0xff]
      %v528 = vld [vmem:[%s2 + $0x30] sm:$0xff]
      %v529 = vld [vmem:[%s2 + $0x38] sm:$0xff]
      %v530 = vld [vmem:[%s2 + $0x40] sm:$0xff]
      %v531 = vld [vmem:[%s2 + $0x48] sm:$0xff]
      %v532 = vld [vmem:[%s2 + $0x50] sm:$0xff]
      %v533 = vld [vmem:[%s2 + $0x58] sm:$0xff]
      %v534 = vld [vmem:[%s2 + $0x60] sm:$0xff]
      %v535 = vld [vmem:[%s2 + $0x68] sm:$0xff]
      %v536 = vld [vmem:[%s2 + $0x70] sm:$0xff]
      %v537 = vld [vmem:[%s2 + $0x78] sm:$0xff]
      %v538 = vld [vmem:[%s2 + $0x80] sm:$0xff]
      %v539 = vld [vmem:[%s2 + $0x88] sm:$0xff]
      %v540 = vld [vmem:[%s2 + $0x90] sm:$0xff]
      %v541 = vld [vmem:[%s2 + $0x98] sm:$0xff]
      %v542 = vld [vmem:[%s2 + $0xa0] sm:$0xff]
      %v543 = vld [vmem:[%s2 + $0xa8] sm:$0xff]
      %v544 = vld [vmem:[%s2 + $0xb0] sm:$0xff]
      %v545 = vld [vmem:[%s2 + $0xb8] sm:$0xff]
      %v546 = vld [vmem:[%s2 + $0xc0] sm:$0xff]
      %v547 = vld [vmem:[%s2 + $0xc8] sm:$0xff]
      %v548 = vld [vmem:[%s2 + $0xd0] sm:$0xff]
      %v549 = vld [vmem:[%s2 + $0xd8] sm:$0xff]
      %v550 = vld [vmem:[%s2 + $0xe0] sm:$0xff]
      %v551 = vld [vmem:[%s2 + $0xe8] sm:$0xff]
      %v552 = vld [vmem:[%s2 + $0xf0] sm:$0xff]
      %v553 = vld [vmem:[%s2 + $0xf8] sm:$0xff]
      %v554 = vld [vmem:[%s1] sm:$0xff]
      %555 = vmatprep.subr.mxu0 0.0
      %556 = vmatpush1.msra.mxu0 %v522
      %557 = vmatprep.subr.mxu0 0.0
      %558 = vmatpush1.msra.mxu0 %v523
      %559 = vmatprep.subr.mxu0 0.0
      %560 = vmatpush1.msra.mxu0 %v524
      %561 = vmatprep.subr.mxu0 0.0
      %562 = vmatpush1.msra.mxu0 %v525
      %563 = vmatprep.subr.mxu0 0.0
      %564 = vmatpush1.msra.mxu0 %v526
      %565 = vmatprep.subr.mxu0 0.0
      %566 = vmatpush1.msra.mxu0 %v527
      %567 = vmatprep.subr.mxu0 0.0
      %568 = vmatpush1.msra.mxu0 %v528
      %569 = vmatprep.subr.mxu0 0.0
      %570 = vmatpush1.msra.mxu0 %v529
      %571 = vmatprep.subr.mxu0 0.0
      %572 = vmatpush1.msra.mxu0 %v530
      %573 = vmatprep.subr.mxu0 0.0
      %574 = vmatpush1.msra.mxu0 %v531
      %575 = vmatprep.subr.mxu0 0.0
      %576 = vmatpush1.msra.mxu0 %v532
      %577 = vmatprep.subr.mxu0 0.0
      %578 = vmatpush1.msra.mxu0 %v533
      %579 = vmatprep.subr.mxu0 0.0
      %580 = vmatpush1.msra.mxu0 %v534
      %581 = vmatprep.subr.mxu0 0.0
      %582 = vmatpush1.msra.mxu0 %v535
      %583 = vmatprep.subr.mxu0 0.0
      %584 = vmatpush1.msra.mxu0 %v536
      %585 = vmatprep.subr.mxu0 0.0
      %586 = vmatpush1.msra.mxu0 %v537
      %587 = vmatprep.subr.mxu0 0.0
      %588 = vmatpush1.msra.mxu0 %v538
      %589 = vmatprep.subr.mxu0 0.0
      %590 = vmatpush1.msra.mxu0 %v539
      %591 = vmatprep.subr.mxu0 0.0
      %592 = vmatpush1.msra.mxu0 %v540
      %593 = vmatprep.subr.mxu0 0.0
      %594 = vmatpush1.msra.mxu0 %v541
      %595 = vmatprep.subr.mxu0 0.0
      %596 = vmatpush1.msra.mxu0 %v542
      %597 = vmatprep.subr.mxu0 0.0
      %598 = vmatpush1.msra.mxu0 %v543
      %599 = vmatprep.subr.mxu0 0.0
      %600 = vmatpush1.msra.mxu0 %v544
      %601 = vmatprep.subr.mxu0 0.0
      %602 = vmatpush1.msra.mxu0 %v545
      %603 = vmatprep.subr.mxu0 0.0
      %604 = vmatpush1.msra.mxu0 %v546
      %605 = vmatprep.subr.mxu0 0.0
      %606 = vmatpush1.msra.mxu0 %v547
      %607 = vmatprep.subr.mxu0 0.0
      %608 = vmatpush1.msra.mxu0 %v548
      %609 = vmatprep.subr.mxu0 0.0
      %610 = vmatpush1.msra.mxu0 %v549
      %611 = vmatprep.subr.mxu0 0.0
      %612 = vmatpush1.msra.mxu0 %v550
      %613 = vmatprep.subr.mxu0 0.0
      %614 = vmatpush1.msra.mxu0 %v551
      %615 = vmatprep.subr.mxu0 0.0
      %616 = vmatpush1.msra.mxu0 %v552
      %617 = vmatprep.subr.mxu0 0.0
      %618 = vmatpush1.msra.mxu0 %v553
      %619 = vmatprep.mubr.f32.mxu0 %v521
      %620 = vmatmul.mubr.f32.gmra.mrb[0].mxu0 %v520
      %v621 = vpop.f32.mrb[0].mxu0
      %v622 = vadd.f32 %v554, %v621
      %v623 = vpop.f32.mrb[0].mxu0
      %624 = vdwg.mxu0
      %v625 = vld [vmem:[%s3] sm:$0x1]
      %v626 = vld [vmem:[%s4] sm:$0x1]
      %vm627 = vcmask 261120
      %v628 = vsel %vm627, %v622, 0.0
      %629 = vadd.xlane.f32.xlu0 %v628
      %v630 = vpop.xlane.xlu0 %629
      %v631 = vrcp.pop 32.0
      %v632 = vmul.f32 %v630, %v631
      %v633 = vsub.f32 %v622, %v632
      %v634 = vmul.f32 %v633, %v633
      %v635 = vsel %vm627, %v634, 0.0
      %636 = vadd.xlane.f32.xlu0 %v635
      %v637 = vpop.xlane.xlu0 %636
      %v638 = vmul.f32 %v637, %v631
      %v639 = vadd.f32 %v638, 1e-05
      %v640 = vrsqrt.pop %v639
      %v641 = vmul.f32 %v633, %v640
      %v643 = vlaneseq
      %v644 = vshrl.u32 %v643, 7
      %v645 = vsub.s32 0, %v644
      %v646 = vrot.slane %v625, %v645
      %v648 = vmul.f32 %v641, %v646
      %v650 = vlaneseq
      %v651 = vshrl.u32 %v650, 7
      %v652 = vsub.s32 0, %v651
      %v653 = vrot.slane %v626, %v652
      %v655 = vadd.f32 %v648, %v653
      %v656 = vld [vmem:[%s5] sm:$0xff]
      %v657 = vld [vmem:[%s5 + $0x8] sm:$0xff]
      %v658 = vld [vmem:[%s5 + $0x10] sm:$0xff]
      %v659 = vld [vmem:[%s5 + $0x18] sm:$0xff]
      %v661 = vsel %vm627, %v655, 0
      %663 = vmatprep.subr.mxu0 0.0
      %664 = vmatpush1.msra.mxu0 %v656
      %665 = vmatprep.subr.mxu0 0.0
      %666 = vmatpush1.msra.mxu0 %v657
      %667 = vmatprep.subr.mxu0 0.0
      %668 = vmatpush1.msra.mxu0 %v658
      %669 = vmatprep.subr.mxu0 0.0
      %670 = vmatpush1.msra.mxu0 %v659
      %671 = vmatprep.subr.mxu0 0.0
      %672 = vmatpush1.msra.mxu0 0.0
      %673 = vmatprep.subr.mxu0 0.0
      %674 = vmatpush1.msra.mxu0 0.0
      %675 = vmatprep.subr.mxu0 0.0
      %676 = vmatpush1.msra.mxu0 0.0
      %677 = vmatprep.subr.mxu0 0.0
      %678 = vmatpush1.msra.mxu0 0.0
      %679 = vmatprep.subr.mxu0 0.0
      %680 = vmatpush1.msra.mxu0 0.0
      %681 = vmatprep.subr.mxu0 0.0
      %682 = vmatpush1.msra.mxu0 0.0
      %683 = vmatprep.subr.mxu0 0.0
      %684 = vmatpush1.msra.mxu0 0.0
      %685 = vmatprep.subr.mxu0 0.0
      %686 = vmatpush1.msra.mxu0 0.0
      %687 = vmatprep.subr.mxu0 0.0
      %688 = vmatpush1.msra.mxu0 0.0
      %689 = vmatprep.subr.mxu0 0.0
      %690 = vmatpush1.msra.mxu0 0.0
      %691 = vmatprep.subr.mxu0 0.0
      %692 = vmatpush1.msra.mxu0 0.0
      %693 = vmatprep.subr.mxu0 0.0
      %694 = vmatpush1.msra.mxu0 0.0
      %695 = vmatprep.subr.mxu0 0.0
      %696 = vmatpush1.msra.mxu0 0.0
      %697 = vmatprep.subr.mxu0 0.0
      %698 = vmatpush1.msra.mxu0 0.0
      %699 = vmatprep.subr.mxu0 0.0
      %700 = vmatpush1.msra.mxu0 0.0
      %701 = vmatprep.subr.mxu0 0.0
      %702 = vmatpush1.msra.mxu0 0.0
      %703 = vmatprep.subr.mxu0 0.0
      %704 = vmatpush1.msra.mxu0 0.0
      %705 = vmatprep.subr.mxu0 0.0
      %706 = vmatpush1.msra.mxu0 0.0
      %707 = vmatprep.subr.mxu0 0.0
      %708 = vmatpush1.msra.mxu0 0.0
      %709 = vmatprep.subr.mxu0 0.0
      %710 = vmatpush1.msra.mxu0 0.0
      %711 = vmatprep.subr.mxu0 0.0
      %712 = vmatpush1.msra.mxu0 0.0
      %713 = vmatprep.subr.mxu0 0.0
      %714 = vmatpush1.msra.mxu0 0.0
      %715 = vmatprep.subr.mxu0 0.0
      %716 = vmatpush1.msra.mxu0 0.0
      %717 = vmatprep.subr.mxu0 0.0
      %718 = vmatpush1.msra.mxu0 0.0
      %719 = vmatprep.subr.mxu0 0.0
      %720 = vmatpush1.msra.mxu0 0.0
      %721 = vmatprep.subr.mxu0 0.0
      %722 = vmatpush1.msra.mxu0 0.0
      %723 = vmatprep.subr.mxu0 0.0
      %724 = vmatpush1.msra.mxu0 0.0
      %725 = vmatprep.subr.mxu0 0.0
      %726 = vmatpush1.msra.mxu0 0.0
      %727 = vmatprep.mubr.f32.mxu0 0.0
      %728 = vmatmul.mubr.f32.gmra.mrb[0].mxu0 %v661
      %v729 = vpop.f32.mrb[0].mxu0
      %v730 = vadd.f32 0.0, %v729
      %v731 = vpop.f32.mrb[0].mxu0
      %732 = vdwg.mxu0
      %v733 = vld [vmem:[%s6] sm:$0xff]
      %v734 = vld [vmem:[%s6 + $0x8] sm:$0xff]
      %v735 = vld [vmem:[%s6 + $0x10] sm:$0xff]
      %v736 = vld [vmem:[%s6 + $0x18] sm:$0xff]
      %v737 = vmul.f32 %v730, 0.35355338
      %739 = vrot.lane.b32.xlu0 %v730, 96
      %v740 = vpop.permute.xlu0 %739
      %vm741 = vcmask 64512
      %v743 = vsel %vm741, %v737, 0
      %v745 = vsel %vm741, %v740, 0
      %747 = vmatprep.subr.mxu0 0.0
      %748 = vmatpush1.xpose.msra.mxu0 %v745
      %749 = vmatprep.subr.mxu0 0.0
      %750 = vmatpush1.xpose.msra.mxu0 0.0
      %751 = vmatprep.subr.mxu0 0.0
      %752 = vmatpush1.xpose.msra.mxu0 0.0
      %753 = vmatprep.subr.mxu0 0.0
      %754 = vmatpush1.xpose.msra.mxu0 0.0
      %755 = vmatprep.subr.mxu0 0.0
      %756 = vmatpush1.xpose.msra.mxu0 0.0
      %757 = vmatprep.subr.mxu0 0.0
      %758 = vmatpush1.xpose.msra.mxu0 0.0
      %759 = vmatprep.subr.mxu0 0.0
      %760 = vmatpush1.xpose.msra.mxu0 0.0
      %761 = vmatprep.subr.mxu0 0.0
      %762 = vmatpush1.xpose.msra.mxu0 0.0
      %763 = vmatprep.subr.mxu0 0.0
      %764 = vmatpush1.xpose.msra.mxu0 0.0
      %765 = vmatprep.subr.mxu0 0.0
      %766 = vmatpush1.xpose.msra.mxu0 0.0
      %767 = vmatprep.subr.mxu0 0.0
      %768 = vmatpush1.xpose.msra.mxu0 0.0
      %769 = vmatprep.subr.mxu0 0.0
      %770 = vmatpush1.xpose.msra.mxu0 0.0
      %771 = vmatprep.subr.mxu0 0.0
      %772 = vmatpush1.xpose.msra.mxu0 0.0
      %773 = vmatprep.subr.mxu0 0.0
      %774 = vmatpush1.xpose.msra.mxu0 0.0
      %775 = vmatprep.subr.mxu0 0.0
      %776 = vmatpush1.xpose.msra.mxu0 0.0
      %777 = vmatprep.subr.mxu0 0.0
      %778 = vmatpush1.xpose.msra.mxu0 0.0
      %779 = vmatprep.subr.mxu0 0.0
      %780 = vmatpush1.xpose.msra.mxu0 0.0
      %781 = vmatprep.subr.mxu0 0.0
      %782 = vmatpush1.xpose.msra.mxu0 0.0
      %783 = vmatprep.subr.mxu0 0.0
      %784 = vmatpush1.xpose.msra.mxu0 0.0
      %785 = vmatprep.subr.mxu0 0.0
      %786 = vmatpush1.xpose.msra.mxu0 0.0
      %787 = vmatprep.subr.mxu0 0.0
      %788 = vmatpush1.xpose.msra.mxu0 0.0
      %789 = vmatprep.subr.mxu0 0.0
      %790 = vmatpush1.xpose.msra.mxu0 0.0
      %791 = vmatprep.subr.mxu0 0.0
      %792 = vmatpush1.xpose.msra.mxu0 0.0
      %793 = vmatprep.subr.mxu0 0.0
      %794 = vmatpush1.xpose.msra.mxu0 0.0
      %795 = vmatprep.subr.mxu0 0.0
      %796 = vmatpush1.xpose.msra.mxu0 0.0
      %797 = vmatprep.subr.mxu0 0.0
      %798 = vmatpush1.xpose.msra.mxu0 0.0
      %799 = vmatprep.subr.mxu0 0.0
      %800 = vmatpush1.xpose.msra.mxu0 0.0
      %801 = vmatprep.subr.mxu0 0.0
      %802 = vmatpush1.xpose.msra.mxu0 0.0
      %803 = vmatprep.subr.mxu0 0.0
      %804 = vmatpush1.xpose.msra.mxu0 0.0
      %805 = vmatprep.subr.mxu0 0.0
      %806 = vmatpush1.xpose.msra.mxu0 0.0
      %807 = vmatprep.subr.mxu0 0.0
      %808 = vmatpush1.xpose.msra.mxu0 0.0
      %809 = vmatprep.subr.mxu0 0.0
      %810 = vmatpush1.xpose.msra.mxu0 0.0
      %811 = vmatprep.mubr.f32.mxu0 0.0
      %812 = vmatmul.mubr.f32.gmra.mrb[0].mxu0 %v743
      %v813 = vpop.f32.mrb[0].mxu0
      %v814 = vadd.f32 0.0, %v813
      %v815 = vpop.f32.mrb[0].mxu0
      %816 = vdwg.mxu0
      %v817 = vsel %vm741, %v814, -inf
      %818 = vmax.xlane.f32.xlu0 %v817
      %v819 = vpop.xlane.xlu0 %818
      %v820 = vsub.f32 %v814, %v819
      %v821 = vmul.f32 %v820, 1.442695
      %v822 = vpow.pop %v821
      %v823 = vsel %vm741, %v822, 0.0
      %824 = vadd.xlane.f32.xlu0 %v823
      %v825 = vpop.xlane.xlu0 %824
      %v826 = vrcp.pop %v825
      %v827 = vmul.f32 %v822, %v826
      %828 = vrot.lane.b32.xlu0 %v730, 64
      %v829 = vpop.permute.xlu0 %828
      %v832 = vsel %vm741, %v827, 0
      %834 = vmatprep.subr.mxu0 0.0
      %835 = vmatpush1.msra.mxu0 %v829
      %836 = vmatprep.subr.mxu0 0.0
      %837 = vmatpush1.msra.mxu0 0.0
      %838 = vmatprep.subr.mxu0 0.0
      %839 = vmatpush1.msra.mxu0 0.0
      %840 = vmatprep.subr.mxu0 0.0
      %841 = vmatpush1.msra.mxu0 0.0
      %842 = vmatprep.subr.mxu0 0.0
      %843 = vmatpush1.msra.mxu0 0.0
      %844 = vmatprep.subr.mxu0 0.0
      %845 = vmatpush1.msra.mxu0 0.0
      %846 = vmatprep.subr.mxu0 0.0
      %847 = vmatpush1.msra.mxu0 0.0
      %848 = vmatprep.subr.mxu0 0.0
      %849 = vmatpush1.msra.mxu0 0.0
      %850 = vmatprep.subr.mxu0 0.0
      %851 = vmatpush1.msra.mxu0 0.0
      %852 = vmatprep.subr.mxu0 0.0
      %853 = vmatpush1.msra.mxu0 0.0
      %854 = vmatprep.subr.mxu0 0.0
      %855 = vmatpush1.msra.mxu0 0.0
      %856 = vmatprep.subr.mxu0 0.0
      %857 = vmatpush1.msra.mxu0 0.0
      %858 = vmatprep.subr.mxu0 0.0
      %859 = vmatpush1.msra.mxu0 0.0
      %860 = vmatprep.subr.mxu0 0.0
      %861 = vmatpush1.msra.mxu0 0.0
      %862 = vmatprep.subr.mxu0 0.0
      %863 = vmatpush1.msra.mxu0 0.0
      %864 = vmatprep.subr.mxu0 0.0
      %865 = vmatpush1.msra.mxu0 0.0
      %866 = vmatprep.subr.mxu0 0.0
      %867 = vmatpush1.msra.mxu0 0.0
      %868 = vmatprep.subr.mxu0 0.0
      %869 = vmatpush1.msra.mxu0 0.0
      %870 = vmatprep.subr.mxu0 0.0
      %871 = vmatpush1.msra.mxu0 0.0
      %872 = vmatprep.subr.mxu0 0.0
      %873 = vmatpush1.msra.mxu0 0.0
      %874 = vmatprep.subr.mxu0 0.0
      %875 = vmatpush1.msra.mxu0 0.0
      %876 = vmatprep.subr.mxu0 0.0
      %877 = vmatpush1.msra.mxu0 0.0
      %878 = vmatprep.subr.mxu0 0.0
      %879 = vmatpush1.msra.mxu0 0.0
      %880 = vmatprep.subr.mxu0 0.0
      %881 = vmatpush1.msra.mxu0 0.0
      %882 = vmatprep.subr.mxu0 0.0
      %883 = vmatpush1.msra.mxu0 0.0
      %884 = vmatprep.subr.mxu0 0.0
      %885 = vmatpush1.msra.mxu0 0.0
      %886 = vmatprep.subr.mxu0 0.0
      %887 = vmatpush1.msra.mxu0 0.0
      %888 = vmatprep.subr.mxu0 0.0
      %889 = vmatpush1.msra.mxu0 0.0
      %890 = vmatprep.subr.mxu0 0.0
      %891 = vmatpush1.msra.mxu0 0.0
      %892 = vmatprep.subr.mxu0 0.0
      %893 = vmatpush1.msra.mxu0 0.0
      %894 = vmatprep.subr.mxu0 0.0
      %895 = vmatpush1.msra.mxu0 0.0
      %896 = vmatprep.subr.mxu0 0.0
      %897 = vmatpush1.msra.mxu0 0.0
      %898 = vmatprep.mubr.f32.mxu0 0.0
      %899 = vmatmul.mubr.f32.gmra.mrb[0].mxu0 %v832
      %v900 = vpop.f32.mrb[0].mxu0
      %v901 = vadd.f32 0.0, %v900
      %v902 = vpop.f32.mrb[0].mxu0
      %903 = vdwg.mxu0
      %904 = vrot.lane.b32.xlu0 %v737, 120
      %v905 = vpop.permute.xlu0 %904
      %906 = vrot.lane.b32.xlu0 %v730, 88
      %v907 = vpop.permute.xlu0 %906
      %v908 = vsel %vm741, %v905, 0
      %v910 = vsel %vm741, %v907, 0
      %912 = vmatprep.subr.mxu0 0.0
      %913 = vmatpush1.xpose.msra.mxu0 %v910
      %914 = vmatprep.subr.mxu0 0.0
      %915 = vmatpush1.xpose.msra.mxu0 0.0
      %916 = vmatprep.subr.mxu0 0.0
      %917 = vmatpush1.xpose.msra.mxu0 0.0
      %918 = vmatprep.subr.mxu0 0.0
      %919 = vmatpush1.xpose.msra.mxu0 0.0
      %920 = vmatprep.subr.mxu0 0.0
      %921 = vmatpush1.xpose.msra.mxu0 0.0
      %922 = vmatprep.subr.mxu0 0.0
      %923 = vmatpush1.xpose.msra.mxu0 0.0
      %924 = vmatprep.subr.mxu0 0.0
      %925 = vmatpush1.xpose.msra.mxu0 0.0
      %926 = vmatprep.subr.mxu0 0.0
      %927 = vmatpush1.xpose.msra.mxu0 0.0
      %928 = vmatprep.subr.mxu0 0.0
      %929 = vmatpush1.xpose.msra.mxu0 0.0
      %930 = vmatprep.subr.mxu0 0.0
      %931 = vmatpush1.xpose.msra.mxu0 0.0
      %932 = vmatprep.subr.mxu0 0.0
      %933 = vmatpush1.xpose.msra.mxu0 0.0
      %934 = vmatprep.subr.mxu0 0.0
      %935 = vmatpush1.xpose.msra.mxu0 0.0
      %936 = vmatprep.subr.mxu0 0.0
      %937 = vmatpush1.xpose.msra.mxu0 0.0
      %938 = vmatprep.subr.mxu0 0.0
      %939 = vmatpush1.xpose.msra.mxu0 0.0
      %940 = vmatprep.subr.mxu0 0.0
      %941 = vmatpush1.xpose.msra.mxu0 0.0
      %942 = vmatprep.subr.mxu0 0.0
      %943 = vmatpush1.xpose.msra.mxu0 0.0
      %944 = vmatprep.subr.mxu0 0.0
      %945 = vmatpush1.xpose.msra.mxu0 0.0
      %946 = vmatprep.subr.mxu0 0.0
      %947 = vmatpush1.xpose.msra.mxu0 0.0
      %948 = vmatprep.subr.mxu0 0.0
      %949 = vmatpush1.xpose.msra.mxu0 0.0
      %950 = vmatprep.subr.mxu0 0.0
      %951 = vmatpush1.xpose.msra.mxu0 0.0
      %952 = vmatprep.subr.mxu0 0.0
      %953 = vmatpush1.xpose.msra.mxu0 0.0
      %954 = vmatprep.subr.mxu0 0.0
      %955 = vmatpush1.xpose.msra.mxu0 0.0
      %956 = vmatprep.subr.mxu0 0.0
      %957 = vmatpush1.xpose.msra.mxu0 0.0
      %958 = vmatprep.subr.mxu0 0.0
      %959 = vmatpush1.xpose.msra.mxu0 0.0
      %960 = vmatprep.subr.mxu0 0.0
      %961 = vmatpush1.xpose.msra.mxu0 0.0
      %962 = vmatprep.subr.mxu0 0.0
      %963 = vmatpush1.xpose.msra.mxu0 0.0
      %964 = vmatprep.subr.mxu0 0.0
      %965 = vmatpush1.xpose.msra.mxu0 0.0
      %966 = vmatprep.subr.mxu0 0.0
      %967 = vmatpush1.xpose.msra.mxu0 0.0
      %968 = vmatprep.subr.mxu0 0.0
      %969 = vmatpush1.xpose.msra.mxu0 0.0
      %970 = vmatprep.subr.mxu0 0.0
      %971 = vmatpush1.xpose.msra.mxu0 0.0
      %972 = vmatprep.subr.mxu0 0.0
      %973 = vmatpush1.xpose.msra.mxu0 0.0
      %974 = vmatprep.subr.mxu0 0.0
      %975 = vmatpush1.xpose.msra.mxu0 0.0
      %976 = vmatprep.mubr.f32.mxu0 0.0
      %977 = vmatmul.mubr.f32.gmra.mrb[0].mxu0 %v908
      %v978 = vpop.f32.mrb[0].mxu0
      %v979 = vadd.f32 0.0, %v978
      %v980 = vpop.f32.mrb[0].mxu0
      %981 = vdwg.mxu0
      %v982 = vsel %vm741, %v979, -inf
      %983 = vmax.xlane.f32.xlu0 %v982
      %v984 = vpop.xlane.xlu0 %983
      %v985 = vsub.f32 %v979, %v984
      %v986 = vmul.f32 %v985, 1.442695
      %v987 = vpow.pop %v986
      %v988 = vsel %vm741, %v987, 0.0
      %989 = vadd.xlane.f32.xlu0 %v988
      %v990 = vpop.xlane.xlu0 %989
      %v991 = vrcp.pop %v990
      %v992 = vmul.f32 %v987, %v991
      %993 = vrot.lane.b32.xlu0 %v730, 56
      %v994 = vpop.permute.xlu0 %993
      %v997 = vsel %vm741, %v992, 0
      %999 = vmatprep.subr.mxu0 0.0
      %1000 = vmatpush1.msra.mxu0 %v994
      %1001 = vmatprep.subr.mxu0 0.0
      %1002 = vmatpush1.msra.mxu0 0.0
      %1003 = vmatprep.subr.mxu0 0.0
      %1004 = vmatpush1.msra.mxu0 0.0
      %1005 = vmatprep.subr.mxu0 0.0
      %1006 = vmatpush1.msra.mxu0 0.0
      %1007 = vmatprep.subr.mxu0 0.0
      %1008 = vmatpush1.msra.mxu0 0.0
      %1009 = vmatprep.subr.mxu0 0.0
      %1010 = vmatpush1.msra.mxu0 0.0
      %1011 = vmatprep.subr.mxu0 0.0
      %1012 = vmatpush1.msra.mxu0 0.0
      %1013 = vmatprep.subr.mxu0 0.0
      %1014 = vmatpush1.msra.mxu0 0.0
      %1015 = vmatprep.subr.mxu0 0.0
      %1016 = vmatpush1.msra.mxu0 0.0
      %1017 = vmatprep.subr.mxu0 0.0
      %1018 = vmatpush1.msra.mxu0 0.0
      %1019 = vmatprep.subr.mxu0 0.0
      %1020 = vmatpush1.msra.mxu0 0.0
      %1021 = vmatprep.subr.mxu0 0.0
      %1022 = vmatpush1.msra.mxu0 0.0
      %1023 = vmatprep.subr.mxu0 0.0
      %1024 = vmatpush1.msra.mxu0 0.0
      %1025 = vmatprep.subr.mxu0 0.0
      %1026 = vmatpush1.msra.mxu0 0.0
      %1027 = vmatprep.subr.mxu0 0.0
      %1028 = vmatpush1.msra.mxu0 0.0
      %1029 = vmatprep.subr.mxu0 0.0
      %1030 = vmatpush1.msra.mxu0 0.0
      %1031 = vmatprep.subr.mxu0 0.0
      %1032 = vmatpush1.msra.mxu0 0.0
      %1033 = vmatprep.subr.mxu0 0.0
      %1034 = vmatpush1.msra.mxu0 0.0
      %1035 = vmatprep.subr.mxu0 0.0
      %1036 = vmatpush1.msra.mxu0 0.0
      %1037 = vmatprep.subr.mxu0 0.0
      %1038 = vmatpush1.msra.mxu0 0.0
      %1039 = vmatprep.subr.mxu0 0.0
      %1040 = vmatpush1.msra.mxu0 0.0
      %1041 = vmatprep.subr.mxu0 0.0
      %1042 = vmatpush1.msra.mxu0 0.0
      %1043 = vmatprep.subr.mxu0 0.0
      %1044 = vmatpush1.msra.mxu0 0.0
      %1045 = vmatprep.subr.mxu0 0.0
      %1046 = vmatpush1.msra.mxu0 0.0
      %1047 = vmatprep.subr.mxu0 0.0
      %1048 = vmatpush1.msra.mxu0 0.0
      %1049 = vmatprep.subr.mxu0 0.0
      %1050 = vmatpush1.msra.mxu0 0.0
      %1051 = vmatprep.subr.mxu0 0.0
      %1052 = vmatpush1.msra.mxu0 0.0
      %1053 = vmatprep.subr.mxu0 0.0
      %1054 = vmatpush1.msra.mxu0 0.0
      %1055 = vmatprep.subr.mxu0 0.0
      %1056 = vmatpush1.msra.mxu0 0.0
      %1057 = vmatprep.subr.mxu0 0.0
      %1058 = vmatpush1.msra.mxu0 0.0
      %1059 = vmatprep.subr.mxu0 0.0
      %1060 = vmatpush1.msra.mxu0 0.0
      %1061 = vmatprep.subr.mxu0 0.0
      %1062 = vmatpush1.msra.mxu0 0.0
      %1063 = vmatprep.mubr.f32.mxu0 0.0
      %1064 = vmatmul.mubr.f32.gmra.mrb[0].mxu0 %v997
      %v1065 = vpop.f32.mrb[0].mxu0
      %v1066 = vadd.f32 0.0, %v1065
      %v1067 = vpop.f32.mrb[0].mxu0
      %1068 = vdwg.mxu0
      %v1070 = vsel %vm741, %v1066, 0
      %1072 = vmatprep.subr.mxu0 0.0
      %1073 = vmatpush1.msra.mxu0 %v734
      %1074 = vmatprep.subr.mxu0 0.0
      %1075 = vmatpush1.msra.mxu0 0.0
      %1076 = vmatprep.subr.mxu0 0.0
      %1077 = vmatpush1.msra.mxu0 0.0
      %1078 = vmatprep.subr.mxu0 0.0
      %1079 = vmatpush1.msra.mxu0 0.0
      %1080 = vmatprep.subr.mxu0 0.0
      %1081 = vmatpush1.msra.mxu0 0.0
      %1082 = vmatprep.subr.mxu0 0.0
      %1083 = vmatpush1.msra.mxu0 0.0
      %1084 = vmatprep.subr.mxu0 0.0
      %1085 = vmatpush1.msra.mxu0 0.0
      %1086 = vmatprep.subr.mxu0 0.0
      %1087 = vmatpush1.msra.mxu0 0.0
      %1088 = vmatprep.subr.mxu0 0.0
      %1089 = vmatpush1.msra.mxu0 0.0
      %1090 = vmatprep.subr.mxu0 0.0
      %1091 = vmatpush1.msra.mxu0 0.0
      %1092 = vmatprep.subr.mxu0 0.0
      %1093 = vmatpush1.msra.mxu0 0.0
      %1094 = vmatprep.subr.mxu0 0.0
      %1095 = vmatpush1.msra.mxu0 0.0
      %1096 = vmatprep.subr.mxu0 0.0
      %1097 = vmatpush1.msra.mxu0 0.0
      %1098 = vmatprep.subr.mxu0 0.0
      %1099 = vmatpush1.msra.mxu0 0.0
      %1100 = vmatprep.subr.mxu0 0.0
      %1101 = vmatpush1.msra.mxu0 0.0
      %1102 = vmatprep.subr.mxu0 0.0
      %1103 = vmatpush1.msra.mxu0 0.0
      %1104 = vmatprep.subr.mxu0 0.0
      %1105 = vmatpush1.msra.mxu0 0.0
      %1106 = vmatprep.subr.mxu0 0.0
      %1107 = vmatpush1.msra.mxu0 0.0
      %1108 = vmatprep.subr.mxu0 0.0
      %1109 = vmatpush1.msra.mxu0 0.0
      %1110 = vmatprep.subr.mxu0 0.0
      %1111 = vmatpush1.msra.mxu0 0.0
      %1112 = vmatprep.subr.mxu0 0.0
      %1113 = vmatpush1.msra.mxu0 0.0
      %1114 = vmatprep.subr.mxu0 0.0
      %1115 = vmatpush1.msra.mxu0 0.0
      %1116 = vmatprep.subr.mxu0 0.0
      %1117 = vmatpush1.msra.mxu0 0.0
      %1118 = vmatprep.subr.mxu0 0.0
      %1119 = vmatpush1.msra.mxu0 0.0
      %1120 = vmatprep.subr.mxu0 0.0
      %1121 = vmatpush1.msra.mxu0 0.0
      %1122 = vmatprep.subr.mxu0 0.0
      %1123 = vmatpush1.msra.mxu0 0.0
      %1124 = vmatprep.subr.mxu0 0.0
      %1125 = vmatpush1.msra.mxu0 0.0
      %1126 = vmatprep.subr.mxu0 0.0
      %1127 = vmatpush1.msra.mxu0 0.0
      %1128 = vmatprep.subr.mxu0 0.0
      %1129 = vmatpush1.msra.mxu0 0.0
      %1130 = vmatprep.subr.mxu0 0.0
      %1131 = vmatpush1.msra.mxu0 0.0
      %1132 = vmatprep.subr.mxu0 0.0
      %1133 = vmatpush1.msra.mxu0 0.0
      %1134 = vmatprep.subr.mxu0 0.0
      %1135 = vmatpush1.msra.mxu0 0.0
      %1136 = vmatprep.mubr.f32.mxu0 0.0
      %1137 = vmatmul.mubr.f32.gmra.mrb[0].mxu0 %v1070
      %v1138 = vpop.f32.mrb[0].mxu0
      %v1139 = vadd.f32 0.0, %v1138
      %v1140 = vpop.f32.mrb[0].mxu0
      %1141 = vdwg.mxu0
      %v1143 = vsel %vm741, %v901, 0
      %1145 = vmatprep.subr.mxu0 0.0
      %1146 = vmatpush1.msra.mxu0 %v733
      %1147 = vmatprep.subr.mxu0 0.0
      %1148 = vmatpush1.msra.mxu0 0.0
      %1149 = vmatprep.subr.mxu0 0.0
      %1150 = vmatpush1.msra.mxu0 0.0
      %1151 = vmatprep.subr.mxu0 0.0
      %1152 = vmatpush1.msra.mxu0 0.0
      %1153 = vmatprep.subr.mxu0 0.0
      %1154 = vmatpush1.msra.mxu0 0.0
      %1155 = vmatprep.subr.mxu0 0.0
      %1156 = vmatpush1.msra.mxu0 0.0
      %1157 = vmatprep.subr.mxu0 0.0
      %1158 = vmatpush1.msra.mxu0 0.0
      %1159 = vmatprep.subr.mxu0 0.0
      %1160 = vmatpush1.msra.mxu0 0.0
      %1161 = vmatprep.subr.mxu0 0.0
      %1162 = vmatpush1.msra.mxu0 0.0
      %1163 = vmatprep.subr.mxu0 0.0
      %1164 = vmatpush1.msra.mxu0 0.0
      %1165 = vmatprep.subr.mxu0 0.0
      %1166 = vmatpush1.msra.mxu0 0.0
      %1167 = vmatprep.subr.mxu0 0.0
      %1168 = vmatpush1.msra.mxu0 0.0
      %1169 = vmatprep.subr.mxu0 0.0
      %1170 = vmatpush1.msra.mxu0 0.0
      %1171 = vmatprep.subr.mxu0 0.0
      %1172 = vmatpush1.msra.mxu0 0.0
      %1173 = vmatprep.subr.mxu0 0.0
      %1174 = vmatpush1.msra.mxu0 0.0
      %1175 = vmatprep.subr.mxu0 0.0
      %1176 = vmatpush1.msra.mxu0 0.0
      %1177 = vmatprep.subr.mxu0 0.0
      %1178 = vmatpush1.msra.mxu0 0.0
      %1179 = vmatprep.subr.mxu0 0.0
      %1180 = vmatpush1.msra.mxu0 0.0
      %1181 = vmatprep.subr.mxu0 0.0
      %1182 = vmatpush1.msra.mxu0 0.0
      %1183 = vmatprep.subr.mxu0 0.0
      %1184 = vmatpush1.msra.mxu0 0.0
      %1185 = vmatprep.subr.mxu0 0.0
      %1186 = vmatpush1.msra.mxu0 0.0
      %1187 = vmatprep.subr.mxu0 0.0
      %1188 = vmatpush1.msra.mxu0 0.0
      %1189 = vmatprep.subr.mxu0 0.0
      %1190 = vmatpush1.msra.mxu0 0.0
      %1191 = vmatprep.subr.mxu0 0.0
      %1192 = vmatpush1.msra.mxu0 0.0
      %1193 = vmatprep.subr.mxu0 0.0
      %1194 = vmatpush1.msra.mxu0 0.0
      %1195 = vmatprep.subr.mxu0 0.0
      %1196 = vmatpush1.msra.mxu0 0.0
      %1197 = vmatprep.subr.mxu0 0.0
      %1198 = vmatpush1.msra.mxu0 0.0
      %1199 = vmatprep.subr.mxu0 0.0
      %1200 = vmatpush1.msra.mxu0 0.0
      %1201 = vmatprep.subr.mxu0 0.0
      %1202 = vmatpush1.msra.mxu0 0.0
      %1203 = vmatprep.subr.mxu0 0.0
      %1204 = vmatpush1.msra.mxu0 0.0
      %1205 = vmatprep.subr.mxu0 0.0
      %1206 = vmatpush1.msra.mxu0 0.0
      %1207 = vmatprep.subr.mxu0 0.0
      %1208 = vmatpush1.msra.mxu0 0.0
      %1209 = vmatprep.mubr.f32.mxu0 0.0
      %1210 = vmatmul.mubr.f32.gmra.mrb[0].mxu0 %v1143
      %v1211 = vpop.f32.mrb[0].mxu0
      %v1212 = vadd.f32 %v1139, %v1211
      %v1213 = vpop.f32.mrb[0].mxu0
      %1214 = vdwg.mxu0
      %1215 = vrot.lane.b32.xlu0 %v737, 112
      %v1216 = vpop.permute.xlu0 %1215
      %1217 = vrot.lane.b32.xlu0 %v730, 80
      %v1218 = vpop.permute.xlu0 %1217
      %v1219 = vsel %vm741, %v1216, 0
      %v1221 = vsel %vm741, %v1218, 0
      %1223 = vmatprep.subr.mxu0 0.0
      %1224 = vmatpush1.xpose.msra.mxu0 %v1221
      %1225 = vmatprep.subr.mxu0 0.0
      %1226 = vmatpush1.xpose.msra.mxu0 0.0
      %1227 = vmatprep.subr.mxu0 0.0
      %1228 = vmatpush1.xpose.msra.mxu0 0.0
      %1229 = vmatprep.subr.mxu0 0.0
      %1230 = vmatpush1.xpose.msra.mxu0 0.0
      %1231 = vmatprep.subr.mxu0 0.0
      %1232 = vmatpush1.xpose.msra.mxu0 0.0
      %1233 = vmatprep.subr.mxu0 0.0
      %1234 = vmatpush1.xpose.msra.mxu0 0.0
      %1235 = vmatprep.subr.mxu0 0.0
      %1236 = vmatpush1.xpose.msra.mxu0 0.0
      %1237 = vmatprep.subr.mxu0 0.0
      %1238 = vmatpush1.xpose.msra.mxu0 0.0
      %1239 = vmatprep.subr.mxu0 0.0
      %1240 = vmatpush1.xpose.msra.mxu0 0.0
      %1241 = vmatprep.subr.mxu0 0.0
      %1242 = vmatpush1.xpose.msra.mxu0 0.0
      %1243 = vmatprep.subr.mxu0 0.0
      %1244 = vmatpush1.xpose.msra.mxu0 0.0
      %1245 = vmatprep.subr.mxu0 0.0
      %1246 = vmatpush1.xpose.msra.mxu0 0.0
      %1247 = vmatprep.subr.mxu0 0.0
      %1248 = vmatpush1.xpose.msra.mxu0 0.0
      %1249 = vmatprep.subr.mxu0 0.0
      %1250 = vmatpush1.xpose.msra.mxu0 0.0
      %1251 = vmatprep.subr.mxu0 0.0
      %1252 = vmatpush1.xpose.msra.mxu0 0.0
      %1253 = vmatprep.subr.mxu0 0.0
      %1254 = vmatpush1.xpose.msra.mxu0 0.0
      %1255 = vmatprep.subr.mxu0 0.0
      %1256 = vmatpush1.xpose.msra.mxu0 0.0
      %1257 = vmatprep.subr.mxu0 0.0
      %1258 = vmatpush1.xpose.msra.mxu0 0.0
      %1259 = vmatprep.subr.mxu0 0.0
      %1260 = vmatpush1.xpose.msra.mxu0 0.0
      %1261 = vmatprep.subr.mxu0 0.0
      %1262 = vmatpush1.xpose.msra.mxu0 0.0
      %1263 = vmatprep.subr.mxu0 0.0
      %1264 = vmatpush1.xpose.msra.mxu0 0.0
      %1265 = vmatprep.subr.mxu0 0.0
      %1266 = vmatpush1.xpose.msra.mxu0 0.0
      %1267 = vmatprep.subr.mxu0 0.0
      %1268 = vmatpush1.xpose.msra.mxu0 0.0
      %1269 = vmatprep.subr.mxu0 0.0
      %1270 = vmatpush1.xpose.msra.mxu0 0.0
      %1271 = vmatprep.subr.mxu0 0.0
      %1272 = vmatpush1.xpose.msra.mxu0 0.0
      %1273 = vmatprep.subr.mxu0 0.0
      %1274 = vmatpush1.xpose.msra.mxu0 0.0
      %1275 = vmatprep.subr.mxu0 0.0
      %1276 = vmatpush1.xpose.msra.mxu0 0.0
      %1277 = vmatprep.subr.mxu0 0.0
      %1278 = vmatpush1.xpose.msra.mxu0 0.0
      %1279 = vmatprep.subr.mxu0 0.0
      %1280 = vmatpush1.xpose.msra.mxu0 0.0
      %1281 = vmatprep.subr.mxu0 0.0
      %1282 = vmatpush1.xpose.msra.mxu0 0.0
      %1283 = vmatprep.subr.mxu0 0.0
      %1284 = vmatpush1.xpose.msra.mxu0 0.0
      %1285 = vmatprep.subr.mxu0 0.0
      %1286 = vmatpush1.xpose.msra.mxu0 0.0
      %1287 = vmatprep.mubr.f32.mxu0 0.0
      %1288 = vmatmul.mubr.f32.gmra.mrb[0].mxu0 %v1219
      %v1289 = vpop.f32.mrb[0].mxu0
      %v1290 = vadd.f32 0.0, %v1289
      %v1291 = vpop.f32.mrb[0].mxu0
      %1292 = vdwg.mxu0
      %v1293 = vsel %vm741, %v1290, -inf
      %1294 = vmax.xlane.f32.xlu0 %v1293
      %v1295 = vpop.xlane.xlu0 %1294
      %v1296 = vsub.f32 %v1290, %v1295
      %v1297 = vmul.f32 %v1296, 1.442695
      %v1298 = vpow.pop %v1297
      %v1299 = vsel %vm741, %v1298, 0.0
      %1300 = vadd.xlane.f32.xlu0 %v1299
      %v1301 = vpop.xlane.xlu0 %1300
      %v1302 = vrcp.pop %v1301
      %v1303 = vmul.f32 %v1298, %v1302
      %1304 = vrot.lane.b32.xlu0 %v730, 48
      %v1305 = vpop.permute.xlu0 %1304
      %v1308 = vsel %vm741, %v1303, 0
      %1310 = vmatprep.subr.mxu0 0.0
      %1311 = vmatpush1.msra.mxu0 %v1305
      %1312 = vmatprep.subr.mxu0 0.0
      %1313 = vmatpush1.msra.mxu0 0.0
      %1314 = vmatprep.subr.mxu0 0.0
      %1315 = vmatpush1.msra.mxu0 0.0
      %1316 = vmatprep.subr.mxu0 0.0
      %1317 = vmatpush1.msra.mxu0 0.0
      %1318 = vmatprep.subr.mxu0 0.0
      %1319 = vmatpush1.msra.mxu0 0.0
      %1320 = vmatprep.subr.mxu0 0.0
      %1321 = vmatpush1.msra.mxu0 0.0
      %1322 = vmatprep.subr.mxu0 0.0
      %1323 = vmatpush1.msra.mxu0 0.0
      %1324 = vmatprep.subr.mxu0 0.0
      %1325 = vmatpush1.msra.mxu0 0.0
      %1326 = vmatprep.subr.mxu0 0.0
      %1327 = vmatpush1.msra.mxu0 0.0
      %1328 = vmatprep.subr.mxu0 0.0
      %1329 = vmatpush1.msra.mxu0 0.0
      %1330 = vmatprep.subr.mxu0 0.0
      %1331 = vmatpush1.msra.mxu0 0.0
      %1332 = vmatprep.subr.mxu0 0.0
      %1333 = vmatpush1.msra.mxu0 0.0
      %1334 = vmatprep.subr.mxu0 0.0
      %1335 = vmatpush1.msra.mxu0 0.0
      %1336 = vmatprep.subr.mxu0 0.0
      %1337 = vmatpush1.msra.mxu0 0.0
      %1338 = vmatprep.subr.mxu0 0.0
      %1339 = vmatpush1.msra.mxu0 0.0
      %1340 = vmatprep.subr.mxu0 0.0
      %1341 = vmatpush1.msra.mxu0 0.0
      %1342 = vmatprep.subr.mxu0 0.0
      %1343 = vmatpush1.msra.mxu0 0.0
      %1344 = vmatprep.subr.mxu0 0.0
      %1345 = vmatpush1.msra.mxu0 0.0
      %1346 = vmatprep.subr.mxu0 0.0
      %1347 = vmatpush1.msra.mxu0 0.0
      %1348 = vmatprep.subr.mxu0 0.0
      %1349 = vmatpush1.msra.mxu0 0.0
      %1350 = vmatprep.subr.mxu0 0.0
      %1351 = vmatpush1.msra.mxu0 0.0
      %1352 = vmatprep.subr.mxu0 0.0
      %1353 = vmatpush1.msra.mxu0 0.0
      %1354 = vmatprep.subr.mxu0 0.0
      %1355 = vmatpush1.msra.mxu0 0.0
      %1356 = vmatprep.subr.mxu0 0.0
      %1357 = vmatpush1.msra.mxu0 0.0
      %1358 = vmatprep.subr.mxu0 0.0
      %1359 = vmatpush1.msra.mxu0 0.0
      %1360 = vmatprep.subr.mxu0 0.0
      %1361 = vmatpush1.msra.mxu0 0.0
      %1362 = vmatprep.subr.mxu0 0.0
      %1363 = vmatpush1.msra.mxu0 0.0
      %1364 = vmatprep.subr.mxu0 0.0
      %1365 = vmatpush1.msra.mxu0 0.0
      %1366 = vmatprep.subr.mxu0 0.0
      %1367 = vmatpush1.msra.mxu0 0.0
      %1368 = vmatprep.subr.mxu0 0.0
      %1369 = vmatpush1.msra.mxu0 0.0
      %1370 = vmatprep.subr.mxu0 0.0
      %1371 = vmatpush1.msra.mxu0 0.0
      %1372 = vmatprep.subr.mxu0 0.0
      %1373 = vmatpush1.msra.mxu0 0.0
      %1374 = vmatprep.mubr.f32.mxu0 0.0
      %1375 = vmatmul.mubr.f32.gmra.mrb[0].mxu0 %v1308
      %v1376 = vpop.f32.mrb[0].mxu0
      %v1377 = vadd.f32 0.0, %v1376
      %v1378 = vpop.f32.mrb[0].mxu0
      %1379 = vdwg.mxu0
      %v1381 = vsel %vm741, %v1377, 0
      %1383 = vmatprep.subr.mxu0 0.0
      %1384 = vmatpush1.msra.mxu0 %v735
      %1385 = vmatprep.subr.mxu0 0.0
      %1386 = vmatpush1.msra.mxu0 0.0
      %1387 = vmatprep.subr.mxu0 0.0
      %1388 = vmatpush1.msra.mxu0 0.0
      %1389 = vmatprep.subr.mxu0 0.0
      %1390 = vmatpush1.msra.mxu0 0.0
      %1391 = vmatprep.subr.mxu0 0.0
      %1392 = vmatpush1.msra.mxu0 0.0
      %1393 = vmatprep.subr.mxu0 0.0
      %1394 = vmatpush1.msra.mxu0 0.0
      %1395 = vmatprep.subr.mxu0 0.0
      %1396 = vmatpush1.msra.mxu0 0.0
      %1397 = vmatprep.subr.mxu0 0.0
      %1398 = vmatpush1.msra.mxu0 0.0
      %1399 = vmatprep.subr.mxu0 0.0
      %1400 = vmatpush1.msra.mxu0 0.0
      %1401 = vmatprep.subr.mxu0 0.0
      %1402 = vmatpush1.msra.mxu0 0.0
      %1403 = vmatprep.subr.mxu0 0.0
      %1404 = vmatpush1.msra.mxu0 0.0
      %1405 = vmatprep.subr.mxu0 0.0
      %1406 = vmatpush1.msra.mxu0 0.0
      %1407 = vmatprep.subr.mxu0 0.0
      %1408 = vmatpush1.msra.mxu0 0.0
      %1409 = vmatprep.subr.mxu0 0.0
      %1410 = vmatpush1.msra.mxu0 0.0
      %1411 = vmatprep.subr.mxu0 0.0
      %1412 = vmatpush1.msra.mxu0 0.0
      %1413 = vmatprep.subr.mxu0 0.0
      %1414 = vmatpush1.msra.mxu0 0.0
      %1415 = vmatprep.subr.mxu0 0.0
      %1416 = vmatpush1.msra.mxu0 0.0
      %1417 = vmatprep.subr.mxu0 0.0
      %1418 = vmatpush1.msra.mxu0 0.0
      %1419 = vmatprep.subr.mxu0 0.0
      %1420 = vmatpush1.msra.mxu0 0.0
      %1421 = vmatprep.subr.mxu0 0.0
      %1422 = vmatpush1.msra.mxu0 0.0
      %1423 = vmatprep.subr.mxu0 0.0
      %1424 = vmatpush1.msra.mxu0 0.0
      %1425 = vmatprep.subr.mxu0 0.0
      %1426 = vmatpush1.msra.mxu0 0.0
      %1427 = vmatprep.subr.mxu0 0.0
      %1428 = vmatpush1.msra.mxu0 0.0
      %1429 = vmatprep.subr.mxu0 0.0
      %1430 = vmatpush1.msra.mxu0 0.0
      %1431 = vmatprep.subr.mxu0 0.0
      %1432 = vmatpush1.msra.mxu0 0.0
      %1433 = vmatprep.subr.mxu0 0.0
      %1434 = vmatpush1.msra.mxu0 0.0
      %1435 = vmatprep.subr.mxu0 0.0
      %1436 = vmatpush1.msra.mxu0 0.0
      %1437 = vmatprep.subr.mxu0 0.0
      %1438 = vmatpush1.msra.mxu0 0.0
      %1439 = vmatprep.subr.mxu0 0.0
      %1440 = vmatpush1.msra.mxu0 0.0
      %1441 = vmatprep.subr.mxu0 0.0
      %1442 = vmatpush1.msra.mxu0 0.0
      %1443 = vmatprep.subr.mxu0 0.0
      %1444 = vmatpush1.msra.mxu0 0.0
      %1445 = vmatprep.subr.mxu0 0.0
      %1446 = vmatpush1.msra.mxu0 0.0
      %1447 = vmatprep.mubr.f32.mxu0 0.0
      %1448 = vmatmul.mubr.f32.gmra.mrb[0].mxu0 %v1381
      %v1449 = vpop.f32.mrb[0].mxu0
      %v1450 = vadd.f32 0.0, %v1449
      %v1451 = vpop.f32.mrb[0].mxu0
      %1452 = vdwg.mxu0
      %v1453 = vadd.f32 %v1212, %v1450
      %1454 = vrot.lane.b32.xlu0 %v737, 104
      %v1455 = vpop.permute.xlu0 %1454
      %1456 = vrot.lane.b32.xlu0 %v730, 72
      %v1457 = vpop.permute.xlu0 %1456
      %v1458 = vsel %vm741, %v1455, 0
      %v1460 = vsel %vm741, %v1457, 0
      %1462 = vmatprep.subr.mxu0 0.0
      %1463 = vmatpush1.xpose.msra.mxu0 %v1460
      %1464 = vmatprep.subr.mxu0 0.0
      %1465 = vmatpush1.xpose.msra.mxu0 0.0
      %1466 = vmatprep.subr.mxu0 0.0
      %1467 = vmatpush1.xpose.msra.mxu0 0.0
      %1468 = vmatprep.subr.mxu0 0.0
      %1469 = vmatpush1.xpose.msra.mxu0 0.0
      %1470 = vmatprep.subr.mxu0 0.0
      %1471 = vmatpush1.xpose.msra.mxu0 0.0
      %1472 = vmatprep.subr.mxu0 0.0
      %1473 = vmatpush1.xpose.msra.mxu0 0.0
      %1474 = vmatprep.subr.mxu0 0.0
      %1475 = vmatpush1.xpose.msra.mxu0 0.0
      %1476 = vmatprep.subr.mxu0 0.0
      %1477 = vmatpush1.xpose.msra.mxu0 0.0
      %1478 = vmatprep.subr.mxu0 0.0
      %1479 = vmatpush1.xpose.msra.mxu0 0.0
      %1480 = vmatprep.subr.mxu0 0.0
      %1481 = vmatpush1.xpose.msra.mxu0 0.0
      %1482 = vmatprep.subr.mxu0 0.0
      %1483 = vmatpush1.xpose.msra.mxu0 0.0
      %1484 = vmatprep.subr.mxu0 0.0
      %1485 = vmatpush1.xpose.msra.mxu0 0.0
      %1486 = vmatprep.subr.mxu0 0.0
      %1487 = vmatpush1.xpose.msra.mxu0 0.0
      %1488 = vmatprep.subr.mxu0 0.0
      %1489 = vmatpush1.xpose.msra.mxu0 0.0
      %1490 = vmatprep.subr.mxu0 0.0
      %1491 = vmatpush1.xpose.msra.mxu0 0.0
      %1492 = vmatprep.subr.mxu0 0.0
      %1493 = vmatpush1.xpose.msra.mxu0 0.0
      %1494 = vmatprep.subr.mxu0 0.0
      %1495 = vmatpush1.xpose.msra.mxu0 0.0
      %1496 = vmatprep.subr.mxu0 0.0
      %1497 = vmatpush1.xpose.msra.mxu0 0.0
      %1498 = vmatprep.subr.mxu0 0.0
      %1499 = vmatpush1.xpose.msra.mxu0 0.0
      %1500 = vmatprep.subr.mxu0 0.0
      %1501 = vmatpush1.xpose.msra.mxu0 0.0
      %1502 = vmatprep.subr.mxu0 0.0
      %1503 = vmatpush1.xpose.msra.mxu0 0.0
      %1504 = vmatprep.subr.mxu0 0.0
      %1505 = vmatpush1.xpose.msra.mxu0 0.0
      %1506 = vmatprep.subr.mxu0 0.0
      %1507 = vmatpush1.xpose.msra.mxu0 0.0
      %1508 = vmatprep.subr.mxu0 0.0
      %1509 = vmatpush1.xpose.msra.mxu0 0.0
      %1510 = vmatprep.subr.mxu0 0.0
      %1511 = vmatpush1.xpose.msra.mxu0 0.0
      %1512 = vmatprep.subr.mxu0 0.0
      %1513 = vmatpush1.xpose.msra.mxu0 0.0
      %1514 = vmatprep.subr.mxu0 0.0
      %1515 = vmatpush1.xpose.msra.mxu0 0.0
      %1516 = vmatprep.subr.mxu0 0.0
      %1517 = vmatpush1.xpose.msra.mxu0 0.0
      %1518 = vmatprep.subr.mxu0 0.0
      %1519 = vmatpush1.xpose.msra.mxu0 0.0
      %1520 = vmatprep.subr.mxu0 0.0
      %1521 = vmatpush1.xpose.msra.mxu0 0.0
      %1522 = vmatprep.subr.mxu0 0.0
      %1523 = vmatpush1.xpose.msra.mxu0 0.0
      %1524 = vmatprep.subr.mxu0 0.0
      %1525 = vmatpush1.xpose.msra.mxu0 0.0
      %1526 = vmatprep.mubr.f32.mxu0 0.0
      %1527 = vmatmul.mubr.f32.gmra.mrb[0].mxu0 %v1458
      %v1528 = vpop.f32.mrb[0].mxu0
      %v1529 = vadd.f32 0.0, %v1528
      %v1530 = vpop.f32.mrb[0].mxu0
      %1531 = vdwg.mxu0
      %v1532 = vsel %vm741, %v1529, -inf
      %1533 = vmax.xlane.f32.xlu0 %v1532
      %v1534 = vpop.xlane.xlu0 %1533
      %v1535 = vsub.f32 %v1529, %v1534
      %v1536 = vmul.f32 %v1535, 1.442695
      %v1537 = vpow.pop %v1536
      %v1538 = vsel %vm741, %v1537, 0.0
      %1539 = vadd.xlane.f32.xlu0 %v1538
      %v1540 = vpop.xlane.xlu0 %1539
      %v1541 = vrcp.pop %v1540
      %v1542 = vmul.f32 %v1537, %v1541
      %1543 = vrot.lane.b32.xlu0 %v730, 40
      %v1544 = vpop.permute.xlu0 %1543
      %v1547 = vsel %vm741, %v1542, 0
      %1549 = vmatprep.subr.mxu0 0.0
      %1550 = vmatpush1.msra.mxu0 %v1544
      %1551 = vmatprep.subr.mxu0 0.0
      %1552 = vmatpush1.msra.mxu0 0.0
      %1553 = vmatprep.subr.mxu0 0.0
      %1554 = vmatpush1.msra.mxu0 0.0
      %1555 = vmatprep.subr.mxu0 0.0
      %1556 = vmatpush1.msra.mxu0 0.0
      %1557 = vmatprep.subr.mxu0 0.0
      %1558 = vmatpush1.msra.mxu0 0.0
      %1559 = vmatprep.subr.mxu0 0.0
      %1560 = vmatpush1.msra.mxu0 0.0
      %1561 = vmatprep.subr.mxu0 0.0
      %1562 = vmatpush1.msra.mxu0 0.0
      %1563 = vmatprep.subr.mxu0 0.0
      %1564 = vmatpush1.msra.mxu0 0.0
      %1565 = vmatprep.subr.mxu0 0.0
      %1566 = vmatpush1.msra.mxu0 0.0
      %1567 = vmatprep.subr.mxu0 0.0
      %1568 = vmatpush1.msra.mxu0 0.0
      %1569 = vmatprep.subr.mxu0 0.0
      %1570 = vmatpush1.msra.mxu0 0.0
      %1571 = vmatprep.subr.mxu0 0.0
      %1572 = vmatpush1.msra.mxu0 0.0
      %1573 = vmatprep.subr.mxu0 0.0
      %1574 = vmatpush1.msra.mxu0 0.0
      %1575 = vmatprep.subr.mxu0 0.0
      %1576 = vmatpush1.msra.mxu0 0.0
      %1577 = vmatprep.subr.mxu0 0.0
      %1578 = vmatpush1.msra.mxu0 0.0
      %1579 = vmatprep.subr.mxu0 0.0
      %1580 = vmatpush1.msra.mxu0 0.0
      %1581 = vmatprep.subr.mxu0 0.0
      %1582 = vmatpush1.msra.mxu0 0.0
      %1583 = vmatprep.subr.mxu0 0.0
      %1584 = vmatpush1.msra.mxu0 0.0
      %1585 = vmatprep.subr.mxu0 0.0
      %1586 = vmatpush1.msra.mxu0 0.0
      %1587 = vmatprep.subr.mxu0 0.0
      %1588 = vmatpush1.msra.mxu0 0.0
      %1589 = vmatprep.subr.mxu0 0.0
      %1590 = vmatpush1.msra.mxu0 0.0
      %1591 = vmatprep.subr.mxu0 0.0
      %1592 = vmatpush1.msra.mxu0 0.0
      %1593 = vmatprep.subr.mxu0 0.0
      %1594 = vmatpush1.msra.mxu0 0.0
      %1595 = vmatprep.subr.mxu0 0.0
      %1596 = vmatpush1.msra.mxu0 0.0
      %1597 = vmatprep.subr.mxu0 0.0
      %1598 = vmatpush1.msra.mxu0 0.0
      %1599 = vmatprep.subr.mxu0 0.0
      %1600 = vmatpush1.msra.mxu0 0.0
      %1601 = vmatprep.subr.mxu0 0.0
      %1602 = vmatpush1.msra.mxu0 0.0
      %1603 = vmatprep.subr.mxu0 0.0
      %1604 = vmatpush1.msra.mxu0 0.0
      %1605 = vmatprep.subr.mxu0 0.0
      %1606 = vmatpush1.msra.mxu0 0.0
      %1607 = vmatprep.subr.mxu0 0.0
      %1608 = vmatpush1.msra.mxu0 0.0
      %1609 = vmatprep.subr.mxu0 0.0
      %1610 = vmatpush1.msra.mxu0 0.0
      %1611 = vmatprep.subr.mxu0 0.0
      %1612 = vmatpush1.msra.mxu0 0.0
      %1613 = vmatprep.mubr.f32.mxu0 0.0
      %1614 = vmatmul.mubr.f32.gmra.mrb[0].mxu0 %v1547
      %v1615 = vpop.f32.mrb[0].mxu0
      %v1616 = vadd.f32 0.0, %v1615
      %v1617 = vpop.f32.mrb[0].mxu0
      %1618 = vdwg.mxu0
      %v1620 = vsel %vm741, %v1616, 0
      %1622 = vmatprep.subr.mxu0 0.0
      %1623 = vmatpush1.msra.mxu0 %v736
      %1624 = vmatprep.subr.mxu0 0.0
      %1625 = vmatpush1.msra.mxu0 0.0
      %1626 = vmatprep.subr.mxu0 0.0
      %1627 = vmatpush1.msra.mxu0 0.0
      %1628 = vmatprep.subr.mxu0 0.0
      %1629 = vmatpush1.msra.mxu0 0.0
      %1630 = vmatprep.subr.mxu0 0.0
      %1631 = vmatpush1.msra.mxu0 0.0
      %1632 = vmatprep.subr.mxu0 0.0
      %1633 = vmatpush1.msra.mxu0 0.0
      %1634 = vmatprep.subr.mxu0 0.0
      %1635 = vmatpush1.msra.mxu0 0.0
      %1636 = vmatprep.subr.mxu0 0.0
      %1637 = vmatpush1.msra.mxu0 0.0
      %1638 = vmatprep.subr.mxu0 0.0
      %1639 = vmatpush1.msra.mxu0 0.0
      %1640 = vmatprep.subr.mxu0 0.0
      %1641 = vmatpush1.msra.mxu0 0.0
      %1642 = vmatprep.subr.mxu0 0.0
      %1643 = vmatpush1.msra.mxu0 0.0
      %1644 = vmatprep.subr.mxu0 0.0
      %1645 = vmatpush1.msra.mxu0 0.0
      %1646 = vmatprep.subr.mxu0 0.0
      %1647 = vmatpush1.msra.mxu0 0.0
      %1648 = vmatprep.subr.mxu0 0.0
      %1649 = vmatpush1.msra.mxu0 0.0
      %1650 = vmatprep.subr.mxu0 0.0
      %1651 = vmatpush1.msra.mxu0 0.0
      %1652 = vmatprep.subr.mxu0 0.0
      %1653 = vmatpush1.msra.mxu0 0.0
      %1654 = vmatprep.subr.mxu0 0.0
      %1655 = vmatpush1.msra.mxu0 0.0
      %1656 = vmatprep.subr.mxu0 0.0
      %1657 = vmatpush1.msra.mxu0 0.0
      %1658 = vmatprep.subr.mxu0 0.0
      %1659 = vmatpush1.msra.mxu0 0.0
      %1660 = vmatprep.subr.mxu0 0.0
      %1661 = vmatpush1.msra.mxu0 0.0
      %1662 = vmatprep.subr.mxu0 0.0
      %1663 = vmatpush1.msra.mxu0 0.0
      %1664 = vmatprep.subr.mxu0 0.0
      %1665 = vmatpush1.msra.mxu0 0.0
      %1666 = vmatprep.subr.mxu0 0.0
      %1667 = vmatpush1.msra.mxu0 0.0
      %1668 = vmatprep.subr.mxu0 0.0
      %1669 = vmatpush1.msra.mxu0 0.0
      %1670 = vmatprep.subr.mxu0 0.0
      %1671 = vmatpush1.msra.mxu0 0.0
      %1672 = vmatprep.subr.mxu0 0.0
      %1673 = vmatpush1.msra.mxu0 0.0
      %1674 = vmatprep.subr.mxu0 0.0
      %1675 = vmatpush1.msra.mxu0 0.0
      %1676 = vmatprep.subr.mxu0 0.0
      %1677 = vmatpush1.msra.mxu0 0.0
      %1678 = vmatprep.subr.mxu0 0.0
      %1679 = vmatpush1.msra.mxu0 0.0
      %1680 = vmatprep.subr.mxu0 0.0
      %1681 = vmatpush1.msra.mxu0 0.0
      %1682 = vmatprep.subr.mxu0 0.0
      %1683 = vmatpush1.msra.mxu0 0.0
      %1684 = vmatprep.subr.mxu0 0.0
      %1685 = vmatpush1.msra.mxu0 0.0
      %1686 = vmatprep.mubr.f32.mxu0 0.0
      %1687 = vmatmul.mubr.f32.gmra.mrb[0].mxu0 %v1620
      %v1688 = vpop.f32.mrb[0].mxu0
      %v1689 = vadd.f32 0.0, %v1688
      %v1690 = vpop.f32.mrb[0].mxu0
      %1691 = vdwg.mxu0
      %v1692 = vadd.f32 %v1453, %v1689
      %v1693 = vadd.f32 %v622, %v1692
      %v1694 = vld [vmem:[%s7] sm:$0x1]
      %v1696 = vlaneseq
      %v1697 = vshrl.u32 %v1696, 7
      %v1698 = vsub.s32 0, %v1697
      %v1699 = vrot.slane %v1694, %v1698
      %v1701 = vadd.f32 %v1693, %v1699
      %v1702 = vld [vmem:[%s8] sm:$0x1]
      %v1703 = vld [vmem:[%s9] sm:$0x1]
      %v1704 = vsel %vm627, %v1701, 0.0
      %1705 = vadd.xlane.f32.xlu0 %v1704
      %v1706 = vpop.xlane.xlu0 %1705
      %v1707 = vmul.f32 %v1706, %v631
      %v1708 = vsub.f32 %v1701, %v1707
      %v1709 = vmul.f32 %v1708, %v1708
      %v1710 = vsel %vm627, %v1709, 0.0
      %1711 = vadd.xlane.f32.xlu0 %v1710
      %v1712 = vpop.xlane.xlu0 %1711
      %v1713 = vmul.f32 %v1712, %v631
      %v1714 = vadd.f32 %v1713, 1e-05
      %v1715 = vrsqrt.pop %v1714
      %v1716 = vmul.f32 %v1708, %v1715
      %v1718 = vlaneseq
      %v1719 = vshrl.u32 %v1718, 7
      %v1720 = vsub.s32 0, %v1719
      %v1721 = vrot.slane %v1702, %v1720
      %v1723 = vmul.f32 %v1716, %v1721
      %v1725 = vlaneseq
      %v1726 = vshrl.u32 %v1725, 7
      %v1727 = vsub.s32 0, %v1726
      %v1728 = vrot.slane %v1703, %v1727
      %v1730 = vadd.f32 %v1723, %v1728
      %v1731 = vld [vmem:[%s10] sm:$0xff]
      %v1732 = vld [vmem:[%s10 + $0x8] sm:$0xff]
      %v1733 = vld [vmem:[%s10 + $0x10] sm:$0xff]
      %v1734 = vld [vmem:[%s10 + $0x18] sm:$0xff]
      %v1735 = vld [vmem:[%s11] sm:$0x1]
      %v1737 = vlaneseq
      %v1738 = vshrl.u32 %v1737, 7
      %v1739 = vsub.s32 0, %v1738
      %v1740 = vrot.slane %v1735, %v1739
      %v1743 = vsel %vm627, %v1730, 0
      %1745 = vmatprep.subr.mxu0 0.0
      %1746 = vmatpush1.msra.mxu0 %v1731
      %1747 = vmatprep.subr.mxu0 0.0
      %1748 = vmatpush1.msra.mxu0 %v1732
      %1749 = vmatprep.subr.mxu0 0.0
      %1750 = vmatpush1.msra.mxu0 %v1733
      %1751 = vmatprep.subr.mxu0 0.0
      %1752 = vmatpush1.msra.mxu0 %v1734
      %1753 = vmatprep.subr.mxu0 0.0
      %1754 = vmatpush1.msra.mxu0 0.0
      %1755 = vmatprep.subr.mxu0 0.0
      %1756 = vmatpush1.msra.mxu0 0.0
      %1757 = vmatprep.subr.mxu0 0.0
      %1758 = vmatpush1.msra.mxu0 0.0
      %1759 = vmatprep.subr.mxu0 0.0
      %1760 = vmatpush1.msra.mxu0 0.0
      %1761 = vmatprep.subr.mxu0 0.0
      %1762 = vmatpush1.msra.mxu0 0.0
      %1763 = vmatprep.subr.mxu0 0.0
      %1764 = vmatpush1.msra.mxu0 0.0
      %1765 = vmatprep.subr.mxu0 0.0
      %1766 = vmatpush1.msra.mxu0 0.0
      %1767 = vmatprep.subr.mxu0 0.0
      %1768 = vmatpush1.msra.mxu0 0.0
      %1769 = vmatprep.subr.mxu0 0.0
      %1770 = vmatpush1.msra.mxu0 0.0
      %1771 = vmatprep.subr.mxu0 0.0
      %1772 = vmatpush1.msra.mxu0 0.0
      %1773 = vmatprep.subr.mxu0 0.0
      %1774 = vmatpush1.msra.mxu0 0.0
      %1775 = vmatprep.subr.mxu0 0.0
      %1776 = vmatpush1.msra.mxu0 0.0
      %1777 = vmatprep.subr.mxu0 0.0
      %1778 = vmatpush1.msra.mxu0 0.0
      %1779 = vmatprep.subr.mxu0 0.0
      %1780 = vmatpush1.msra.mxu0 0.0
      %1781 = vmatprep.subr.mxu0 0.0
      %1782 = vmatpush1.msra.mxu0 0.0
      %1783 = vmatprep.subr.mxu0 0.0
      %1784 = vmatpush1.msra.mxu0 0.0
      %1785 = vmatprep.subr.mxu0 0.0
      %1786 = vmatpush1.msra.mxu0 0.0
      %1787 = vmatprep.subr.mxu0 0.0
      %1788 = vmatpush1.msra.mxu0 0.0
      %1789 = vmatprep.subr.mxu0 0.0
      %1790 = vmatpush1.msra.mxu0 0.0
      %1791 = vmatprep.subr.mxu0 0.0
      %1792 = vmatpush1.msra.mxu0 0.0
      %1793 = vmatprep.subr.mxu0 0.0
      %1794 = vmatpush1.msra.mxu0 0.0
      %1795 = vmatprep.subr.mxu0 0.0
      %1796 = vmatpush1.msra.mxu0 0.0
      %1797 = vmatprep.subr.mxu0 0.0
      %1798 = vmatpush1.msra.mxu0 0.0
      %1799 = vmatprep.subr.mxu0 0.0
      %1800 = vmatpush1.msra.mxu0 0.0
      %1801 = vmatprep.subr.mxu0 0.0
      %1802 = vmatpush1.msra.mxu0 0.0
      %1803 = vmatprep.subr.mxu0 0.0
      %1804 = vmatpush1.msra.mxu0 0.0
      %1805 = vmatprep.subr.mxu0 0.0
      %1806 = vmatpush1.msra.mxu0 0.0
      %1807 = vmatprep.subr.mxu0 0.0
      %1808 = vmatpush1.msra.mxu0 0.0
      %1809 = vmatprep.mubr.f32.mxu0 0.0
      %1810 = vmatmul.mubr.f32.gmra.mrb[0].mxu0 %v1743
      %v1811 = vpop.f32.mrb[0].mxu0
      %v1812 = vadd.f32 %v1740, %v1811
      %v1813 = vpop.f32.mrb[0].mxu0
      %1814 = vdwg.mxu0
      %v1815 = vmul.f32 %v1812, 0.5
      %v1816 = vmul.f32 %v1812, 0.70710677
      %v1817 = verf.f32.pop %v1816
      %v1818 = vadd.f32 %v1817, 1.0
      %v1819 = vmul.f32 %v1815, %v1818
      %v1820 = vld [vmem:[%s12] sm:$0xff]
      %v1821 = vld [vmem:[%s12 + $0x8] sm:$0xff]
      %v1822 = vld [vmem:[%s12 + $0x10] sm:$0xff]
      %v1823 = vld [vmem:[%s12 + $0x18] sm:$0xff]
      %v1824 = vld [vmem:[%s12 + $0x20] sm:$0xff]
      %v1825 = vld [vmem:[%s12 + $0x28] sm:$0xff]
      %v1826 = vld [vmem:[%s12 + $0x30] sm:$0xff]
      %v1827 = vld [vmem:[%s12 + $0x38] sm:$0xff]
      %v1828 = vld [vmem:[%s12 + $0x40] sm:$0xff]
      %v1829 = vld [vmem:[%s12 + $0x48] sm:$0xff]
      %v1830 = vld [vmem:[%s12 + $0x50] sm:$0xff]
      %v1831 = vld [vmem:[%s12 + $0x58] sm:$0xff]
      %v1832 = vld [vmem:[%s12 + $0x60] sm:$0xff]
      %v1833 = vld [vmem:[%s12 + $0x68] sm:$0xff]
      %v1834 = vld [vmem:[%s12 + $0x70] sm:$0xff]
      %v1835 = vld [vmem:[%s12 + $0x78] sm:$0xff]
      %1836 = vmatprep.subr.mxu0 0.0
      %1837 = vmatpush1.msra.mxu0 %v1820
      %1838 = vmatprep.subr.mxu0 0.0
      %1839 = vmatpush1.msra.mxu0 %v1821
      %1840 = vmatprep.subr.mxu0 0.0
      %1841 = vmatpush1.msra.mxu0 %v1822
      %1842 = vmatprep.subr.mxu0 0.0
      %1843 = vmatpush1.msra.mxu0 %v1823
      %1844 = vmatprep.subr.mxu0 0.0
      %1845 = vmatpush1.msra.mxu0 %v1824
      %1846 = vmatprep.subr.mxu0 0.0
      %1847 = vmatpush1.msra.mxu0 %v1825
      %1848 = vmatprep.subr.mxu0 0.0
      %1849 = vmatpush1.msra.mxu0 %v1826
      %1850 = vmatprep.subr.mxu0 0.0
      %1851 = vmatpush1.msra.mxu0 %v1827
      %1852 = vmatprep.subr.mxu0 0.0
      %1853 = vmatpush1.msra.mxu0 %v1828
      %1854 = vmatprep.subr.mxu0 0.0
      %1855 = vmatpush1.msra.mxu0 %v1829
      %1856 = vmatprep.subr.mxu0 0.0
      %1857 = vmatpush1.msra.mxu0 %v1830
      %1858 = vmatprep.subr.mxu0 0.0
      %1859 = vmatpush1.msra.mxu0 %v1831
      %1860 = vmatprep.subr.mxu0 0.0
      %1861 = vmatpush1.msra.mxu0 %v1832
      %1862 = vmatprep.subr.mxu0 0.0
      %1863 = vmatpush1.msra.mxu0 %v1833
      %1864 = vmatprep.subr.mxu0 0.0
      %1865 = vmatpush1.msra.mxu0 %v1834
      %1866 = vmatprep.subr.mxu0 0.0
      %1867 = vmatpush1.msra.mxu0 %v1835
      %1868 = vmatprep.subr.mxu0 0.0
      %1869 = vmatpush1.msra.mxu0 0.0
      %1870 = vmatprep.subr.mxu0 0.0
      %1871 = vmatpush1.msra.mxu0 0.0
      %1872 = vmatprep.subr.mxu0 0.0
      %1873 = vmatpush1.msra.mxu0 0.0
      %1874 = vmatprep.subr.mxu0 0.0
      %1875 = vmatpush1.msra.mxu0 0.0
      %1876 = vmatprep.subr.mxu0 0.0
      %1877 = vmatpush1.msra.mxu0 0.0
      %1878 = vmatprep.subr.mxu0 0.0
      %1879 = vmatpush1.msra.mxu0 0.0
      %1880 = vmatprep.subr.mxu0 0.0
      %1881 = vmatpush1.msra.mxu0 0.0
      %1882 = vmatprep.subr.mxu0 0.0
      %1883 = vmatpush1.msra.mxu0 0.0
      %1884 = vmatprep.subr.mxu0 0.0
      %1885 = vmatpush1.msra.mxu0 0.0
      %1886 = vmatprep.subr.mxu0 0.0
      %1887 = vmatpush1.msra.mxu0 0.0
      %1888 = vmatprep.subr.mxu0 0.0
      %1889 = vmatpush1.msra.mxu0 0.0
      %1890 = vmatprep.subr.mxu0 0.0
      %1891 = vmatpush1.msra.mxu0 0.0
      %1892 = vmatprep.subr.mxu0 0.0
      %1893 = vmatpush1.msra.mxu0 0.0
      %1894 = vmatprep.subr.mxu0 0.0
      %1895 = vmatpush1.msra.mxu0 0.0
      %1896 = vmatprep.subr.mxu0 0.0
      %1897 = vmatpush1.msra.mxu0 0.0
      %1898 = vmatprep.subr.mxu0 0.0
      %1899 = vmatpush1.msra.mxu0 0.0
      %1900 = vmatprep.mubr.f32.mxu0 0.0
      %1901 = vmatmul.mubr.f32.gmra.mrb[0].mxu0 %v1819
      %v1902 = vpop.f32.mrb[0].mxu0
      %v1903 = vadd.f32 0.0, %v1902
      %v1904 = vpop.f32.mrb[0].mxu0
      %1905 = vdwg.mxu0
      %v1906 = vadd.f32 %v1701, %v1903
      %v1907 = vld [vmem:[%s13] sm:$0x1]
      %v1909 = vlaneseq
      %v1910 = vshrl.u32 %v1909, 7
      %v1911 = vsub.s32 0, %v1910
      %v1912 = vrot.slane %v1907, %v1911
      %v1914 = vadd.f32 %v1906, %v1912
      %s1915 = scalar_lea.vmem %s3, 1
      %v1916 = vld [vmem:[%s1915] sm:$0x1]
      %s1917 = scalar_lea.vmem %s4, 1
      %v1918 = vld [vmem:[%s1917] sm:$0x1]
      %v1919 = vsel %vm627, %v1914, 0.0
      %1920 = vadd.xlane.f32.xlu0 %v1919
      %v1921 = vpop.xlane.xlu0 %1920
      %v1922 = vmul.f32 %v1921, %v631
      %v1923 = vsub.f32 %v1914, %v1922
      %v1924 = vmul.f32 %v1923, %v1923
      %v1925 = vsel %vm627, %v1924, 0.0
      %1926 = vadd.xlane.f32.xlu0 %v1925
      %v1927 = vpop.xlane.xlu0 %1926
      %v1928 = vmul.f32 %v1927, %v631
      %v1929 = vadd.f32 %v1928, 1e-05
      %v1930 = vrsqrt.pop %v1929
      %v1931 = vmul.f32 %v1923, %v1930
      %v1933 = vlaneseq
      %v1934 = vshrl.u32 %v1933, 7
      %v1935 = vsub.s32 0, %v1934
      %v1936 = vrot.slane %v1916, %v1935
      %v1938 = vmul.f32 %v1931, %v1936
      %v1940 = vlaneseq
      %v1941 = vshrl.u32 %v1940, 7
      %v1942 = vsub.s32 0, %v1941
      %v1943 = vrot.slane %v1918, %v1942
      %v1945 = vadd.f32 %v1938, %v1943
      %s1946 = scalar_lea.vmem %s5, 32
      %v1947 = vld [vmem:[%s1946] sm:$0xff]
      %v1948 = vld [vmem:[%s1946 + $0x8] sm:$0xff]
      %v1949 = vld [vmem:[%s1946 + $0x10] sm:$0xff]
      %v1950 = vld [vmem:[%s1946 + $0x18] sm:$0xff]
      %v1952 = vsel %vm627, %v1945, 0
      %1954 = vmatprep.subr.mxu0 0.0
      %1955 = vmatpush1.msra.mxu0 %v1947
      %1956 = vmatprep.subr.mxu0 0.0
      %1957 = vmatpush1.msra.mxu0 %v1948
      %1958 = vmatprep.subr.mxu0 0.0
      %1959 = vmatpush1.msra.mxu0 %v1949
      %1960 = vmatprep.subr.mxu0 0.0
      %1961 = vmatpush1.msra.mxu0 %v1950
      %1962 = vmatprep.subr.mxu0 0.0
      %1963 = vmatpush1.msra.mxu0 0.0
      %1964 = vmatprep.subr.mxu0 0.0
      %1965 = vmatpush1.msra.mxu0 0.0
      %1966 = vmatprep.subr.mxu0 0.0
      %1967 = vmatpush1.msra.mxu0 0.0
      %1968 = vmatprep.subr.mxu0 0.0
      %1969 = vmatpush1.msra.mxu0 0.0
      %1970 = vmatprep.subr.mxu0 0.0
      %1971 = vmatpush1.msra.mxu0 0.0
      %1972 = vmatprep.subr.mxu0 0.0
      %1973 = vmatpush1.msra.mxu0 0.0
      %1974 = vmatprep.subr.mxu0 0.0
      %1975 = vmatpush1.msra.mxu0 0.0
      %1976 = vmatprep.subr.mxu0 0.0
      %1977 = vmatpush1.msra.mxu0 0.0
      %1978 = vmatprep.subr.mxu0 0.0
      %1979 = vmatpush1.msra.mxu0 0.0
      %1980 = vmatprep.subr.mxu0 0.0
      %1981 = vmatpush1.msra.mxu0 0.0
      %1982 = vmatprep.subr.mxu0 0.0
      %1983 = vmatpush1.msra.mxu0 0.0
      %1984 = vmatprep.subr.mxu0 0.0
      %1985 = vmatpush1.msra.mxu0 0.0
      %1986 = vmatprep.subr.mxu0 0.0
      %1987 = vmatpush1.msra.mxu0 0.0
      %1988 = vmatprep.subr.mxu0 0.0
      %1989 = vmatpush1.msra.mxu0 0.0
      %1990 = vmatprep.subr.mxu0 0.0
      %1991 = vmatpush1.msra.mxu0 0.0
      %1992 = vmatprep.subr.mxu0 0.0
      %1993 = vmatpush1.msra.mxu0 0.0
      %1994 = vmatprep.subr.mxu0 0.0
      %1995 = vmatpush1.msra.mxu0 0.0
      %1996 = vmatprep.subr.mxu0 0.0
      %1997 = vmatpush1.msra.mxu0 0.0
      %1998 = vmatprep.subr.mxu0 0.0
      %1999 = vmatpush1.msra.mxu0 0.0
      %2000 = vmatprep.subr.mxu0 0.0
      %2001 = vmatpush1.msra.mxu0 0.0
      %2002 = vmatprep.subr.mxu0 0.0
      %2003 = vmatpush1.msra.mxu0 0.0
      %2004 = vmatprep.subr.mxu0 0.0
      %2005 = vmatpush1.msra.mxu0 0.0
      %2006 = vmatprep.subr.mxu0 0.0
      %2007 = vmatpush1.msra.mxu0 0.0
      %2008 = vmatprep.subr.mxu0 0.0
      %2009 = vmatpush1.msra.mxu0 0.0
      %2010 = vmatprep.subr.mxu0 0.0
      %2011 = vmatpush1.msra.mxu0 0.0
      %2012 = vmatprep.subr.mxu0 0.0
      %2013 = vmatpush1.msra.mxu0 0.0
      %2014 = vmatprep.subr.mxu0 0.0
      %2015 = vmatpush1.msra.mxu0 0.0
      %2016 = vmatprep.subr.mxu0 0.0
      %2017 = vmatpush1.msra.mxu0 0.0
      %2018 = vmatprep.mubr.f32.mxu0 0.0
      %2019 = vmatmul.mubr.f32.gmra.mrb[0].mxu0 %v1952
      %v2020 = vpop.f32.mrb[0].mxu0
      %v2021 = vadd.f32 0.0, %v2020
      %v2022 = vpop.f32.mrb[0].mxu0
      %2023 = vdwg.mxu0
      %s2024 = scalar_lea.vmem %s6, 32
      %v2025 = vld [vmem:[%s2024] sm:$0xff]
      %v2026 = vld [vmem:[%s2024 + $0x8] sm:$0xff]
      %v2027 = vld [vmem:[%s2024 + $0x10] sm:$0xff]
      %v2028 = vld [vmem:[%s2024 + $0x18] sm:$0xff]
      %v2029 = vmul.f32 %v2021, 0.35355338
      %2031 = vrot.lane.b32.xlu0 %v2021, 96
      %v2032 = vpop.permute.xlu0 %2031
      %v2034 = vsel %vm741, %v2029, 0
      %v2036 = vsel %vm741, %v2032, 0
      %2038 = vmatprep.subr.mxu0 0.0
      %2039 = vmatpush1.xpose.msra.mxu0 %v2036
      %2040 = vmatprep.subr.mxu0 0.0
      %2041 = vmatpush1.xpose.msra.mxu0 0.0
      %2042 = vmatprep.subr.mxu0 0.0
      %2043 = vmatpush1.xpose.msra.mxu0 0.0
      %2044 = vmatprep.subr.mxu0 0.0
      %2045 = vmatpush1.xpose.msra.mxu0 0.0
      %2046 = vmatprep.subr.mxu0 0.0
      %2047 = vmatpush1.xpose.msra.mxu0 0.0
      %2048 = vmatprep.subr.mxu0 0.0
      %2049 = vmatpush1.xpose.msra.mxu0 0.0
      %2050 = vmatprep.subr.mxu0 0.0
      %2051 = vmatpush1.xpose.msra.mxu0 0.0
      %2052 = vmatprep.subr.mxu0 0.0
      %2053 = vmatpush1.xpose.msra.mxu0 0.0
      %2054 = vmatprep.subr.mxu0 0.0
      %2055 = vmatpush1.xpose.msra.mxu0 0.0
      %2056 = vmatprep.subr.mxu0 0.0
      %2057 = vmatpush1.xpose.msra.mxu0 0.0
      %2058 = vmatprep.subr.mxu0 0.0
      %2059 = vmatpush1.xpose.msra.mxu0 0.0
      %2060 = vmatprep.subr.mxu0 0.0
      %2061 = vmatpush1.xpose.msra.mxu0 0.0
      %2062 = vmatprep.subr.mxu0 0.0
      %2063 = vmatpush1.xpose.msra.mxu0 0.0
      %2064 = vmatprep.subr.mxu0 0.0
      %2065 = vmatpush1.xpose.msra.mxu0 0.0
      %2066 = vmatprep.subr.mxu0 0.0
      %2067 = vmatpush1.xpose.msra.mxu0 0.0
      %2068 = vmatprep.subr.mxu0 0.0
      %2069 = vmatpush1.xpose.msra.mxu0 0.0
      %2070 = vmatprep.subr.mxu0 0.0
      %2071 = vmatpush1.xpose.msra.mxu0 0.0
      %2072 = vmatprep.subr.mxu0 0.0
      %2073 = vmatpush1.xpose.msra.mxu0 0.0
      %2074 = vmatprep.subr.mxu0 0.0
      %2075 = vmatpush1.xpose.msra.mxu0 0.0
      %2076 = vmatprep.subr.mxu0 0.0
      %2077 = vmatpush1.xpose.msra.mxu0 0.0
      %2078 = vmatprep.subr.mxu0 0.0
      %2079 = vmatpush1.xpose.msra.mxu0 0.0
      %2080 = vmatprep.subr.mxu0 0.0
      %2081 = vmatpush1.xpose.msra.mxu0 0.0
      %2082 = vmatprep.subr.mxu0 0.0
      %2083 = vmatpush1.xpose.msra.mxu0 0.0
      %2084 = vmatprep.subr.mxu0 0.0
      %2085 = vmatpush1.xpose.msra.mxu0 0.0
      %2086 = vmatprep.subr.mxu0 0.0
      %2087 = vmatpush1.xpose.msra.mxu0 0.0
      %2088 = vmatprep.subr.mxu0 0.0
      %2089 = vmatpush1.xpose.msra.mxu0 0.0
      %2090 = vmatprep.subr.mxu0 0.0
      %2091 = vmatpush1.xpose.msra.mxu0 0.0
      %2092 = vmatprep.subr.mxu0 0.0
      %2093 = vmatpush1.xpose.msra.mxu0 0.0
      %2094 = vmatprep.subr.mxu0 0.0
      %2095 = vmatpush1.xpose.msra.mxu0 0.0
      %2096 = vmatprep.subr.mxu0 0.0
      %2097 = vmatpush1.xpose.msra.mxu0 0.0
      %2098 = vmatprep.subr.mxu0 0.0
      %2099 = vmatpush1.xpose.msra.mxu0 0.0
      %2100 = vmatprep.subr.mxu0 0.0
      %2101 = vmatpush1.xpose.msra.mxu0 0.0
      %2102 = vmatprep.mubr.f32.mxu0 0.0
      %2103 = vmatmul.mubr.f32.gmra.mrb[0].mxu0 %v2034
      %v2104 = vpop.f32.mrb[0].mxu0
      %v2105 = vadd.f32 0.0, %v2104
      %v2106 = vpop.f32.mrb[0].mxu0
      %2107 = vdwg.mxu0
      %v2108 = vsel %vm741, %v2105, -inf
      %2109 = vmax.xlane.f32.xlu0 %v2108
      %v2110 = vpop.xlane.xlu0 %2109
      %v2111 = vsub.f32 %v2105, %v2110
      %v2112 = vmul.f32 %v2111, 1.442695
      %v2113 = vpow.pop %v2112
      %v2114 = vsel %vm741, %v2113, 0.0
      %2115 = vadd.xlane.f32.xlu0 %v2114
      %v2116 = vpop.xlane.xlu0 %2115
      %v2117 = vrcp.pop %v2116
      %v2118 = vmul.f32 %v2113, %v2117
      %2119 = vrot.lane.b32.xlu0 %v2021, 64
      %v2120 = vpop.permute.xlu0 %2119
      %v2123 = vsel %vm741, %v2118, 0
      %2125 = vmatprep.subr.mxu0 0.0
      %2126 = vmatpush1.msra.mxu0 %v2120
      %2127 = vmatprep.subr.mxu0 0.0
      %2128 = vmatpush1.msra.mxu0 0.0
      %2129 = vmatprep.subr.mxu0 0.0
      %2130 = vmatpush1.msra.mxu0 0.0
      %2131 = vmatprep.subr.mxu0 0.0
      %2132 = vmatpush1.msra.mxu0 0.0
      %2133 = vmatprep.subr.mxu0 0.0
      %2134 = vmatpush1.msra.mxu0 0.0
      %2135 = vmatprep.subr.mxu0 0.0
      %2136 = vmatpush1.msra.mxu0 0.0
      %2137 = vmatprep.subr.mxu0 0.0
      %2138 = vmatpush1.msra.mxu0 0.0
      %2139 = vmatprep.subr.mxu0 0.0
      %2140 = vmatpush1.msra.mxu0 0.0
      %2141 = vmatprep.subr.mxu0 0.0
      %2142 = vmatpush1.msra.mxu0 0.0
      %2143 = vmatprep.subr.mxu0 0.0
      %2144 = vmatpush1.msra.mxu0 0.0
      %2145 = vmatprep.subr.mxu0 0.0
      %2146 = vmatpush1.msra.mxu0 0.0
      %2147 = vmatprep.subr.mxu0 0.0
      %2148 = vmatpush1.msra.mxu0 0.0
      %2149 = vmatprep.subr.mxu0 0.0
      %2150 = vmatpush1.msra.mxu0 0.0
      %2151 = vmatprep.subr.mxu0 0.0
      %2152 = vmatpush1.msra.mxu0 0.0
      %2153 = vmatprep.subr.mxu0 0.0
      %2154 = vmatpush1.msra.mxu0 0.0
      %2155 = vmatprep.subr.mxu0 0.0
      %2156 = vmatpush1.msra.mxu0 0.0
      %2157 = vmatprep.subr.mxu0 0.0
      %2158 = vmatpush1.msra.mxu0 0.0
      %2159 = vmatprep.subr.mxu0 0.0
      %2160 = vmatpush1.msra.mxu0 0.0
      %2161 = vmatprep.subr.mxu0 0.0
      %2162 = vmatpush1.msra.mxu0 0.0
      %2163 = vmatprep.subr.mxu0 0.0
      %2164 = vmatpush1.msra.mxu0 0.0
      %2165 = vmatprep.subr.mxu0 0.0
      %2166 = vmatpush1.msra.mxu0 0.0
      %2167 = vmatprep.subr.mxu0 0.0
      %2168 = vmatpush1.msra.mxu0 0.0
      %2169 = vmatprep.subr.mxu0 0.0
      %2170 = vmatpush1.msra.mxu0 0.0
      %2171 = vmatprep.subr.mxu0 0.0
      %2172 = vmatpush1.msra.mxu0 0.0
      %2173 = vmatprep.subr.mxu0 0.0
      %2174 = vmatpush1.msra.mxu0 0.0
      %2175 = vmatprep.subr.mxu0 0.0
      %2176 = vmatpush1.msra.mxu0 0.0
      %2177 = vmatprep.subr.mxu0 0.0
      %2178 = vmatpush1.msra.mxu0 0.0
      %2179 = vmatprep.subr.mxu0 0.0
      %2180 = vmatpush1.msra.mxu0 0.0
      %2181 = vmatprep.subr.mxu0 0.0
      %2182 = vmatpush1.msra.mxu0 0.0
      %2183 = vmatprep.subr.mxu0 0.0
      %2184 = vmatpush1.msra.mxu0 0.0
      %2185 = vmatprep.subr.mxu0 0.0
      %2186 = vmatpush1.msra.mxu0 0.0
      %2187 = vmatprep.subr.mxu0 0.0
      %2188 = vmatpush1.msra.mxu0 0.0
      %2189 = vmatprep.mubr.f32.mxu0 0.0
      %2190 = vmatmul.mubr.f32.gmra.mrb[0].mxu0 %v2123
      %v2191 = vpop.f32.mrb[0].mxu0
      %v2192 = vadd.f32 0.0, %v2191
      %v2193 = vpop.f32.mrb[0].mxu0
      %2194 = vdwg.mxu0
      %2195 = vrot.lane.b32.xlu0 %v2029, 120
      %v2196 = vpop.permute.xlu0 %2195
      %2197 = vrot.lane.b32.xlu0 %v2021, 88
      %v2198 = vpop.permute.xlu0 %2197
      %v2199 = vsel %vm741, %v2196, 0
      %v2201 = vsel %vm741, %v2198, 0
      %2203 = vmatprep.subr.mxu0 0.0
      %2204 = vmatpush1.xpose.msra.mxu0 %v2201
      %2205 = vmatprep.subr.mxu0 0.0
      %2206 = vmatpush1.xpose.msra.mxu0 0.0
      %2207 = vmatprep.subr.mxu0 0.0
      %2208 = vmatpush1.xpose.msra.mxu0 0.0
      %2209 = vmatprep.subr.mxu0 0.0
      %2210 = vmatpush1.xpose.msra.mxu0 0.0
      %2211 = vmatprep.subr.mxu0 0.0
      %2212 = vmatpush1.xpose.msra.mxu0 0.0
      %2213 = vmatprep.subr.mxu0 0.0
      %2214 = vmatpush1.xpose.msra.mxu0 0.0
      %2215 = vmatprep.subr.mxu0 0.0
      %2216 = vmatpush1.xpose.msra.mxu0 0.0
      %2217 = vmatprep.subr.mxu0 0.0
      %2218 = vmatpush1.xpose.msra.mxu0 0.0
      %2219 = vmatprep.subr.mxu0 0.0
      %2220 = vmatpush1.xpose.msra.mxu0 0.0
      %2221 = vmatprep.subr.mxu0 0.0
      %2222 = vmatpush1.xpose.msra.mxu0 0.0
      %2223 = vmatprep.subr.mxu0 0.0
      %2224 = vmatpush1.xpose.msra.mxu0 0.0
      %2225 = vmatprep.subr.mxu0 0.0
      %2226 = vmatpush1.xpose.msra.mxu0 0.0
      %2227 = vmatprep.subr.mxu0 0.0
      %2228 = vmatpush1.xpose.msra.mxu0 0.0
      %2229 = vmatprep.subr.mxu0 0.0
      %2230 = vmatpush1.xpose.msra.mxu0 0.0
      %2231 = vmatprep.subr.mxu0 0.0
      %2232 = vmatpush1.xpose.msra.mxu0 0.0
      %2233 = vmatprep.subr.mxu0 0.0
      %2234 = vmatpush1.xpose.msra.mxu0 0.0
      %2235 = vmatprep.subr.mxu0 0.0
      %2236 = vmatpush1.xpose.msra.mxu0 0.0
      %2237 = vmatprep.subr.mxu0 0.0
      %2238 = vmatpush1.xpose.msra.mxu0 0.0
      %2239 = vmatprep.subr.mxu0 0.0
      %2240 = vmatpush1.xpose.msra.mxu0 0.0
      %2241 = vmatprep.subr.mxu0 0.0
      %2242 = vmatpush1.xpose.msra.mxu0 0.0
      %2243 = vmatprep.subr.mxu0 0.0
      %2244 = vmatpush1.xpose.msra.mxu0 0.0
      %2245 = vmatprep.subr.mxu0 0.0
      %2246 = vmatpush1.xpose.msra.mxu0 0.0
      %2247 = vmatprep.subr.mxu0 0.0
      %2248 = vmatpush1.xpose.msra.mxu0 0.0
      %2249 = vmatprep.subr.mxu0 0.0
      %2250 = vmatpush1.xpose.msra.mxu0 0.0
      %2251 = vmatprep.subr.mxu0 0.0
      %2252 = vmatpush1.xpose.msra.mxu0 0.0
      %2253 = vmatprep.subr.mxu0 0.0
      %2254 = vmatpush1.xpose.msra.mxu0 0.0
      %2255 = vmatprep.subr.mxu0 0.0
      %2256 = vmatpush1.xpose.msra.mxu0 0.0
      %2257 = vmatprep.subr.mxu0 0.0
      %2258 = vmatpush1.xpose.msra.mxu0 0.0
      %2259 = vmatprep.subr.mxu0 0.0
      %2260 = vmatpush1.xpose.msra.mxu0 0.0
      %2261 = vmatprep.subr.mxu0 0.0
      %2262 = vmatpush1.xpose.msra.mxu0 0.0
      %2263 = vmatprep.subr.mxu0 0.0
      %2264 = vmatpush1.xpose.msra.mxu0 0.0
      %2265 = vmatprep.subr.mxu0 0.0
      %2266 = vmatpush1.xpose.msra.mxu0 0.0
      %2267 = vmatprep.mubr.f32.mxu0 0.0
      %2268 = vmatmul.mubr.f32.gmra.mrb[0].mxu0 %v2199
      %v2269 = vpop.f32.mrb[0].mxu0
      %v2270 = vadd.f32 0.0, %v2269
      %v2271 = vpop.f32.mrb[0].mxu0
      %2272 = vdwg.mxu0
      %v2273 = vsel %vm741, %v2270, -inf
      %2274 = vmax.xlane.f32.xlu0 %v2273
      %v2275 = vpop.xlane.xlu0 %2274
      %v2276 = vsub.f32 %v2270, %v2275
      %v2277 = vmul.f32 %v2276, 1.442695
      %v2278 = vpow.pop %v2277
      %v2279 = vsel %vm741, %v2278, 0.0
      %2280 = vadd.xlane.f32.xlu0 %v2279
      %v2281 = vpop.xlane.xlu0 %2280
      %v2282 = vrcp.pop %v2281
      %v2283 = vmul.f32 %v2278, %v2282
      %2284 = vrot.lane.b32.xlu0 %v2021, 56
      %v2285 = vpop.permute.xlu0 %2284
      %v2288 = vsel %vm741, %v2283, 0
      %2290 = vmatprep.subr.mxu0 0.0
      %2291 = vmatpush1.msra.mxu0 %v2285
      %2292 = vmatprep.subr.mxu0 0.0
      %2293 = vmatpush1.msra.mxu0 0.0
      %2294 = vmatprep.subr.mxu0 0.0
      %2295 = vmatpush1.msra.mxu0 0.0
      %2296 = vmatprep.subr.mxu0 0.0
      %2297 = vmatpush1.msra.mxu0 0.0
      %2298 = vmatprep.subr.mxu0 0.0
      %2299 = vmatpush1.msra.mxu0 0.0
      %2300 = vmatprep.subr.mxu0 0.0
      %2301 = vmatpush1.msra.mxu0 0.0
      %2302 = vmatprep.subr.mxu0 0.0
      %2303 = vmatpush1.msra.mxu0 0.0
      %2304 = vmatprep.subr.mxu0 0.0
      %2305 = vmatpush1.msra.mxu0 0.0
      %2306 = vmatprep.subr.mxu0 0.0
      %2307 = vmatpush1.msra.mxu0 0.0
      %2308 = vmatprep.subr.mxu0 0.0
      %2309 = vmatpush1.msra.mxu0 0.0
      %2310 = vmatprep.subr.mxu0 0.0
      %2311 = vmatpush1.msra.mxu0 0.0
      %2312 = vmatprep.subr.mxu0 0.0
      %2313 = vmatpush1.msra.mxu0 0.0
      %2314 = vmatprep.subr.mxu0 0.0
      %2315 = vmatpush1.msra.mxu0 0.0
      %2316 = vmatprep.subr.mxu0 0.0
      %2317 = vmatpush1.msra.mxu0 0.0
      %2318 = vmatprep.subr.mxu0 0.0
      %2319 = vmatpush1.msra.mxu0 0.0
      %2320 = vmatprep.subr.mxu0 0.0
      %2321 = vmatpush1.msra.mxu0 0.0
      %2322 = vmatprep.subr.mxu0 0.0
      %2323 = vmatpush1.msra.mxu0 0.0
      %2324 = vmatprep.subr.mxu0 0.0
      %2325 = vmatpush1.msra.mxu0 0.0
      %2326 = vmatprep.subr.mxu0 0.0
      %2327 = vmatpush1.msra.mxu0 0.0
      %2328 = vmatprep.subr.mxu0 0.0
      %2329 = vmatpush1.msra.mxu0 0.0
      %2330 = vmatprep.subr.mxu0 0.0
      %2331 = vmatpush1.msra.mxu0 0.0
      %2332 = vmatprep.subr.mxu0 0.0
      %2333 = vmatpush1.msra.mxu0 0.0
      %2334 = vmatprep.subr.mxu0 0.0
      %2335 = vmatpush1.msra.mxu0 0.0
      %2336 = vmatprep.subr.mxu0 0.0
      %2337 = vmatpush1.msra.mxu0 0.0
      %2338 = vmatprep.subr.mxu0 0.0
      %2339 = vmatpush1.msra.mxu0 0.0
      %2340 = vmatprep.subr.mxu0 0.0
      %2341 = vmatpush1.msra.mxu0 0.0
      %2342 = vmatprep.subr.mxu0 0.0
      %2343 = vmatpush1.msra.mxu0 0.0
      %2344 = vmatprep.subr.mxu0 0.0
      %2345 = vmatpush1.msra.mxu0 0.0
      %2346 = vmatprep.subr.mxu0 0.0
      %2347 = vmatpush1.msra.mxu0 0.0
      %2348 = vmatprep.subr.mxu0 0.0
      %2349 = vmatpush1.msra.mxu0 0.0
      %2350 = vmatprep.subr.mxu0 0.0
      %2351 = vmatpush1.msra.mxu0 0.0
      %2352 = vmatprep.subr.mxu0 0.0
      %2353 = vmatpush1.msra.mxu0 0.0
      %2354 = vmatprep.mubr.f32.mxu0 0.0
      %2355 = vmatmul.mubr.f32.gmra.mrb[0].mxu0 %v2288
      %v2356 = vpop.f32.mrb[0].mxu0
      %v2357 = vadd.f32 0.0, %v2356
      %v2358 = vpop.f32.mrb[0].mxu0
      %2359 = vdwg.mxu0
      %v2361 = vsel %vm741, %v2357, 0
      %2363 = vmatprep.subr.mxu0 0.0
      %2364 = vmatpush1.msra.mxu0 %v2026
      %2365 = vmatprep.subr.mxu0 0.0
      %2366 = vmatpush1.msra.mxu0 0.0
      %2367 = vmatprep.subr.mxu0 0.0
      %2368 = vmatpush1.msra.mxu0 0.0
      %2369 = vmatprep.subr.mxu0 0.0
      %2370 = vmatpush1.msra.mxu0 0.0
      %2371 = vmatprep.subr.mxu0 0.0
      %2372 = vmatpush1.msra.mxu0 0.0
      %2373 = vmatprep.subr.mxu0 0.0
      %2374 = vmatpush1.msra.mxu0 0.0
      %2375 = vmatprep.subr.mxu0 0.0
      %2376 = vmatpush1.msra.mxu0 0.0
      %2377 = vmatprep.subr.mxu0 0.0
      %2378 = vmatpush1.msra.mxu0 0.0
      %2379 = vmatprep.subr.mxu0 0.0
      %2380 = vmatpush1.msra.mxu0 0.0
      %2381 = vmatprep.subr.mxu0 0.0
      %2382 = vmatpush1.msra.mxu0 0.0
      %2383 = vmatprep.subr.mxu0 0.0
      %2384 = vmatpush1.msra.mxu0 0.0
      %2385 = vmatprep.subr.mxu0 0.0
      %2386 = vmatpush1.msra.mxu0 0.0
      %2387 = vmatprep.subr.mxu0 0.0
      %2388 = vmatpush1.msra.mxu0 0.0
      %2389 = vmatprep.subr.mxu0 0.0
      %2390 = vmatpush1.msra.mxu0 0.0
      %2391 = vmatprep.subr.mxu0 0.0
      %2392 = vmatpush1.msra.mxu0 0.0
      %2393 = vmatprep.subr.mxu0 0.0
      %2394 = vmatpush1.msra.mxu0 0.0
      %2395 = vmatprep.subr.mxu0 0.0
      %2396 = vmatpush1.msra.mxu0 0.0
      %2397 = vmatprep.subr.mxu0 0.0
      %2398 = vmatpush1.msra.mxu0 0.0
      %2399 = vmatprep.subr.mxu0 0.0
      %2400 = vmatpush1.msra.mxu0 0.0
      %2401 = vmatprep.subr.mxu0 0.0
      %2402 = vmatpush1.msra.mxu0 0.0
      %2403 = vmatprep.subr.mxu0 0.0
      %2404 = vmatpush1.msra.mxu0 0.0
      %2405 = vmatprep.subr.mxu0 0.0
      %2406 = vmatpush1.msra.mxu0 0.0
      %2407 = vmatprep.subr.mxu0 0.0
      %2408 = vmatpush1.msra.mxu0 0.0
      %2409 = vmatprep.subr.mxu0 0.0
      %2410 = vmatpush1.msra.mxu0 0.0
      %2411 = vmatprep.subr.mxu0 0.0
      %2412 = vmatpush1.msra.mxu0 0.0
      %2413 = vmatprep.subr.mxu0 0.0
      %2414 = vmatpush1.msra.mxu0 0.0
      %2415 = vmatprep.subr.mxu0 0.0
      %2416 = vmatpush1.msra.mxu0 0.0
      %2417 = vmatprep.subr.mxu0 0.0
      %2418 = vmatpush1.msra.mxu0 0.0
      %2419 = vmatprep.subr.mxu0 0.0
      %2420 = vmatpush1.msra.mxu0 0.0
      %2421 = vmatprep.subr.mxu0 0.0
      %2422 = vmatpush1.msra.mxu0 0.0
      %2423 = vmatprep.subr.mxu0 0.0
      %2424 = vmatpush1.msra.mxu0 0.0
      %2425 = vmatprep.subr.mxu0 0.0
      %2426 = vmatpush1.msra.mxu0 0.0
      %2427 = vmatprep.mubr.f32.mxu0 0.0
      %2428 = vmatmul.mubr.f32.gmra.mrb[0].mxu0 %v2361
      %v2429 = vpop.f32.mrb[0].mxu0
      %v2430 = vadd.f32 0.0, %v2429
      %v2431 = vpop.f32.mrb[0].mxu0
      %2432 = vdwg.mxu0
      %v2434 = vsel %vm741, %v2192, 0
      %2436 = vmatprep.subr.mxu0 0.0
      %2437 = vmatpush1.msra.mxu0 %v2025
      %2438 = vmatprep.subr.mxu0 0.0
      %2439 = vmatpush1.msra.mxu0 0.0
      %2440 = vmatprep.subr.mxu0 0.0
      %2441 = vmatpush1.msra.mxu0 0.0
      %2442 = vmatprep.subr.mxu0 0.0
      %2443 = vmatpush1.msra.mxu0 0.0
      %2444 = vmatprep.subr.mxu0 0.0
      %2445 = vmatpush1.msra.mxu0 0.0
      %2446 = vmatprep.subr.mxu0 0.0
      %2447 = vmatpush1.msra.mxu0 0.0
      %2448 = vmatprep.subr.mxu0 0.0
      %2449 = vmatpush1.msra.mxu0 0.0
      %2450 = vmatprep.subr.mxu0 0.0
      %2451 = vmatpush1.msra.mxu0 0.0
      %2452 = vmatprep.subr.mxu0 0.0
      %2453 = vmatpush1.msra.mxu0 0.0
      %2454 = vmatprep.subr.mxu0 0.0
      %2455 = vmatpush1.msra.mxu0 0.0
      %2456 = vmatprep.subr.mxu0 0.0
      %2457 = vmatpush1.msra.mxu0 0.0
      %2458 = vmatprep.subr.mxu0 0.0
      %2459 = vmatpush1.msra.mxu0 0.0
      %2460 = vmatprep.subr.mxu0 0.0
      %2461 = vmatpush1.msra.mxu0 0.0
      %2462 = vmatprep.subr.mxu0 0.0
      %2463 = vmatpush1.msra.mxu0 0.0
      %2464 = vmatprep.subr.mxu0 0.0
      %2465 = vmatpush1.msra.mxu0 0.0
      %2466 = vmatprep.subr.mxu0 0.0
      %2467 = vmatpush1.msra.mxu0 0.0
      %2468 = vmatprep.subr.mxu0 0.0
      %2469 = vmatpush1.msra.mxu0 0.0
      %2470 = vmatprep.subr.mxu0 0.0
      %2471 = vmatpush1.msra.mxu0 0.0
      %2472 = vmatprep.subr.mxu0 0.0
      %2473 = vmatpush1.msra.mxu0 0.0
      %2474 = vmatprep.subr.mxu0 0.0
      %2475 = vmatpush1.msra.mxu0 0.0
      %2476 = vmatprep.subr.mxu0 0.0
      %2477 = vmatpush1.msra.mxu0 0.0
      %2478 = vmatprep.subr.mxu0 0.0
      %2479 = vmatpush1.msra.mxu0 0.0
      %2480 = vmatprep.subr.mxu0 0.0
      %2481 = vmatpush1.msra.mxu0 0.0
      %2482 = vmatprep.subr.mxu0 0.0
      %2483 = vmatpush1.msra.mxu0 0.0
      %2484 = vmatprep.subr.mxu0 0.0
      %2485 = vmatpush1.msra.mxu0 0.0
      %2486 = vmatprep.subr.mxu0 0.0
      %2487 = vmatpush1.msra.mxu0 0.0
      %2488 = vmatprep.subr.mxu0 0.0
      %2489 = vmatpush1.msra.mxu0 0.0
      %2490 = vmatprep.subr.mxu0 0.0
      %2491 = vmatpush1.msra.mxu0 0.0
      %2492 = vmatprep.subr.mxu0 0.0
      %2493 = vmatpush1.msra.mxu0 0.0
      %2494 = vmatprep.subr.mxu0 0.0
      %2495 = vmatpush1.msra.mxu0 0.0
      %2496 = vmatprep.subr.mxu0 0.0
      %2497 = vmatpush1.msra.mxu0 0.0
      %2498 = vmatprep.subr.mxu0 0.0
      %2499 = vmatpush1.msra.mxu0 0.0
      %2500 = vmatprep.mubr.f32.mxu0 0.0
      %2501 = vmatmul.mubr.f32.gmra.mrb[0].mxu0 %v2434
      %v2502 = vpop.f32.mrb[0].mxu0
      %v2503 = vadd.f32 %v2430, %v2502
      %v2504 = vpop.f32.mrb[0].mxu0
      %2505 = vdwg.mxu0
      %2506 = vrot.lane.b32.xlu0 %v2029, 112
      %v2507 = vpop.permute.xlu0 %2506
      %2508 = vrot.lane.b32.xlu0 %v2021, 80
      %v2509 = vpop.permute.xlu0 %2508
      %v2510 = vsel %vm741, %v2507, 0
      %v2512 = vsel %vm741, %v2509, 0
      %2514 = vmatprep.subr.mxu0 0.0
      %2515 = vmatpush1.xpose.msra.mxu0 %v2512
      %2516 = vmatprep.subr.mxu0 0.0
      %2517 = vmatpush1.xpose.msra.mxu0 0.0
      %2518 = vmatprep.subr.mxu0 0.0
      %2519 = vmatpush1.xpose.msra.mxu0 0.0
      %2520 = vmatprep.subr.mxu0 0.0
      %2521 = vmatpush1.xpose.msra.mxu0 0.0
      %2522 = vmatprep.subr.mxu0 0.0
      %2523 = vmatpush1.xpose.msra.mxu0 0.0
      %2524 = vmatprep.subr.mxu0 0.0
      %2525 = vmatpush1.xpose.msra.mxu0 0.0
      %2526 = vmatprep.subr.mxu0 0.0
      %2527 = vmatpush1.xpose.msra.mxu0 0.0
      %2528 = vmatprep.subr.mxu0 0.0
      %2529 = vmatpush1.xpose.msra.mxu0 0.0
      %2530 = vmatprep.subr.mxu0 0.0
      %2531 = vmatpush1.xpose.msra.mxu0 0.0
      %2532 = vmatprep.subr.mxu0 0.0
      %2533 = vmatpush1.xpose.msra.mxu0 0.0
      %2534 = vmatprep.subr.mxu0 0.0
      %2535 = vmatpush1.xpose.msra.mxu0 0.0
      %2536 = vmatprep.subr.mxu0 0.0
      %2537 = vmatpush1.xpose.msra.mxu0 0.0
      %2538 = vmatprep.subr.mxu0 0.0
      %2539 = vmatpush1.xpose.msra.mxu0 0.0
      %2540 = vmatprep.subr.mxu0 0.0
      %2541 = vmatpush1.xpose.msra.mxu0 0.0
      %2542 = vmatprep.subr.mxu0 0.0
      %2543 = vmatpush1.xpose.msra.mxu0 0.0
      %2544 = vmatprep.subr.mxu0 0.0
      %2545 = vmatpush1.xpose.msra.mxu0 0.0
      %2546 = vmatprep.subr.mxu0 0.0
      %2547 = vmatpush1.xpose.msra.mxu0 0.0
      %2548 = vmatprep.subr.mxu0 0.0
      %2549 = vmatpush1.xpose.msra.mxu0 0.0
      %2550 = vmatprep.subr.mxu0 0.0
      %2551 = vmatpush1.xpose.msra.mxu0 0.0
      %2552 = vmatprep.subr.mxu0 0.0
      %2553 = vmatpush1.xpose.msra.mxu0 0.0
      %2554 = vmatprep.subr.mxu0 0.0
      %2555 = vmatpush1.xpose.msra.mxu0 0.0
      %2556 = vmatprep.subr.mxu0 0.0
      %2557 = vmatpush1.xpose.msra.mxu0 0.0
      %2558 = vmatprep.subr.mxu0 0.0
      %2559 = vmatpush1.xpose.msra.mxu0 0.0
      %2560 = vmatprep.subr.mxu0 0.0
      %2561 = vmatpush1.xpose.msra.mxu0 0.0
      %2562 = vmatprep.subr.mxu0 0.0
      %2563 = vmatpush1.xpose.msra.mxu0 0.0
      %2564 = vmatprep.subr.mxu0 0.0
      %2565 = vmatpush1.xpose.msra.mxu0 0.0
      %2566 = vmatprep.subr.mxu0 0.0
      %2567 = vmatpush1.xpose.msra.mxu0 0.0
      %2568 = vmatprep.subr.mxu0 0.0
      %2569 = vmatpush1.xpose.msra.mxu0 0.0
      %2570 = vmatprep.subr.mxu0 0.0
      %2571 = vmatpush1.xpose.msra.mxu0 0.0
      %2572 = vmatprep.subr.mxu0 0.0
      %2573 = vmatpush1.xpose.msra.mxu0 0.0
      %2574 = vmatprep.subr.mxu0 0.0
      %2575 = vmatpush1.xpose.msra.mxu0 0.0
      %2576 = vmatprep.subr.mxu0 0.0
      %2577 = vmatpush1.xpose.msra.mxu0 0.0
      %2578 = vmatprep.mubr.f32.mxu0 0.0
      %2579 = vmatmul.mubr.f32.gmra.mrb[0].mxu0 %v2510
      %v2580 = vpop.f32.mrb[0].mxu0
      %v2581 = vadd.f32 0.0, %v2580
      %v2582 = vpop.f32.mrb[0].mxu0
      %2583 = vdwg.mxu0
      %v2584 = vsel %vm741, %v2581, -inf
      %2585 = vmax.xlane.f32.xlu0 %v2584
      %v2586 = vpop.xlane.xlu0 %2585
      %v2587 = vsub.f32 %v2581, %v2586
      %v2588 = vmul.f32 %v2587, 1.442695
      %v2589 = vpow.pop %v2588
      %v2590 = vsel %vm741, %v2589, 0.0
      %2591 = vadd.xlane.f32.xlu0 %v2590
      %v2592 = vpop.xlane.xlu0 %2591
      %v2593 = vrcp.pop %v2592
      %v2594 = vmul.f32 %v2589, %v2593
      %2595 = vrot.lane.b32.xlu0 %v2021, 48
      %v2596 = vpop.permute.xlu0 %2595
      %v2599 = vsel %vm741, %v2594, 0
      %2601 = vmatprep.subr.mxu0 0.0
      %2602 = vmatpush1.msra.mxu0 %v2596
      %2603 = vmatprep.subr.mxu0 0.0
      %2604 = vmatpush1.msra.mxu0 0.0
      %2605 = vmatprep.subr.mxu0 0.0
      %2606 = vmatpush1.msra.mxu0 0.0
      %2607 = vmatprep.subr.mxu0 0.0
      %2608 = vmatpush1.msra.mxu0 0.0
      %2609 = vmatprep.subr.mxu0 0.0
      %2610 = vmatpush1.msra.mxu0 0.0
      %2611 = vmatprep.subr.mxu0 0.0
      %2612 = vmatpush1.msra.mxu0 0.0
      %2613 = vmatprep.subr.mxu0 0.0
      %2614 = vmatpush1.msra.mxu0 0.0
      %2615 = vmatprep.subr.mxu0 0.0
      %2616 = vmatpush1.msra.mxu0 0.0
      %2617 = vmatprep.subr.mxu0 0.0
      %2618 = vmatpush1.msra.mxu0 0.0
      %2619 = vmatprep.subr.mxu0 0.0
      %2620 = vmatpush1.msra.mxu0 0.0
      %2621 = vmatprep.subr.mxu0 0.0
      %2622 = vmatpush1.msra.mxu0 0.0
      %2623 = vmatprep.subr.mxu0 0.0
      %2624 = vmatpush1.msra.mxu0 0.0
      %2625 = vmatprep.subr.mxu0 0.0
      %2626 = vmatpush1.msra.mxu0 0.0
      %2627 = vmatprep.subr.mxu0 0.0
      %2628 = vmatpush1.msra.mxu0 0.0
      %2629 = vmatprep.subr.mxu0 0.0
      %2630 = vmatpush1.msra.mxu0 0.0
      %2631 = vmatprep.subr.mxu0 0.0
      %2632 = vmatpush1.msra.mxu0 0.0
      %2633 = vmatprep.subr.mxu0 0.0
      %2634 = vmatpush1.msra.mxu0 0.0
      %2635 = vmatprep.subr.mxu0 0.0
      %2636 = vmatpush1.msra.mxu0 0.0
      %2637 = vmatprep.subr.mxu0 0.0
      %2638 = vmatpush1.msra.mxu0 0.0
      %2639 = vmatprep.subr.mxu0 0.0
      %2640 = vmatpush1.msra.mxu0 0.0
      %2641 = vmatprep.subr.mxu0 0.0
      %2642 = vmatpush1.msra.mxu0 0.0
      %2643 = vmatprep.subr.mxu0 0.0
      %2644 = vmatpush1.msra.mxu0 0.0
      %2645 = vmatprep.subr.mxu0 0.0
      %2646 = vmatpush1.msra.mxu0 0.0
      %2647 = vmatprep.subr.mxu0 0.0
      %2648 = vmatpush1.msra.mxu0 0.0
      %2649 = vmatprep.subr.mxu0 0.0
      %2650 = vmatpush1.msra.mxu0 0.0
      %2651 = vmatprep.subr.mxu0 0.0
      %2652 = vmatpush1.msra.mxu0 0.0
      %2653 = vmatprep.subr.mxu0 0.0
      %2654 = vmatpush1.msra.mxu0 0.0
      %2655 = vmatprep.subr.mxu0 0.0
      %2656 = vmatpush1.msra.mxu0 0.0
      %2657 = vmatprep.subr.mxu0 0.0
      %2658 = vmatpush1.msra.mxu0 0.0
      %2659 = vmatprep.subr.mxu0 0.0
      %2660 = vmatpush1.msra.mxu0 0.0
      %2661 = vmatprep.subr.mxu0 0.0
      %2662 = vmatpush1.msra.mxu0 0.0
      %2663 = vmatprep.subr.mxu0 0.0
      %2664 = vmatpush1.msra.mxu0 0.0
      %2665 = vmatprep.mubr.f32.mxu0 0.0
      %2666 = vmatmul.mubr.f32.gmra.mrb[0].mxu0 %v2599
      %v2667 = vpop.f32.mrb[0].mxu0
      %v2668 = vadd.f32 0.0, %v2667
      %v2669 = vpop.f32.mrb[0].mxu0
      %2670 = vdwg.mxu0
      %v2672 = vsel %vm741, %v2668, 0
      %2674 = vmatprep.subr.mxu0 0.0
      %2675 = vmatpush1.msra.mxu0 %v2027
      %2676 = vmatprep.subr.mxu0 0.0
      %2677 = vmatpush1.msra.mxu0 0.0
      %2678 = vmatprep.subr.mxu0 0.0
      %2679 = vmatpush1.msra.mxu0 0.0
      %2680 = vmatprep.subr.mxu0 0.0
      %2681 = vmatpush1.msra.mxu0 0.0
      %2682 = vmatprep.subr.mxu0 0.0
      %2683 = vmatpush1.msra.mxu0 0.0
      %2684 = vmatprep.subr.mxu0 0.0
      %2685 = vmatpush1.msra.mxu0 0.0
      %2686 = vmatprep.subr.mxu0 0.0
      %2687 = vmatpush1.msra.mxu0 0.0
      %2688 = vmatprep.subr.mxu0 0.0
      %2689 = vmatpush1.msra.mxu0 0.0
      %2690 = vmatprep.subr.mxu0 0.0
      %2691 = vmatpush1.msra.mxu0 0.0
      %2692 = vmatprep.subr.mxu0 0.0
      %2693 = vmatpush1.msra.mxu0 0.0
      %2694 = vmatprep.subr.mxu0 0.0
      %2695 = vmatpush1.msra.mxu0 0.0
      %2696 = vmatprep.subr.mxu0 0.0
      %2697 = vmatpush1.msra.mxu0 0.0
      %2698 = vmatprep.subr.mxu0 0.0
      %2699 = vmatpush1.msra.mxu0 0.0
      %2700 = vmatprep.subr.mxu0 0.0
      %2701 = vmatpush1.msra.mxu0 0.0
      %2702 = vmatprep.subr.mxu0 0.0
      %2703 = vmatpush1.msra.mxu0 0.0
      %2704 = vmatprep.subr.mxu0 0.0
      %2705 = vmatpush1.msra.mxu0 0.0
      %2706 = vmatprep.subr.mxu0 0.0
      %2707 = vmatpush1.msra.mxu0 0.0
      %2708 = vmatprep.subr.mxu0 0.0
      %2709 = vmatpush1.msra.mxu0 0.0
      %2710 = vmatprep.subr.mxu0 0.0
      %2711 = vmatpush1.msra.mxu0 0.0
      %2712 = vmatprep.subr.mxu0 0.0
      %2713 = vmatpush1.msra.mxu0 0.0
      %2714 = vmatprep.subr.mxu0 0.0
      %2715 = vmatpush1.msra.mxu0 0.0
      %2716 = vmatprep.subr.mxu0 0.0
      %2717 = vmatpush1.msra.mxu0 0.0
      %2718 = vmatprep.subr.mxu0 0.0
      %2719 = vmatpush1.msra.mxu0 0.0
      %2720 = vmatprep.subr.mxu0 0.0
      %2721 = vmatpush1.msra.mxu0 0.0
      %2722 = vmatprep.subr.mxu0 0.0
      %2723 = vmatpush1.msra.mxu0 0.0
      %2724 = vmatprep.subr.mxu0 0.0
      %2725 = vmatpush1.msra.mxu0 0.0
      %2726 = vmatprep.subr.mxu0 0.0
      %2727 = vmatpush1.msra.mxu0 0.0
      %2728 = vmatprep.subr.mxu0 0.0
      %2729 = vmatpush1.msra.mxu0 0.0
      %2730 = vmatprep.subr.mxu0 0.0
      %2731 = vmatpush1.msra.mxu0 0.0
      %2732 = vmatprep.subr.mxu0 0.0
      %2733 = vmatpush1.msra.mxu0 0.0
      %2734 = vmatprep.subr.mxu0 0.0
      %2735 = vmatpush1.msra.mxu0 0.0
      %2736 = vmatprep.subr.mxu0 0.0
      %2737 = vmatpush1.msra.mxu0 0.0
      %2738 = vmatprep.mubr.f32.mxu0 0.0
      %2739 = vmatmul.mubr.f32.gmra.mrb[0].mxu0 %v2672
      %v2740 = vpop.f32.mrb[0].mxu0
      %v2741 = vadd.f32 0.0, %v2740
      %v2742 = vpop.f32.mrb[0].mxu0
      %2743 = vdwg.mxu0
      %v2744 = vadd.f32 %v2503, %v2741
      %2745 = vrot.lane.b32.xlu0 %v2029, 104
      %v2746 = vpop.permute.xlu0 %2745
      %2747 = vrot.lane.b32.xlu0 %v2021, 72
      %v2748 = vpop.permute.xlu0 %2747
      %v2749 = vsel %vm741, %v2746, 0
      %v2751 = vsel %vm741, %v2748, 0
      %2753 = vmatprep.subr.mxu0 0.0
      %2754 = vmatpush1.xpose.msra.mxu0 %v2751
      %2755 = vmatprep.subr.mxu0 0.0
      %2756 = vmatpush1.xpose.msra.mxu0 0.0
      %2757 = vmatprep.subr.mxu0 0.0
      %2758 = vmatpush1.xpose.msra.mxu0 0.0
      %2759 = vmatprep.subr.mxu0 0.0
      %2760 = vmatpush1.xpose.msra.mxu0 0.0
      %2761 = vmatprep.subr.mxu0 0.0
      %2762 = vmatpush1.xpose.msra.mxu0 0.0
      %2763 = vmatprep.subr.mxu0 0.0
      %2764 = vmatpush1.xpose.msra.mxu0 0.0
      %2765 = vmatprep.subr.mxu0 0.0
      %2766 = vmatpush1.xpose.msra.mxu0 0.0
      %2767 = vmatprep.subr.mxu0 0.0
      %2768 = vmatpush1.xpose.msra.mxu0 0.0
      %2769 = vmatprep.subr.mxu0 0.0
      %2770 = vmatpush1.xpose.msra.mxu0 0.0
      %2771 = vmatprep.subr.mxu0 0.0
      %2772 = vmatpush1.xpose.msra.mxu0 0.0
      %2773 = vmatprep.subr.mxu0 0.0
      %2774 = vmatpush1.xpose.msra.mxu0 0.0
      %2775 = vmatprep.subr.mxu0 0.0
      %2776 = vmatpush1.xpose.msra.mxu0 0.0
      %2777 = vmatprep.subr.mxu0 0.0
      %2778 = vmatpush1.xpose.msra.mxu0 0.0
      %2779 = vmatprep.subr.mxu0 0.0
      %2780 = vmatpush1.xpose.msra.mxu0 0.0
      %2781 = vmatprep.subr.mxu0 0.0
      %2782 = vmatpush1.xpose.msra.mxu0 0.0
      %2783 = vmatprep.subr.mxu0 0.0
      %2784 = vmatpush1.xpose.msra.mxu0 0.0
      %2785 = vmatprep.subr.mxu0 0.0
      %2786 = vmatpush1.xpose.msra.mxu0 0.0
      %2787 = vmatprep.subr.mxu0 0.0
      %2788 = vmatpush1.xpose.msra.mxu0 0.0
      %2789 = vmatprep.subr.mxu0 0.0
      %2790 = vmatpush1.xpose.msra.mxu0 0.0
      %2791 = vmatprep.subr.mxu0 0.0
      %2792 = vmatpush1.xpose.msra.mxu0 0.0
      %2793 = vmatprep.subr.mxu0 0.0
      %2794 = vmatpush1.xpose.msra.mxu0 0.0
      %2795 = vmatprep.subr.mxu0 0.0
      %2796 = vmatpush1.xpose.msra.mxu0 0.0
      %2797 = vmatprep.subr.mxu0 0.0
      %2798 = vmatpush1.xpose.msra.mxu0 0.0
      %2799 = vmatprep.subr.mxu0 0.0
      %2800 = vmatpush1.xpose.msra.mxu0 0.0
      %2801 = vmatprep.subr.mxu0 0.0
      %2802 = vmatpush1.xpose.msra.mxu0 0.0
      %2803 = vmatprep.subr.mxu0 0.0
      %2804 = vmatpush1.xpose.msra.mxu0 0.0
      %2805 = vmatprep.subr.mxu0 0.0
      %2806 = vmatpush1.xpose.msra.mxu0 0.0
      %2807 = vmatprep.subr.mxu0 0.0
      %2808 = vmatpush1.xpose.msra.mxu0 0.0
      %2809 = vmatprep.subr.mxu0 0.0
      %2810 = vmatpush1.xpose.msra.mxu0 0.0
      %2811 = vmatprep.subr.mxu0 0.0
      %2812 = vmatpush1.xpose.msra.mxu0 0.0
      %2813 = vmatprep.subr.mxu0 0.0
      %2814 = vmatpush1.xpose.msra.mxu0 0.0
      %2815 = vmatprep.subr.mxu0 0.0
      %2816 = vmatpush1.xpose.msra.mxu0 0.0
      %2817 = vmatprep.mubr.f32.mxu0 0.0
      %2818 = vmatmul.mubr.f32.gmra.mrb[0].mxu0 %v2749
      %v2819 = vpop.f32.mrb[0].mxu0
      %v2820 = vadd.f32 0.0, %v2819
      %v2821 = vpop.f32.mrb[0].mxu0
      %2822 = vdwg.mxu0
      %v2823 = vsel %vm741, %v2820, -inf
      %2824 = vmax.xlane.f32.xlu0 %v2823
      %v2825 = vpop.xlane.xlu0 %2824
      %v2826 = vsub.f32 %v2820, %v2825
      %v2827 = vmul.f32 %v2826, 1.442695
      %v2828 = vpow.pop %v2827
      %v2829 = vsel %vm741, %v2828, 0.0
      %2830 = vadd.xlane.f32.xlu0 %v2829
      %v2831 = vpop.xlane.xlu0 %2830
      %v2832 = vrcp.pop %v2831
      %v2833 = vmul.f32 %v2828, %v2832
      %2834 = vrot.lane.b32.xlu0 %v2021, 40
      %v2835 = vpop.permute.xlu0 %2834
      %v2838 = vsel %vm741, %v2833, 0
      %2840 = vmatprep.subr.mxu0 0.0
      %2841 = vmatpush1.msra.mxu0 %v2835
      %2842 = vmatprep.subr.mxu0 0.0
      %2843 = vmatpush1.msra.mxu0 0.0
      %2844 = vmatprep.subr.mxu0 0.0
      %2845 = vmatpush1.msra.mxu0 0.0
      %2846 = vmatprep.subr.mxu0 0.0
      %2847 = vmatpush1.msra.mxu0 0.0
      %2848 = vmatprep.subr.mxu0 0.0
      %2849 = vmatpush1.msra.mxu0 0.0
      %2850 = vmatprep.subr.mxu0 0.0
      %2851 = vmatpush1.msra.mxu0 0.0
      %2852 = vmatprep.subr.mxu0 0.0
      %2853 = vmatpush1.msra.mxu0 0.0
      %2854 = vmatprep.subr.mxu0 0.0
      %2855 = vmatpush1.msra.mxu0 0.0
      %2856 = vmatprep.subr.mxu0 0.0
      %2857 = vmatpush1.msra.mxu0 0.0
      %2858 = vmatprep.subr.mxu0 0.0
      %2859 = vmatpush1.msra.mxu0 0.0
      %2860 = vmatprep.subr.mxu0 0.0
      %2861 = vmatpush1.msra.mxu0 0.0
      %2862 = vmatprep.subr.mxu0 0.0
      %2863 = vmatpush1.msra.mxu0 0.0
      %2864 = vmatprep.subr.mxu0 0.0
      %2865 = vmatpush1.msra.mxu0 0.0
      %2866 = vmatprep.subr.mxu0 0.0
      %2867 = vmatpush1.msra.mxu0 0.0
      %2868 = vmatprep.subr.mxu0 0.0
      %2869 = vmatpush1.msra.mxu0 0.0
      %2870 = vmatprep.subr.mxu0 0.0
      %2871 = vmatpush1.msra.mxu0 0.0
      %2872 = vmatprep.subr.mxu0 0.0
      %2873 = vmatpush1.msra.mxu0 0.0
      %2874 = vmatprep.subr.mxu0 0.0
      %2875 = vmatpush1.msra.mxu0 0.0
      %2876 = vmatprep.subr.mxu0 0.0
      %2877 = vmatpush1.msra.mxu0 0.0
      %2878 = vmatprep.subr.mxu0 0.0
      %2879 = vmatpush1.msra.mxu0 0.0
      %2880 = vmatprep.subr.mxu0 0.0
      %2881 = vmatpush1.msra.mxu0 0.0
      %2882 = vmatprep.subr.mxu0 0.0
      %2883 = vmatpush1.msra.mxu0 0.0
      %2884 = vmatprep.subr.mxu0 0.0
      %2885 = vmatpush1.msra.mxu0 0.0
      %2886 = vmatprep.subr.mxu0 0.0
      %2887 = vmatpush1.msra.mxu0 0.0
      %2888 = vmatprep.subr.mxu0 0.0
      %2889 = vmatpush1.msra.mxu0 0.0
      %2890 = vmatprep.subr.mxu0 0.0
      %2891 = vmatpush1.msra.mxu0 0.0
      %2892 = vmatprep.subr.mxu0 0.0
      %2893 = vmatpush1.msra.mxu0 0.0
      %2894 = vmatprep.subr.mxu0 0.0
      %2895 = vmatpush1.msra.mxu0 0.0
      %2896 = vmatprep.subr.mxu0 0.0
      %2897 = vmatpush1.msra.mxu0 0.0
      %2898 = vmatprep.subr.mxu0 0.0
      %2899 = vmatpush1.msra.mxu0 0.0
      %2900 = vmatprep.subr.mxu0 0.0
      %2901 = vmatpush1.msra.mxu0 0.0
      %2902 = vmatprep.subr.mxu0 0.0
      %2903 = vmatpush1.msra.mxu0 0.0
      %2904 = vmatprep.mubr.f32.mxu0 0.0
      %2905 = vmatmul.mubr.f32.gmra.mrb[0].mxu0 %v2838
      %v2906 = vpop.f32.mrb[0].mxu0
      %v2907 = vadd.f32 0.0, %v2906
      %v2908 = vpop.f32.mrb[0].mxu0
      %2909 = vdwg.mxu0
      %v2911 = vsel %vm741, %v2907, 0
      %2913 = vmatprep.subr.mxu0 0.0
      %2914 = vmatpush1.msra.mxu0 %v2028
      %2915 = vmatprep.subr.mxu0 0.0
      %2916 = vmatpush1.msra.mxu0 0.0
      %2917 = vmatprep.subr.mxu0 0.0
      %2918 = vmatpush1.msra.mxu0 0.0
      %2919 = vmatprep.subr.mxu0 0.0
      %2920 = vmatpush1.msra.mxu0 0.0
      %2921 = vmatprep.subr.mxu0 0.0
      %2922 = vmatpush1.msra.mxu0 0.0
      %2923 = vmatprep.subr.mxu0 0.0
      %2924 = vmatpush1.msra.mxu0 0.0
      %2925 = vmatprep.subr.mxu0 0.0
      %2926 = vmatpush1.msra.mxu0 0.0
      %2927 = vmatprep.subr.mxu0 0.0
      %2928 = vmatpush1.msra.mxu0 0.0
      %2929 = vmatprep.subr.mxu0 0.0
      %2930 = vmatpush1.msra.mxu0 0.0
      %2931 = vmatprep.subr.mxu0 0.0
      %2932 = vmatpush1.msra.mxu0 0.0
      %2933 = vmatprep.subr.mxu0 0.0
      %2934 = vmatpush1.msra.mxu0 0.0
      %2935 = vmatprep.subr.mxu0 0.0
      %2936 = vmatpush1.msra.mxu0 0.0
      %2937 = vmatprep.subr.mxu0 0.0
      %2938 = vmatpush1.msra.mxu0 0.0
      %2939 = vmatprep.subr.mxu0 0.0
      %2940 = vmatpush1.msra.mxu0 0.0
      %2941 = vmatprep.subr.mxu0 0.0
      %2942 = vmatpush1.msra.mxu0 0.0
      %2943 = vmatprep.subr.mxu0 0.0
      %2944 = vmatpush1.msra.mxu0 0.0
      %2945 = vmatprep.subr.mxu0 0.0
      %2946 = vmatpush1.msra.mxu0 0.0
      %2947 = vmatprep.subr.mxu0 0.0
      %2948 = vmatpush1.msra.mxu0 0.0
      %2949 = vmatprep.subr.mxu0 0.0
      %2950 = vmatpush1.msra.mxu0 0.0
      %2951 = vmatprep.subr.mxu0 0.0
      %2952 = vmatpush1.msra.mxu0 0.0
      %2953 = vmatprep.subr.mxu0 0.0
      %2954 = vmatpush1.msra.mxu0 0.0
      %2955 = vmatprep.subr.mxu0 0.0
      %2956 = vmatpush1.msra.mxu0 0.0
      %2957 = vmatprep.subr.mxu0 0.0
      %2958 = vmatpush1.msra.mxu0 0.0
      %2959 = vmatprep.subr.mxu0 0.0
      %2960 = vmatpush1.msra.mxu0 0.0
      %2961 = vmatprep.subr.mxu0 0.0
      %2962 = vmatpush1.msra.mxu0 0.0
      %2963 = vmatprep.subr.mxu0 0.0
      %2964 = vmatpush1.msra.mxu0 0.0
      %2965 = vmatprep.subr.mxu0 0.0
      %2966 = vmatpush1.msra.mxu0 0.0
      %2967 = vmatprep.subr.mxu0 0.0
      %2968 = vmatpush1.msra.mxu0 0.0
      %2969 = vmatprep.subr.mxu0 0.0
      %2970 = vmatpush1.msra.mxu0 0.0
      %2971 = vmatprep.subr.mxu0 0.0
      %2972 = vmatpush1.msra.mxu0 0.0
      %2973 = vmatprep.subr.mxu0 0.0
      %2974 = vmatpush1.msra.mxu0 0.0
      %2975 = vmatprep.subr.mxu0 0.0
      %2976 = vmatpush1.msra.mxu0 0.0
      %2977 = vmatprep.mubr.f32.mxu0 0.0
      %2978 = vmatmul.mubr.f32.gmra.mrb[0].mxu0 %v2911
      %v2979 = vpop.f32.mrb[0].mxu0
      %v2980 = vadd.f32 0.0, %v2979
      %v2981 = vpop.f32.mrb[0].mxu0
      %2982 = vdwg.mxu0
      %v2983 = vadd.f32 %v2744, %v2980
      %v2984 = vadd.f32 %v1914, %v2983
      %s2985 = scalar_lea.vmem %s7, 1
      %v2986 = vld [vmem:[%s2985] sm:$0x1]
      %v2988 = vlaneseq
      %v2989 = vshrl.u32 %v2988, 7
      %v2990 = vsub.s32 0, %v2989
      %v2991 = vrot.slane %v2986, %v2990
      %v2993 = vadd.f32 %v2984, %v2991
      %s2994 = scalar_lea.vmem %s8, 1
      %v2995 = vld [vmem:[%s2994] sm:$0x1]
      %s2996 = scalar_lea.vmem %s9, 1
      %v2997 = vld [vmem:[%s2996] sm:$0x1]
      %v2998 = vsel %vm627, %v2993, 0.0
      %2999 = vadd.xlane.f32.xlu0 %v2998
      %v3000 = vpop.xlane.xlu0 %2999
      %v3001 = vmul.f32 %v3000, %v631
      %v3002 = vsub.f32 %v2993, %v3001
      %v3003 = vmul.f32 %v3002, %v3002
      %v3004 = vsel %vm627, %v3003, 0.0
      %3005 = vadd.xlane.f32.xlu0 %v3004
      %v3006 = vpop.xlane.xlu0 %3005
      %v3007 = vmul.f32 %v3006, %v631
      %v3008 = vadd.f32 %v3007, 1e-05
      %v3009 = vrsqrt.pop %v3008
      %v3010 = vmul.f32 %v3002, %v3009
      %v3012 = vlaneseq
      %v3013 = vshrl.u32 %v3012, 7
      %v3014 = vsub.s32 0, %v3013
      %v3015 = vrot.slane %v2995, %v3014
      %v3017 = vmul.f32 %v3010, %v3015
      %v3019 = vlaneseq
      %v3020 = vshrl.u32 %v3019, 7
      %v3021 = vsub.s32 0, %v3020
      %v3022 = vrot.slane %v2997, %v3021
      %v3024 = vadd.f32 %v3017, %v3022
      %s3025 = scalar_lea.vmem %s10, 32
      %v3026 = vld [vmem:[%s3025] sm:$0xff]
      %v3027 = vld [vmem:[%s3025 + $0x8] sm:$0xff]
      %v3028 = vld [vmem:[%s3025 + $0x10] sm:$0xff]
      %v3029 = vld [vmem:[%s3025 + $0x18] sm:$0xff]
      %s3030 = scalar_lea.vmem %s11, 1
      %v3031 = vld [vmem:[%s3030] sm:$0x1]
      %v3033 = vlaneseq
      %v3034 = vshrl.u32 %v3033, 7
      %v3035 = vsub.s32 0, %v3034
      %v3036 = vrot.slane %v3031, %v3035
      %v3039 = vsel %vm627, %v3024, 0
      %3041 = vmatprep.subr.mxu0 0.0
      %3042 = vmatpush1.msra.mxu0 %v3026
      %3043 = vmatprep.subr.mxu0 0.0
      %3044 = vmatpush1.msra.mxu0 %v3027
      %3045 = vmatprep.subr.mxu0 0.0
      %3046 = vmatpush1.msra.mxu0 %v3028
      %3047 = vmatprep.subr.mxu0 0.0
      %3048 = vmatpush1.msra.mxu0 %v3029
      %3049 = vmatprep.subr.mxu0 0.0
      %3050 = vmatpush1.msra.mxu0 0.0
      %3051 = vmatprep.subr.mxu0 0.0
      %3052 = vmatpush1.msra.mxu0 0.0
      %3053 = vmatprep.subr.mxu0 0.0
      %3054 = vmatpush1.msra.mxu0 0.0
      %3055 = vmatprep.subr.mxu0 0.0
      %3056 = vmatpush1.msra.mxu0 0.0
      %3057 = vmatprep.subr.mxu0 0.0
      %3058 = vmatpush1.msra.mxu0 0.0
      %3059 = vmatprep.subr.mxu0 0.0
      %3060 = vmatpush1.msra.mxu0 0.0
      %3061 = vmatprep.subr.mxu0 0.0
      %3062 = vmatpush1.msra.mxu0 0.0
      %3063 = vmatprep.subr.mxu0 0.0
      %3064 = vmatpush1.msra.mxu0 0.0
      %3065 = vmatprep.subr.mxu0 0.0
      %3066 = vmatpush1.msra.mxu0 0.0
      %3067 = vmatprep.subr.mxu0 0.0
      %3068 = vmatpush1.msra.mxu0 0.0
      %3069 = vmatprep.subr.mxu0 0.0
      %3070 = vmatpush1.msra.mxu0 0.0
      %3071 = vmatprep.subr.mxu0 0.0
      %3072 = vmatpush1.msra.mxu0 0.0
      %3073 = vmatprep.subr.mxu0 0.0
      %3074 = vmatpush1.msra.mxu0 0.0
      %3075 = vmatprep.subr.mxu0 0.0
      %3076 = vmatpush1.msra.mxu0 0.0
      %3077 = vmatprep.subr.mxu0 0.0
      %3078 = vmatpush1.msra.mxu0 0.0
      %3079 = vmatprep.subr.mxu0 0.0
      %3080 = vmatpush1.msra.mxu0 0.0
      %3081 = vmatprep.subr.mxu0 0.0
      %3082 = vmatpush1.msra.mxu0 0.0
      %3083 = vmatprep.subr.mxu0 0.0
      %3084 = vmatpush1.msra.mxu0 0.0
      %3085 = vmatprep.subr.mxu0 0.0
      %3086 = vmatpush1.msra.mxu0 0.0
      %3087 = vmatprep.subr.mxu0 0.0
      %3088 = vmatpush1.msra.mxu0 0.0
      %3089 = vmatprep.subr.mxu0 0.0
      %3090 = vmatpush1.msra.mxu0 0.0
      %3091 = vmatprep.subr.mxu0 0.0
      %3092 = vmatpush1.msra.mxu0 0.0
      %3093 = vmatprep.subr.mxu0 0.0
      %3094 = vmatpush1.msra.mxu0 0.0
      %3095 = vmatprep.subr.mxu0 0.0
      %3096 = vmatpush1.msra.mxu0 0.0
      %3097 = vmatprep.subr.mxu0 0.0
      %3098 = vmatpush1.msra.mxu0 0.0
      %3099 = vmatprep.subr.mxu0 0.0
      %3100 = vmatpush1.msra.mxu0 0.0
      %3101 = vmatprep.subr.mxu0 0.0
      %3102 = vmatpush1.msra.mxu0 0.0
      %3103 = vmatprep.subr.mxu0 0.0
      %3104 = vmatpush1.msra.mxu0 0.0
      %3105 = vmatprep.mubr.f32.mxu0 0.0
      %3106 = vmatmul.mubr.f32.gmra.mrb[0].mxu0 %v3039
      %v3107 = vpop.f32.mrb[0].mxu0
      %v3108 = vadd.f32 %v3036, %v3107
      %v3109 = vpop.f32.mrb[0].mxu0
      %3110 = vdwg.mxu0
      %v3111 = vmul.f32 %v3108, 0.5
      %v3112 = vmul.f32 %v3108, 0.70710677
      %v3113 = verf.f32.pop %v3112
      %v3114 = vadd.f32 %v3113, 1.0
      %v3115 = vmul.f32 %v3111, %v3114
      %s3116 = scalar_lea.vmem %s12, 128
      %v3117 = vld [vmem:[%s3116] sm:$0xff]
      %v3118 = vld [vmem:[%s3116 + $0x8] sm:$0xff]
      %v3119 = vld [vmem:[%s3116 + $0x10] sm:$0xff]
      %v3120 = vld [vmem:[%s3116 + $0x18] sm:$0xff]
      %v3121 = vld [vmem:[%s3116 + $0x20] sm:$0xff]
      %v3122 = vld [vmem:[%s3116 + $0x28] sm:$0xff]
      %v3123 = vld [vmem:[%s3116 + $0x30] sm:$0xff]
      %v3124 = vld [vmem:[%s3116 + $0x38] sm:$0xff]
      %v3125 = vld [vmem:[%s3116 + $0x40] sm:$0xff]
      %v3126 = vld [vmem:[%s3116 + $0x48] sm:$0xff]
      %v3127 = vld [vmem:[%s3116 + $0x50] sm:$0xff]
      %v3128 = vld [vmem:[%s3116 + $0x58] sm:$0xff]
      %v3129 = vld [vmem:[%s3116 + $0x60] sm:$0xff]
      %v3130 = vld [vmem:[%s3116 + $0x68] sm:$0xff]
      %v3131 = vld [vmem:[%s3116 + $0x70] sm:$0xff]
      %v3132 = vld [vmem:[%s3116 + $0x78] sm:$0xff]
      %3133 = vmatprep.subr.mxu0 0.0
      %3134 = vmatpush1.msra.mxu0 %v3117
      %3135 = vmatprep.subr.mxu0 0.0
      %3136 = vmatpush1.msra.mxu0 %v3118
      %3137 = vmatprep.subr.mxu0 0.0
      %3138 = vmatpush1.msra.mxu0 %v3119
      %3139 = vmatprep.subr.mxu0 0.0
      %3140 = vmatpush1.msra.mxu0 %v3120
      %3141 = vmatprep.subr.mxu0 0.0
      %3142 = vmatpush1.msra.mxu0 %v3121
      %3143 = vmatprep.subr.mxu0 0.0
      %3144 = vmatpush1.msra.mxu0 %v3122
      %3145 = vmatprep.subr.mxu0 0.0
      %3146 = vmatpush1.msra.mxu0 %v3123
      %3147 = vmatprep.subr.mxu0 0.0
      %3148 = vmatpush1.msra.mxu0 %v3124
      %3149 = vmatprep.subr.mxu0 0.0
      %3150 = vmatpush1.msra.mxu0 %v3125
      %3151 = vmatprep.subr.mxu0 0.0
      %3152 = vmatpush1.msra.mxu0 %v3126
      %3153 = vmatprep.subr.mxu0 0.0
      %3154 = vmatpush1.msra.mxu0 %v3127
      %3155 = vmatprep.subr.mxu0 0.0
      %3156 = vmatpush1.msra.mxu0 %v3128
      %3157 = vmatprep.subr.mxu0 0.0
      %3158 = vmatpush1.msra.mxu0 %v3129
      %3159 = vmatprep.subr.mxu0 0.0
      %3160 = vmatpush1.msra.mxu0 %v3130
      %3161 = vmatprep.subr.mxu0 0.0
      %3162 = vmatpush1.msra.mxu0 %v3131
      %3163 = vmatprep.subr.mxu0 0.0
      %3164 = vmatpush1.msra.mxu0 %v3132
      %3165 = vmatprep.subr.mxu0 0.0
      %3166 = vmatpush1.msra.mxu0 0.0
      %3167 = vmatprep.subr.mxu0 0.0
      %3168 = vmatpush1.msra.mxu0 0.0
      %3169 = vmatprep.subr.mxu0 0.0
      %3170 = vmatpush1.msra.mxu0 0.0
      %3171 = vmatprep.subr.mxu0 0.0
      %3172 = vmatpush1.msra.mxu0 0.0
      %3173 = vmatprep.subr.mxu0 0.0
      %3174 = vmatpush1.msra.mxu0 0.0
      %3175 = vmatprep.subr.mxu0 0.0
      %3176 = vmatpush1.msra.mxu0 0.0
      %3177 = vmatprep.subr.mxu0 0.0
      %3178 = vmatpush1.msra.mxu0 0.0
      %3179 = vmatprep.subr.mxu0 0.0
      %3180 = vmatpush1.msra.mxu0 0.0
      %3181 = vmatprep.subr.mxu0 0.0
      %3182 = vmatpush1.msra.mxu0 0.0
      %3183 = vmatprep.subr.mxu0 0.0
      %3184 = vmatpush1.msra.mxu0 0.0
      %3185 = vmatprep.subr.mxu0 0.0
      %3186 = vmatpush1.msra.mxu0 0.0
      %3187 = vmatprep.subr.mxu0 0.0
      %3188 = vmatpush1.msra.mxu0 0.0
      %3189 = vmatprep.subr.mxu0 0.0
      %3190 = vmatpush1.msra.mxu0 0.0
      %3191 = vmatprep.subr.mxu0 0.0
      %3192 = vmatpush1.msra.mxu0 0.0
      %3193 = vmatprep.subr.mxu0 0.0
      %3194 = vmatpush1.msra.mxu0 0.0
      %3195 = vmatprep.subr.mxu0 0.0
      %3196 = vmatpush1.msra.mxu0 0.0
      %3197 = vmatprep.mubr.f32.mxu0 0.0
      %3198 = vmatmul.mubr.f32.gmra.mrb[0].mxu0 %v3115
      %v3199 = vpop.f32.mrb[0].mxu0
      %v3200 = vadd.f32 0.0, %v3199
      %v3201 = vpop.f32.mrb[0].mxu0
      %3202 = vdwg.mxu0
      %v3203 = vadd.f32 %v2993, %v3200
      %s3204 = scalar_lea.vmem %s13, 1
      %v3205 = vld [vmem:[%s3204] sm:$0x1]
      %v3207 = vlaneseq
      %v3208 = vshrl.u32 %v3207, 7
      %v3209 = vsub.s32 0, %v3208
      %v3210 = vrot.slane %v3205, %v3209
      %v3212 = vadd.f32 %v3203, %v3210
      %v3213 = vld [vmem:[%s14] sm:$0x1]
      %v3214 = vld [vmem:[%s15] sm:$0x1]
      %v3215 = vsel %vm627, %v3212, 0.0
      %3216 = vadd.xlane.f32.xlu0 %v3215
      %v3217 = vpop.xlane.xlu0 %3216
      %v3218 = vmul.f32 %v3217, %v631
      %v3219 = vsub.f32 %v3212, %v3218
      %v3220 = vmul.f32 %v3219, %v3219
      %v3221 = vsel %vm627, %v3220, 0.0
      %3222 = vadd.xlane.f32.xlu0 %v3221
      %v3223 = vpop.xlane.xlu0 %3222
      %v3224 = vmul.f32 %v3223, %v631
      %v3225 = vadd.f32 %v3224, 1e-05
      %v3226 = vrsqrt.pop %v3225
      %v3227 = vmul.f32 %v3219, %v3226
      %v3229 = vlaneseq
      %v3230 = vshrl.u32 %v3229, 7
      %v3231 = vsub.s32 0, %v3230
      %v3232 = vrot.slane %v3213, %v3231
      %v3234 = vmul.f32 %v3227, %v3232
      %v3236 = vlaneseq
      %v3237 = vshrl.u32 %v3236, 7
      %v3238 = vsub.s32 0, %v3237
      %v3239 = vrot.slane %v3214, %v3238
      %v3241 = vadd.f32 %v3234, %v3239
      %3242 = vst.msk [vmem:[%s519] sm:$0xff] %vm627, %v3241
      %p3243 = scmp.lt.s32.totalorder %s27, 1
      %s3244 = scalar_select %p3243, %s27, 1
      %s3245 = smul.addr %s3244, 8
      %s3246 = scalar_lea.vmem %s16, %s3245
      // Predicated region
      $region85: #{vit_forward.1} parent=83 // pred_check
        %p3247 = pneg %p386
      $region86: #{vit_forward.1} parent=83 // pred_check_branch
        %3249 = sbr.rel (%p3247) target = $region88
      $region87: #{vit_forward.1} parent=83 // pred_region
        _
      $region88: #{vit_forward.1} parent=83 // pred_fallthru
        _
    $region84: #{vit_forward.1} parent=5 // pred_fallthru
      _
    %p3250 = scmp.le.s32.totalorder 2, %s22
    // Predicated region
    $region89: #{vit_forward.1} parent=5 // pred_check
      %p3251 = pneg %p3250
    $region90: #{vit_forward.1} parent=5 // pred_check_branch
      %3253 = sbr.rel (%p3251) target = $region92
    $region91: #{vit_forward.1} parent=5 // pred_region
      %s3254 = ssub.s32 %s22, 2
      // Predicated region
      $region93: #{vit_forward.1} parent=91 // pred_check
        %p3255 = pneg %p392
      $region94: #{vit_forward.1} parent=91 // pred_check_branch
        %3257 = sbr.rel (%p3255) target = $region96
      $region95: #{vit_forward.1} parent=91 // pred_region
        %p3258 = scmp.lt.s32.totalorder %s28, 1
        %s3259 = scalar_select %p3258, %s28, 1
        %s3260 = smul.addr %s3259, 8
        %s3261 = scalar_lea.vmem %s16, %s3260
      $region96: #{vit_forward.1} parent=91 // pred_fallthru
        _
    $region92: #{vit_forward.1} parent=5 // pred_fallthru
      _
  $region6: #{vit_forward.1} parent=0 // loop_footer
    %s26 = sadd.s32 1, %s22
  $region7: #{vit_forward.1} parent=0 // loop_footer_branch
    %21 = sbr.rel target = $region3
  $region8: #{vit_forward.1} parent=0 // loop_exit
    _

</llo_original>
